<compile_context>
chip_gen: v6e
topology: v6e:2x2x1
jax: 0.10.0
libtpu: 0.0.40
codegen_flags: <defaults>
</compile_context>

<pallas_src>
import functools

import numpy as np
import jax
import jax.numpy as jnp
from jax.experimental import pallas as pl
from jax.experimental.pallas import tpu as pltpu

LANE = 128  # final logits padded to one full lane group -> dense vst


# ----------------------------------------------------------------------------
# Init-time lowering of a PyTorch Conv2d into the (S_i, W_i, b_row) form.
# ----------------------------------------------------------------------------
def _lower_conv(weight, bias, H, W, stride, pad):
    weight = np.asarray(weight, dtype=np.float32)          # (Cout, Cin, KH, KW)
    bias = np.asarray(bias, dtype=np.float32)               # (Cout,)
    Cout, Cin, KH, KW = weight.shape
    Ho = (H + 2 * pad - KH) // stride + 1
    Wo = (W + 2 * pad - KW) // stride + 1

    # Row selector per kernel-row offset i (zero rows = H padding).
    S = np.zeros((KH, Ho, H), np.float32)
    for i in range(KH):
        for ho in range(Ho):
            h = stride * ho + i - pad
            if 0 <= h < H:
                S[i, ho, h] = 1.0

    # Column-gather + weights per kernel-row offset i (missing blocks = W padding).
    Wm = np.zeros((KH, W * Cin, Wo * Cout), np.float32)
    for i in range(KH):
        for j in range(KW):
            for wo in range(Wo):
                w = stride * wo + j - pad
                if 0 <= w < W:
                    Wm[i, w * Cin:(w + 1) * Cin, wo * Cout:(wo + 1) * Cout] = \
                        weight[:, :, i, j].T
    b_row = np.tile(bias, Wo).reshape(1, Wo * Cout)
    return jnp.asarray(S), jnp.asarray(Wm), jnp.asarray(b_row), Ho, Wo


# ----------------------------------------------------------------------------
# Parameter init (deterministic, kaiming-normal-like) + packing for the kernel
# ----------------------------------------------------------------------------
def init_params(key, z_dim=10, nc=3):
    def conv_p(k, cout, cin, kh, kw):
        fan_in = cin * kh * kw
        w = jax.random.normal(k, (cout, cin, kh, kw), jnp.float32) * jnp.sqrt(2.0 / fan_in)
        return w, jnp.zeros((cout,), jnp.float32)

    def lin_p(k, dout, din):
        w = jax.random.normal(k, (dout, din), jnp.float32) * jnp.sqrt(2.0 / din)
        return w, jnp.zeros((dout,), jnp.float32)

    keys = jax.random.split(key, 5)
    return {
        "conv1": conv_p(keys[0], 32, nc, 4, 4),      # Conv2d(nc, 32, 4, 2, 1)
        "conv2": conv_p(keys[1], 32, 32, 4, 4),      # Conv2d(32, 32, 4, 2, 1)
        "conv3": conv_p(keys[2], 64, 32, 3, 3),      # Conv2d(32, 64, 3, 2, 1)
        "conv4": conv_p(keys[3], 256, 64, 4, 4),     # Conv2d(64, 256, 4, 1)
        "fc":    lin_p(keys[4], z_dim * 2, 256),     # Linear(256, z_dim*2)
    }


def prepare_params(params, image_hw=32):
    """Pre-pack all weights (done once, off the hot path)."""
    packed = []
    H = W = image_hw
    for name, stride, pad in (("conv1", 2, 1), ("conv2", 2, 1),
                              ("conv3", 2, 1), ("conv4", 1, 0)):
        w, b = params[name]
        S, Wm, b_row, H, W = _lower_conv(w, b, H, W, stride, pad)
        packed.extend([S, Wm, b_row])
    assert H == 1 and W == 1, "encoder must reduce to 1x1 (32x32 input implied)"

    # fc head, output padded to a full 128-lane slab (lane-dense HBM store).
    w_fc, b_fc = params["fc"]                      # (2*z_dim, 256), (2*z_dim,)
    n_out = w_fc.shape[0]
    w_mat = np.zeros((w_fc.shape[1], LANE), np.float32)
    w_mat[:, :n_out] = np.asarray(w_fc, np.float32).T
    b_mat = np.zeros((1, LANE), np.float32)
    b_mat[0, :n_out] = np.asarray(b_fc, np.float32)
    packed.extend([jnp.asarray(w_mat), jnp.asarray(b_mat)])
    return tuple(packed)


# ----------------------------------------------------------------------------
# Fused encoder kernel: one grid step = one image.
# ----------------------------------------------------------------------------
def _encoder_kernel(x_ref,
                    s1, w1, b1, s2, w2, b2, s3, w3, b3, s4, w4, b4,
                    wfc, bfc, out_ref):
    def conv(xmat, s_ref, w_ref, b_ref):
        acc = None
        for i in range(s_ref.shape[0]):            # static unroll over kernel rows
            t = jnp.dot(s_ref[i], xmat, preferred_element_type=jnp.float32)
            t = jnp.dot(t, w_ref[i], preferred_element_type=jnp.float32)
            acc = t if acc is None else acc + t
        return jnp.maximum(acc + b_ref[...], 0.0)

    x = x_ref[0]                                   # (32, 32*nc)   channel-last
    h = conv(x, s1, w1, b1)                        # (16, 16*32)
    h = conv(h, s2, w2, b2)                        # (8,   8*32)
    h = conv(h, s3, w3, b3)                        # (4,   4*64)
    h = conv(h, s4, w4, b4)                        # (1,   256)
    y = jnp.dot(h, wfc[...], preferred_element_type=jnp.float32) + bfc[...]
    out_ref[0] = y                                 # (1, 128) lane-dense store


# ----------------------------------------------------------------------------
# Simplified_VAE.forward (encoder only; returns mu, logvar)
# ----------------------------------------------------------------------------
def simplified_vae_forward(packed, x_nchw, z_dim=10):
    B, C, H, W = x_nchw.shape
    # Single entry-point layout change: NCHW -> NHWC with (w, c) folded into lanes.
    x_mat = jnp.transpose(x_nchw, (0, 2, 3, 1)).reshape(B, H, W * C)

    def full_spec(a):
        return pl.BlockSpec(a.shape, lambda b: (0,) * a.ndim)

    in_specs = [pl.BlockSpec((1, H, W * C), lambda b: (b, 0, 0))]
    in_specs += [full_spec(a) for a in packed]

    dist_pad = pl.pallas_call(
        _encoder_kernel,
        out_shape=jax.ShapeDtypeStruct((B, 1, LANE), jnp.float32),
        grid=(B,),
        in_specs=in_specs,
        out_specs=pl.BlockSpec((1, 1, LANE), lambda b: (b, 0, 0)),
        compiler_params=pltpu.CompilerParams(
            dimension_semantics=("parallel",),       # v7x: 2 TCs split the batch
            vmem_limit_bytes=32 * 1024 * 1024,       # ~10 MiB actually used
        ),
    )(x_mat, *packed)

    dist = dist_pad.reshape(B, LANE)
    mu = dist[:, :z_dim]
    logvar = dist[:, z_dim:2 * z_dim]
    return mu, logvar


# TODO(synk): decoder (_decode / ConvTranspose2d stack) is not exercised by
# forward(), so it is not implemented here.

if __name__ == "__main__":
    z_dim, nc = 10, 3
    key = jax.random.PRNGKey(0)
    k_params, k_x = jax.random.split(key)
    params = init_params(k_params, z_dim=z_dim, nc=nc)
    packed = prepare_params(params, image_hw=32)   # 32x32 implied by View((-1, 256))
    x = jax.random.normal(k_x, (2, nc, 32, 32), jnp.float32)

    fwd = jax.jit(functools.partial(simplified_vae_forward, z_dim=z_dim))
    mu, logvar = fwd(packed, x)
    jax.block_until_ready((mu, logvar))
    assert mu.shape == (2, z_dim) and logvar.shape == (2, z_dim)
    print("KERNEL_OK")
</pallas_src>

<mosaic_0001>
module attributes {stable_mosaic.version = 11 : i64} {
  func.func @_encoder_kernel(%arg0: i32, %arg1: memref<1x32x96xf32, #tpu.memory_space<vmem>>, %arg2: memref<4x16x32xf32, #tpu.memory_space<vmem>>, %arg3: memref<4x96x512xf32, #tpu.memory_space<vmem>>, %arg4: memref<1x512xf32, #tpu.memory_space<vmem>>, %arg5: memref<4x8x16xf32, #tpu.memory_space<vmem>>, %arg6: memref<4x512x256xf32, #tpu.memory_space<vmem>>, %arg7: memref<1x256xf32, #tpu.memory_space<vmem>>, %arg8: memref<3x4x8xf32, #tpu.memory_space<vmem>>, %arg9: memref<3x256x256xf32, #tpu.memory_space<vmem>>, %arg10: memref<1x256xf32, #tpu.memory_space<vmem>>, %arg11: memref<4x1x4xf32, #tpu.memory_space<vmem>>, %arg12: memref<4x256x256xf32, #tpu.memory_space<vmem>>, %arg13: memref<1x256xf32, #tpu.memory_space<vmem>>, %arg14: memref<256x128xf32, #tpu.memory_space<vmem>>, %arg15: memref<1x128xf32, #tpu.memory_space<vmem>>, %arg16: memref<1x1x128xf32, #tpu.memory_space<vmem>>) attributes {dimension_semantics = [#tpu.dimension_semantics<parallel>], iteration_bounds = array<i64: 2>, scalar_prefetch = 0 : i64, scratch_operands = 0 : i64, tpu.core_type = #tpu.core_type<tc>, window_params = [{transform_indices = @transform_0, window_bounds = array<i64: 1, 32, 96>}, {pipeline_mode = #tpu.pipeline_mode<synchronous>, transform_indices = @transform_1, window_bounds = array<i64: 4, 16, 32>}, {pipeline_mode = #tpu.pipeline_mode<synchronous>, transform_indices = @transform_2, window_bounds = array<i64: 4, 96, 512>}, {pipeline_mode = #tpu.pipeline_mode<synchronous>, transform_indices = @transform_3, window_bounds = array<i64: 1, 512>}, {pipeline_mode = #tpu.pipeline_mode<synchronous>, transform_indices = @transform_4, window_bounds = array<i64: 4, 8, 16>}, {pipeline_mode = #tpu.pipeline_mode<synchronous>, transform_indices = @transform_5, window_bounds = array<i64: 4, 512, 256>}, {pipeline_mode = #tpu.pipeline_mode<synchronous>, transform_indices = @transform_6, window_bounds = array<i64: 1, 256>}, {pipeline_mode = #tpu.pipeline_mode<synchronous>, transform_indices = @transform_7, window_bounds = array<i64: 3, 4, 8>}, {pipeline_mode = #tpu.pipeline_mode<synchronous>, transform_indices = @transform_8, window_bounds = array<i64: 3, 256, 256>}, {pipeline_mode = #tpu.pipeline_mode<synchronous>, transform_indices = @transform_9, window_bounds = array<i64: 1, 256>}, {pipeline_mode = #tpu.pipeline_mode<synchronous>, transform_indices = @transform_10, window_bounds = array<i64: 4, 1, 4>}, {pipeline_mode = #tpu.pipeline_mode<synchronous>, transform_indices = @transform_11, window_bounds = array<i64: 4, 256, 256>}, {pipeline_mode = #tpu.pipeline_mode<synchronous>, transform_indices = @transform_12, window_bounds = array<i64: 1, 256>}, {pipeline_mode = #tpu.pipeline_mode<synchronous>, transform_indices = @transform_13, window_bounds = array<i64: 256, 128>}, {pipeline_mode = #tpu.pipeline_mode<synchronous>, transform_indices = @transform_14, window_bounds = array<i64: 1, 128>}, {transform_indices = @transform_15, window_bounds = array<i64: 1, 1, 128>}]} {
    %c0 = arith.constant 0 : index
    %c0_0 = arith.constant 0 : index
    %c0_1 = arith.constant 0 : index
    %0 = vector.load %arg1[%c0, %c0_0, %c0_1] : memref<1x32x96xf32, #tpu.memory_space<vmem>>, vector<1x32x96xf32>
    %1 = vector.shape_cast %0 : vector<1x32x96xf32> to vector<32x96xf32>
    %c0_2 = arith.constant 0 : index
    %c0_3 = arith.constant 0 : index
    %c0_4 = arith.constant 0 : index
    %2 = vector.load %arg2[%c0_2, %c0_3, %c0_4] : memref<4x16x32xf32, #tpu.memory_space<vmem>>, vector<1x16x32xf32>
    %3 = vector.shape_cast %2 : vector<1x16x32xf32> to vector<16x32xf32>
    %cst = arith.constant dense<0.000000e+00> : vector<16x96xf32>
    %4 = tpu.matmul %3, %1, %cst {dimension_numbers = #tpu.dot_dimension_numbers<[1], [0], [0], [1], [0, 0, 1, 1], [], []>} : vector<16x32xf32>, vector<32x96xf32>, vector<16x96xf32> -> vector<16x96xf32>
    %c0_5 = arith.constant 0 : index
    %c0_6 = arith.constant 0 : index
    %c0_7 = arith.constant 0 : index
    %5 = vector.load %arg3[%c0_5, %c0_6, %c0_7] : memref<4x96x512xf32, #tpu.memory_space<vmem>>, vector<1x96x512xf32>
    %6 = vector.shape_cast %5 : vector<1x96x512xf32> to vector<96x512xf32>
    %cst_8 = arith.constant dense<0.000000e+00> : vector<16x512xf32>
    %7 = tpu.matmul %4, %6, %cst_8 {dimension_numbers = #tpu.dot_dimension_numbers<[1], [0], [0], [1], [0, 0, 1, 1], [], []>} : vector<16x96xf32>, vector<96x512xf32>, vector<16x512xf32> -> vector<16x512xf32>
    %c1 = arith.constant 1 : index
    %c0_9 = arith.constant 0 : index
    %c0_10 = arith.constant 0 : index
    %8 = vector.load %arg2[%c1, %c0_9, %c0_10] : memref<4x16x32xf32, #tpu.memory_space<vmem>>, vector<1x16x32xf32>
    %9 = vector.shape_cast %8 : vector<1x16x32xf32> to vector<16x32xf32>
    %cst_11 = arith.constant dense<0.000000e+00> : vector<16x96xf32>
    %10 = tpu.matmul %9, %1, %cst_11 {dimension_numbers = #tpu.dot_dimension_numbers<[1], [0], [0], [1], [0, 0, 1, 1], [], []>} : vector<16x32xf32>, vector<32x96xf32>, vector<16x96xf32> -> vector<16x96xf32>
    %c1_12 = arith.constant 1 : index
    %c0_13 = arith.constant 0 : index
    %c0_14 = arith.constant 0 : index
    %11 = vector.load %arg3[%c1_12, %c0_13, %c0_14] : memref<4x96x512xf32, #tpu.memory_space<vmem>>, vector<1x96x512xf32>
    %12 = vector.shape_cast %11 : vector<1x96x512xf32> to vector<96x512xf32>
    %cst_15 = arith.constant dense<0.000000e+00> : vector<16x512xf32>
    %13 = tpu.matmul %10, %12, %cst_15 {dimension_numbers = #tpu.dot_dimension_numbers<[1], [0], [0], [1], [0, 0, 1, 1], [], []>} : vector<16x96xf32>, vector<96x512xf32>, vector<16x512xf32> -> vector<16x512xf32>
    %14 = arith.addf %7, %13 : vector<16x512xf32>
    %c2 = arith.constant 2 : index
    %c0_16 = arith.constant 0 : index
    %c0_17 = arith.constant 0 : index
    %15 = vector.load %arg2[%c2, %c0_16, %c0_17] : memref<4x16x32xf32, #tpu.memory_space<vmem>>, vector<1x16x32xf32>
    %16 = vector.shape_cast %15 : vector<1x16x32xf32> to vector<16x32xf32>
    %cst_18 = arith.constant dense<0.000000e+00> : vector<16x96xf32>
    %17 = tpu.matmul %16, %1, %cst_18 {dimension_numbers = #tpu.dot_dimension_numbers<[1], [0], [0], [1], [0, 0, 1, 1], [], []>} : vector<16x32xf32>, vector<32x96xf32>, vector<16x96xf32> -> vector<16x96xf32>
    %c2_19 = arith.constant 2 : index
    %c0_20 = arith.constant 0 : index
    %c0_21 = arith.constant 0 : index
    %18 = vector.load %arg3[%c2_19, %c0_20, %c0_21] : memref<4x96x512xf32, #tpu.memory_space<vmem>>, vector<1x96x512xf32>
    %19 = vector.shape_cast %18 : vector<1x96x512xf32> to vector<96x512xf32>
    %cst_22 = arith.constant dense<0.000000e+00> : vector<16x512xf32>
    %20 = tpu.matmul %17, %19, %cst_22 {dimension_numbers = #tpu.dot_dimension_numbers<[1], [0], [0], [1], [0, 0, 1, 1], [], []>} : vector<16x96xf32>, vector<96x512xf32>, vector<16x512xf32> -> vector<16x512xf32>
    %21 = arith.addf %14, %20 : vector<16x512xf32>
    %c3 = arith.constant 3 : index
    %c0_23 = arith.constant 0 : index
    %c0_24 = arith.constant 0 : index
    %22 = vector.load %arg2[%c3, %c0_23, %c0_24] : memref<4x16x32xf32, #tpu.memory_space<vmem>>, vector<1x16x32xf32>
    %23 = vector.shape_cast %22 : vector<1x16x32xf32> to vector<16x32xf32>
    %cst_25 = arith.constant dense<0.000000e+00> : vector<16x96xf32>
    %24 = tpu.matmul %23, %1, %cst_25 {dimension_numbers = #tpu.dot_dimension_numbers<[1], [0], [0], [1], [0, 0, 1, 1], [], []>} : vector<16x32xf32>, vector<32x96xf32>, vector<16x96xf32> -> vector<16x96xf32>
    %c3_26 = arith.constant 3 : index
    %c0_27 = arith.constant 0 : index
    %c0_28 = arith.constant 0 : index
    %25 = vector.load %arg3[%c3_26, %c0_27, %c0_28] : memref<4x96x512xf32, #tpu.memory_space<vmem>>, vector<1x96x512xf32>
    %26 = vector.shape_cast %25 : vector<1x96x512xf32> to vector<96x512xf32>
    %cst_29 = arith.constant dense<0.000000e+00> : vector<16x512xf32>
    %27 = tpu.matmul %24, %26, %cst_29 {dimension_numbers = #tpu.dot_dimension_numbers<[1], [0], [0], [1], [0, 0, 1, 1], [], []>} : vector<16x96xf32>, vector<96x512xf32>, vector<16x512xf32> -> vector<16x512xf32>
    %28 = arith.addf %21, %27 : vector<16x512xf32>
    %c0_30 = arith.constant 0 : index
    %c0_31 = arith.constant 0 : index
    %29 = vector.load %arg4[%c0_30, %c0_31] : memref<1x512xf32, #tpu.memory_space<vmem>>, vector<1x512xf32>
    %30 = vector.broadcast %29 : vector<1x512xf32> to vector<16x512xf32>
    %31 = arith.addf %28, %30 : vector<16x512xf32>
    %cst_32 = arith.constant 0.000000e+00 : f32
    %32 = vector.broadcast %cst_32 : f32 to vector<16x512xf32>
    %33 = arith.maximumf %31, %32 : vector<16x512xf32>
    %c0_33 = arith.constant 0 : index
    %c0_34 = arith.constant 0 : index
    %c0_35 = arith.constant 0 : index
    %34 = vector.load %arg5[%c0_33, %c0_34, %c0_35] : memref<4x8x16xf32, #tpu.memory_space<vmem>>, vector<1x8x16xf32>
    %35 = vector.shape_cast %34 : vector<1x8x16xf32> to vector<8x16xf32>
    %cst_36 = arith.constant dense<0.000000e+00> : vector<8x512xf32>
    %36 = tpu.matmul %35, %33, %cst_36 {dimension_numbers = #tpu.dot_dimension_numbers<[1], [0], [0], [1], [0, 0, 1, 1], [], []>} : vector<8x16xf32>, vector<16x512xf32>, vector<8x512xf32> -> vector<8x512xf32>
    %c0_37 = arith.constant 0 : index
    %c0_38 = arith.constant 0 : index
    %c0_39 = arith.constant 0 : index
    %37 = vector.load %arg6[%c0_37, %c0_38, %c0_39] : memref<4x512x256xf32, #tpu.memory_space<vmem>>, vector<1x512x256xf32>
    %38 = vector.shape_cast %37 : vector<1x512x256xf32> to vector<512x256xf32>
    %cst_40 = arith.constant dense<0.000000e+00> : vector<8x256xf32>
    %39 = tpu.matmul %36, %38, %cst_40 {dimension_numbers = #tpu.dot_dimension_numbers<[1], [0], [0], [1], [0, 0, 1, 1], [], []>} : vector<8x512xf32>, vector<512x256xf32>, vector<8x256xf32> -> vector<8x256xf32>
    %c1_41 = arith.constant 1 : index
    %c0_42 = arith.constant 0 : index
    %c0_43 = arith.constant 0 : index
    %40 = vector.load %arg5[%c1_41, %c0_42, %c0_43] : memref<4x8x16xf32, #tpu.memory_space<vmem>>, vector<1x8x16xf32>
    %41 = vector.shape_cast %40 : vector<1x8x16xf32> to vector<8x16xf32>
    %cst_44 = arith.constant dense<0.000000e+00> : vector<8x512xf32>
    %42 = tpu.matmul %41, %33, %cst_44 {dimension_numbers = #tpu.dot_dimension_numbers<[1], [0], [0], [1], [0, 0, 1, 1], [], []>} : vector<8x16xf32>, vector<16x512xf32>, vector<8x512xf32> -> vector<8x512xf32>
    %c1_45 = arith.constant 1 : index
    %c0_46 = arith.constant 0 : index
    %c0_47 = arith.constant 0 : index
    %43 = vector.load %arg6[%c1_45, %c0_46, %c0_47] : memref<4x512x256xf32, #tpu.memory_space<vmem>>, vector<1x512x256xf32>
    %44 = vector.shape_cast %43 : vector<1x512x256xf32> to vector<512x256xf32>
    %cst_48 = arith.constant dense<0.000000e+00> : vector<8x256xf32>
    %45 = tpu.matmul %42, %44, %cst_48 {dimension_numbers = #tpu.dot_dimension_numbers<[1], [0], [0], [1], [0, 0, 1, 1], [], []>} : vector<8x512xf32>, vector<512x256xf32>, vector<8x256xf32> -> vector<8x256xf32>
    %46 = arith.addf %39, %45 : vector<8x256xf32>
    %c2_49 = arith.constant 2 : index
    %c0_50 = arith.constant 0 : index
    %c0_51 = arith.constant 0 : index
    %47 = vector.load %arg5[%c2_49, %c0_50, %c0_51] : memref<4x8x16xf32, #tpu.memory_space<vmem>>, vector<1x8x16xf32>
    %48 = vector.shape_cast %47 : vector<1x8x16xf32> to vector<8x16xf32>
    %cst_52 = arith.constant dense<0.000000e+00> : vector<8x512xf32>
    %49 = tpu.matmul %48, %33, %cst_52 {dimension_numbers = #tpu.dot_dimension_numbers<[1], [0], [0], [1], [0, 0, 1, 1], [], []>} : vector<8x16xf32>, vector<16x512xf32>, vector<8x512xf32> -> vector<8x512xf32>
    %c2_53 = arith.constant 2 : index
    %c0_54 = arith.constant 0 : index
    %c0_55 = arith.constant 0 : index
    %50 = vector.load %arg6[%c2_53, %c0_54, %c0_55] : memref<4x512x256xf32, #tpu.memory_space<vmem>>, vector<1x512x256xf32>
    %51 = vector.shape_cast %50 : vector<1x512x256xf32> to vector<512x256xf32>
    %cst_56 = arith.constant dense<0.000000e+00> : vector<8x256xf32>
    %52 = tpu.matmul %49, %51, %cst_56 {dimension_numbers = #tpu.dot_dimension_numbers<[1], [0], [0], [1], [0, 0, 1, 1], [], []>} : vector<8x512xf32>, vector<512x256xf32>, vector<8x256xf32> -> vector<8x256xf32>
    %53 = arith.addf %46, %52 : vector<8x256xf32>
    %c3_57 = arith.constant 3 : index
    %c0_58 = arith.constant 0 : index
    %c0_59 = arith.constant 0 : index
    %54 = vector.load %arg5[%c3_57, %c0_58, %c0_59] : memref<4x8x16xf32, #tpu.memory_space<vmem>>, vector<1x8x16xf32>
    %55 = vector.shape_cast %54 : vector<1x8x16xf32> to vector<8x16xf32>
    %cst_60 = arith.constant dense<0.000000e+00> : vector<8x512xf32>
    %56 = tpu.matmul %55, %33, %cst_60 {dimension_numbers = #tpu.dot_dimension_numbers<[1], [0], [0], [1], [0, 0, 1, 1], [], []>} : vector<8x16xf32>, vector<16x512xf32>, vector<8x512xf32> -> vector<8x512xf32>
    %c3_61 = arith.constant 3 : index
    %c0_62 = arith.constant 0 : index
    %c0_63 = arith.constant 0 : index
    %57 = vector.load %arg6[%c3_61, %c0_62, %c0_63] : memref<4x512x256xf32, #tpu.memory_space<vmem>>, vector<1x512x256xf32>
    %58 = vector.shape_cast %57 : vector<1x512x256xf32> to vector<512x256xf32>
    %cst_64 = arith.constant dense<0.000000e+00> : vector<8x256xf32>
    %59 = tpu.matmul %56, %58, %cst_64 {dimension_numbers = #tpu.dot_dimension_numbers<[1], [0], [0], [1], [0, 0, 1, 1], [], []>} : vector<8x512xf32>, vector<512x256xf32>, vector<8x256xf32> -> vector<8x256xf32>
    %60 = arith.addf %53, %59 : vector<8x256xf32>
    %c0_65 = arith.constant 0 : index
    %c0_66 = arith.constant 0 : index
    %61 = vector.load %arg7[%c0_65, %c0_66] : memref<1x256xf32, #tpu.memory_space<vmem>>, vector<1x256xf32>
    %62 = vector.broadcast %61 : vector<1x256xf32> to vector<8x256xf32>
    %63 = arith.addf %60, %62 : vector<8x256xf32>
    %cst_67 = arith.constant 0.000000e+00 : f32
    %64 = vector.broadcast %cst_67 : f32 to vector<8x256xf32>
    %65 = arith.maximumf %63, %64 : vector<8x256xf32>
    %c0_68 = arith.constant 0 : index
    %c0_69 = arith.constant 0 : index
    %c0_70 = arith.constant 0 : index
    %66 = vector.load %arg8[%c0_68, %c0_69, %c0_70] : memref<3x4x8xf32, #tpu.memory_space<vmem>>, vector<1x4x8xf32>
    %67 = vector.shape_cast %66 : vector<1x4x8xf32> to vector<4x8xf32>
    %cst_71 = arith.constant dense<0.000000e+00> : vector<4x256xf32>
    %68 = tpu.matmul %67, %65, %cst_71 {dimension_numbers = #tpu.dot_dimension_numbers<[1], [0], [0], [1], [0, 0, 1, 1], [], []>} : vector<4x8xf32>, vector<8x256xf32>, vector<4x256xf32> -> vector<4x256xf32>
    %c0_72 = arith.constant 0 : index
    %c0_73 = arith.constant 0 : index
    %c0_74 = arith.constant 0 : index
    %69 = vector.load %arg9[%c0_72, %c0_73, %c0_74] : memref<3x256x256xf32, #tpu.memory_space<vmem>>, vector<1x256x256xf32>
    %70 = vector.shape_cast %69 : vector<1x256x256xf32> to vector<256x256xf32>
    %cst_75 = arith.constant dense<0.000000e+00> : vector<4x256xf32>
    %71 = tpu.matmul %68, %70, %cst_75 {dimension_numbers = #tpu.dot_dimension_numbers<[1], [0], [0], [1], [0, 0, 1, 1], [], []>} : vector<4x256xf32>, vector<256x256xf32>, vector<4x256xf32> -> vector<4x256xf32>
    %c1_76 = arith.constant 1 : index
    %c0_77 = arith.constant 0 : index
    %c0_78 = arith.constant 0 : index
    %72 = vector.load %arg8[%c1_76, %c0_77, %c0_78] : memref<3x4x8xf32, #tpu.memory_space<vmem>>, vector<1x4x8xf32>
    %73 = vector.shape_cast %72 : vector<1x4x8xf32> to vector<4x8xf32>
    %cst_79 = arith.constant dense<0.000000e+00> : vector<4x256xf32>
    %74 = tpu.matmul %73, %65, %cst_79 {dimension_numbers = #tpu.dot_dimension_numbers<[1], [0], [0], [1], [0, 0, 1, 1], [], []>} : vector<4x8xf32>, vector<8x256xf32>, vector<4x256xf32> -> vector<4x256xf32>
    %c1_80 = arith.constant 1 : index
    %c0_81 = arith.constant 0 : index
    %c0_82 = arith.constant 0 : index
    %75 = vector.load %arg9[%c1_80, %c0_81, %c0_82] : memref<3x256x256xf32, #tpu.memory_space<vmem>>, vector<1x256x256xf32>
    %76 = vector.shape_cast %75 : vector<1x256x256xf32> to vector<256x256xf32>
    %cst_83 = arith.constant dense<0.000000e+00> : vector<4x256xf32>
    %77 = tpu.matmul %74, %76, %cst_83 {dimension_numbers = #tpu.dot_dimension_numbers<[1], [0], [0], [1], [0, 0, 1, 1], [], []>} : vector<4x256xf32>, vector<256x256xf32>, vector<4x256xf32> -> vector<4x256xf32>
    %78 = arith.addf %71, %77 : vector<4x256xf32>
    %c2_84 = arith.constant 2 : index
    %c0_85 = arith.constant 0 : index
    %c0_86 = arith.constant 0 : index
    %79 = vector.load %arg8[%c2_84, %c0_85, %c0_86] : memref<3x4x8xf32, #tpu.memory_space<vmem>>, vector<1x4x8xf32>
    %80 = vector.shape_cast %79 : vector<1x4x8xf32> to vector<4x8xf32>
    %cst_87 = arith.constant dense<0.000000e+00> : vector<4x256xf32>
    %81 = tpu.matmul %80, %65, %cst_87 {dimension_numbers = #tpu.dot_dimension_numbers<[1], [0], [0], [1], [0, 0, 1, 1], [], []>} : vector<4x8xf32>, vector<8x256xf32>, vector<4x256xf32> -> vector<4x256xf32>
    %c2_88 = arith.constant 2 : index
    %c0_89 = arith.constant 0 : index
    %c0_90 = arith.constant 0 : index
    %82 = vector.load %arg9[%c2_88, %c0_89, %c0_90] : memref<3x256x256xf32, #tpu.memory_space<vmem>>, vector<1x256x256xf32>
    %83 = vector.shape_cast %82 : vector<1x256x256xf32> to vector<256x256xf32>
    %cst_91 = arith.constant dense<0.000000e+00> : vector<4x256xf32>
    %84 = tpu.matmul %81, %83, %cst_91 {dimension_numbers = #tpu.dot_dimension_numbers<[1], [0], [0], [1], [0, 0, 1, 1], [], []>} : vector<4x256xf32>, vector<256x256xf32>, vector<4x256xf32> -> vector<4x256xf32>
    %85 = arith.addf %78, %84 : vector<4x256xf32>
    %c0_92 = arith.constant 0 : index
    %c0_93 = arith.constant 0 : index
    %86 = vector.load %arg10[%c0_92, %c0_93] : memref<1x256xf32, #tpu.memory_space<vmem>>, vector<1x256xf32>
    %87 = vector.broadcast %86 : vector<1x256xf32> to vector<4x256xf32>
    %88 = arith.addf %85, %87 : vector<4x256xf32>
    %cst_94 = arith.constant 0.000000e+00 : f32
    %89 = vector.broadcast %cst_94 : f32 to vector<4x256xf32>
    %90 = arith.maximumf %88, %89 : vector<4x256xf32>
    %c0_95 = arith.constant 0 : index
    %c0_96 = arith.constant 0 : index
    %c0_97 = arith.constant 0 : index
    %91 = vector.load %arg11[%c0_95, %c0_96, %c0_97] : memref<4x1x4xf32, #tpu.memory_space<vmem>>, vector<1x1x4xf32>
    %92 = vector.shape_cast %91 : vector<1x1x4xf32> to vector<1x4xf32>
    %cst_98 = arith.constant dense<0.000000e+00> : vector<1x256xf32>
    %93 = tpu.matmul %92, %90, %cst_98 {dimension_numbers = #tpu.dot_dimension_numbers<[1], [0], [0], [1], [0, 0, 1, 1], [], []>} : vector<1x4xf32>, vector<4x256xf32>, vector<1x256xf32> -> vector<1x256xf32>
    %c0_99 = arith.constant 0 : index
    %c0_100 = arith.constant 0 : index
    %c0_101 = arith.constant 0 : index
    %94 = vector.load %arg12[%c0_99, %c0_100, %c0_101] : memref<4x256x256xf32, #tpu.memory_space<vmem>>, vector<1x256x256xf32>
    %95 = vector.shape_cast %94 : vector<1x256x256xf32> to vector<256x256xf32>
    %cst_102 = arith.constant dense<0.000000e+00> : vector<1x256xf32>
    %96 = tpu.matmul %93, %95, %cst_102 {dimension_numbers = #tpu.dot_dimension_numbers<[1], [0], [0], [1], [0, 0, 1, 1], [], []>} : vector<1x256xf32>, vector<256x256xf32>, vector<1x256xf32> -> vector<1x256xf32>
    %c1_103 = arith.constant 1 : index
    %c0_104 = arith.constant 0 : index
    %c0_105 = arith.constant 0 : index
    %97 = vector.load %arg11[%c1_103, %c0_104, %c0_105] : memref<4x1x4xf32, #tpu.memory_space<vmem>>, vector<1x1x4xf32>
    %98 = vector.shape_cast %97 : vector<1x1x4xf32> to vector<1x4xf32>
    %cst_106 = arith.constant dense<0.000000e+00> : vector<1x256xf32>
    %99 = tpu.matmul %98, %90, %cst_106 {dimension_numbers = #tpu.dot_dimension_numbers<[1], [0], [0], [1], [0, 0, 1, 1], [], []>} : vector<1x4xf32>, vector<4x256xf32>, vector<1x256xf32> -> vector<1x256xf32>
    %c1_107 = arith.constant 1 : index
    %c0_108 = arith.constant 0 : index
    %c0_109 = arith.constant 0 : index
    %100 = vector.load %arg12[%c1_107, %c0_108, %c0_109] : memref<4x256x256xf32, #tpu.memory_space<vmem>>, vector<1x256x256xf32>
    %101 = vector.shape_cast %100 : vector<1x256x256xf32> to vector<256x256xf32>
    %cst_110 = arith.constant dense<0.000000e+00> : vector<1x256xf32>
    %102 = tpu.matmul %99, %101, %cst_110 {dimension_numbers = #tpu.dot_dimension_numbers<[1], [0], [0], [1], [0, 0, 1, 1], [], []>} : vector<1x256xf32>, vector<256x256xf32>, vector<1x256xf32> -> vector<1x256xf32>
    %103 = arith.addf %96, %102 : vector<1x256xf32>
    %c2_111 = arith.constant 2 : index
    %c0_112 = arith.constant 0 : index
    %c0_113 = arith.constant 0 : index
    %104 = vector.load %arg11[%c2_111, %c0_112, %c0_113] : memref<4x1x4xf32, #tpu.memory_space<vmem>>, vector<1x1x4xf32>
    %105 = vector.shape_cast %104 : vector<1x1x4xf32> to vector<1x4xf32>
    %cst_114 = arith.constant dense<0.000000e+00> : vector<1x256xf32>
    %106 = tpu.matmul %105, %90, %cst_114 {dimension_numbers = #tpu.dot_dimension_numbers<[1], [0], [0], [1], [0, 0, 1, 1], [], []>} : vector<1x4xf32>, vector<4x256xf32>, vector<1x256xf32> -> vector<1x256xf32>
    %c2_115 = arith.constant 2 : index
    %c0_116 = arith.constant 0 : index
    %c0_117 = arith.constant 0 : index
    %107 = vector.load %arg12[%c2_115, %c0_116, %c0_117] : memref<4x256x256xf32, #tpu.memory_space<vmem>>, vector<1x256x256xf32>
    %108 = vector.shape_cast %107 : vector<1x256x256xf32> to vector<256x256xf32>
    %cst_118 = arith.constant dense<0.000000e+00> : vector<1x256xf32>
    %109 = tpu.matmul %106, %108, %cst_118 {dimension_numbers = #tpu.dot_dimension_numbers<[1], [0], [0], [1], [0, 0, 1, 1], [], []>} : vector<1x256xf32>, vector<256x256xf32>, vector<1x256xf32> -> vector<1x256xf32>
    %110 = arith.addf %103, %109 : vector<1x256xf32>
    %c3_119 = arith.constant 3 : index
    %c0_120 = arith.constant 0 : index
    %c0_121 = arith.constant 0 : index
    %111 = vector.load %arg11[%c3_119, %c0_120, %c0_121] : memref<4x1x4xf32, #tpu.memory_space<vmem>>, vector<1x1x4xf32>
    %112 = vector.shape_cast %111 : vector<1x1x4xf32> to vector<1x4xf32>
    %cst_122 = arith.constant dense<0.000000e+00> : vector<1x256xf32>
    %113 = tpu.matmul %112, %90, %cst_122 {dimension_numbers = #tpu.dot_dimension_numbers<[1], [0], [0], [1], [0, 0, 1, 1], [], []>} : vector<1x4xf32>, vector<4x256xf32>, vector<1x256xf32> -> vector<1x256xf32>
    %c3_123 = arith.constant 3 : index
    %c0_124 = arith.constant 0 : index
    %c0_125 = arith.constant 0 : index
    %114 = vector.load %arg12[%c3_123, %c0_124, %c0_125] : memref<4x256x256xf32, #tpu.memory_space<vmem>>, vector<1x256x256xf32>
    %115 = vector.shape_cast %114 : vector<1x256x256xf32> to vector<256x256xf32>
    %cst_126 = arith.constant dense<0.000000e+00> : vector<1x256xf32>
    %116 = tpu.matmul %113, %115, %cst_126 {dimension_numbers = #tpu.dot_dimension_numbers<[1], [0], [0], [1], [0, 0, 1, 1], [], []>} : vector<1x256xf32>, vector<256x256xf32>, vector<1x256xf32> -> vector<1x256xf32>
    %117 = arith.addf %110, %116 : vector<1x256xf32>
    %c0_127 = arith.constant 0 : index
    %c0_128 = arith.constant 0 : index
    %118 = vector.load %arg13[%c0_127, %c0_128] : memref<1x256xf32, #tpu.memory_space<vmem>>, vector<1x256xf32>
    %119 = arith.addf %117, %118 : vector<1x256xf32>
    %cst_129 = arith.constant 0.000000e+00 : f32
    %120 = vector.broadcast %cst_129 : f32 to vector<1x256xf32>
    %121 = arith.maximumf %119, %120 : vector<1x256xf32>
    %c0_130 = arith.constant 0 : index
    %c0_131 = arith.constant 0 : index
    %122 = vector.load %arg14[%c0_130, %c0_131] : memref<256x128xf32, #tpu.memory_space<vmem>>, vector<256x128xf32>
    %cst_132 = arith.constant dense<0.000000e+00> : vector<1x128xf32>
    %123 = tpu.matmul %121, %122, %cst_132 {dimension_numbers = #tpu.dot_dimension_numbers<[1], [0], [0], [1], [0, 0, 1, 1], [], []>} : vector<1x256xf32>, vector<256x128xf32>, vector<1x128xf32> -> vector<1x128xf32>
    %c0_133 = arith.constant 0 : index
    %c0_134 = arith.constant 0 : index
    %124 = vector.load %arg15[%c0_133, %c0_134] : memref<1x128xf32, #tpu.memory_space<vmem>>, vector<1x128xf32>
    %125 = arith.addf %123, %124 : vector<1x128xf32>
    %c0_135 = arith.constant 0 : index
    %c0_136 = arith.constant 0 : index
    %c0_137 = arith.constant 0 : index
    %126 = vector.load %arg16[%c0_135, %c0_136, %c0_137] : memref<1x1x128xf32, #tpu.memory_space<vmem>>, vector<1x1x128xf32>
    %127 = vector.shape_cast %126 : vector<1x1x128xf32> to vector<1x128xf32>
    %128 = vector.shape_cast %125 : vector<1x128xf32> to vector<1x1x128xf32>
    tpu.vector_store %arg16[%c0_135, %c0_136, %c0_137], %128 {strides = array<i32>} : memref<1x1x128xf32, #tpu.memory_space<vmem>>, vector<1x1x128xf32>,
    return
  }
  func.func @transform_0(%arg0: i32) -> (i32, i32, i32) {
    %c0_i32 = arith.constant 0 : i32
    %c0_i32_0 = arith.constant 0 : i32
    %c0_i32_1 = arith.constant 0 : i32
    return %arg0, %c0_i32, %c0_i32_0 : i32, i32, i32
  }
  func.func @transform_1(%arg0: i32) -> (i32, i32, i32) {
    %c0_i32 = arith.constant 0 : i32
    %c0_i32_0 = arith.constant 0 : i32
    %c0_i32_1 = arith.constant 0 : i32
    %c0_i32_2 = arith.constant 0 : i32
    return %c0_i32, %c0_i32_0, %c0_i32_1 : i32, i32, i32
  }
  func.func @transform_2(%arg0: i32) -> (i32, i32, i32) {
    %c0_i32 = arith.constant 0 : i32
    %c0_i32_0 = arith.constant 0 : i32
    %c0_i32_1 = arith.constant 0 : i32
    %c0_i32_2 = arith.constant 0 : i32
    return %c0_i32, %c0_i32_0, %c0_i32_1 : i32, i32, i32
  }
  func.func @transform_3(%arg0: i32) -> (i32, i32) {
    %c0_i32 = arith.constant 0 : i32
    %c0_i32_0 = arith.constant 0 : i32
    %c0_i32_1 = arith.constant 0 : i32
    return %c0_i32, %c0_i32_0 : i32, i32
  }
  func.func @transform_4(%arg0: i32) -> (i32, i32, i32) {
    %c0_i32 = arith.constant 0 : i32
    %c0_i32_0 = arith.constant 0 : i32
    %c0_i32_1 = arith.constant 0 : i32
    %c0_i32_2 = arith.constant 0 : i32
    return %c0_i32, %c0_i32_0, %c0_i32_1 : i32, i32, i32
  }
  func.func @transform_5(%arg0: i32) -> (i32, i32, i32) {
    %c0_i32 = arith.constant 0 : i32
    %c0_i32_0 = arith.constant 0 : i32
    %c0_i32_1 = arith.constant 0 : i32
    %c0_i32_2 = arith.constant 0 : i32
    return %c0_i32, %c0_i32_0, %c0_i32_1 : i32, i32, i32
  }
  func.func @transform_6(%arg0: i32) -> (i32, i32) {
    %c0_i32 = arith.constant 0 : i32
    %c0_i32_0 = arith.constant 0 : i32
    %c0_i32_1 = arith.constant 0 : i32
    return %c0_i32, %c0_i32_0 : i32, i32
  }
  func.func @transform_7(%arg0: i32) -> (i32, i32, i32) {
    %c0_i32 = arith.constant 0 : i32
    %c0_i32_0 = arith.constant 0 : i32
    %c0_i32_1 = arith.constant 0 : i32
    %c0_i32_2 = arith.constant 0 : i32
    return %c0_i32, %c0_i32_0, %c0_i32_1 : i32, i32, i32
  }
  func.func @transform_8(%arg0: i32) -> (i32, i32, i32) {
    %c0_i32 = arith.constant 0 : i32
    %c0_i32_0 = arith.constant 0 : i32
    %c0_i32_1 = arith.constant 0 : i32
    %c0_i32_2 = arith.constant 0 : i32
    return %c0_i32, %c0_i32_0, %c0_i32_1 : i32, i32, i32
  }
  func.func @transform_9(%arg0: i32) -> (i32, i32) {
    %c0_i32 = arith.constant 0 : i32
    %c0_i32_0 = arith.constant 0 : i32
    %c0_i32_1 = arith.constant 0 : i32
    return %c0_i32, %c0_i32_0 : i32, i32
  }
  func.func @transform_10(%arg0: i32) -> (i32, i32, i32) {
    %c0_i32 = arith.constant 0 : i32
    %c0_i32_0 = arith.constant 0 : i32
    %c0_i32_1 = arith.constant 0 : i32
    %c0_i32_2 = arith.constant 0 : i32
    return %c0_i32, %c0_i32_0, %c0_i32_1 : i32, i32, i32
  }
  func.func @transform_11(%arg0: i32) -> (i32, i32, i32) {
    %c0_i32 = arith.constant 0 : i32
    %c0_i32_0 = arith.constant 0 : i32
    %c0_i32_1 = arith.constant 0 : i32
    %c0_i32_2 = arith.constant 0 : i32
    return %c0_i32, %c0_i32_0, %c0_i32_1 : i32, i32, i32
  }
  func.func @transform_12(%arg0: i32) -> (i32, i32) {
    %c0_i32 = arith.constant 0 : i32
    %c0_i32_0 = arith.constant 0 : i32
    %c0_i32_1 = arith.constant 0 : i32
    return %c0_i32, %c0_i32_0 : i32, i32
  }
  func.func @transform_13(%arg0: i32) -> (i32, i32) {
    %c0_i32 = arith.constant 0 : i32
    %c0_i32_0 = arith.constant 0 : i32
    %c0_i32_1 = arith.constant 0 : i32
    return %c0_i32, %c0_i32_0 : i32, i32
  }
  func.func @transform_14(%arg0: i32) -> (i32, i32) {
    %c0_i32 = arith.constant 0 : i32
    %c0_i32_0 = arith.constant 0 : i32
    %c0_i32_1 = arith.constant 0 : i32
    return %c0_i32, %c0_i32_0 : i32, i32
  }
  func.func @transform_15(%arg0: i32) -> (i32, i32, i32) {
    %c0_i32 = arith.constant 0 : i32
    %c0_i32_0 = arith.constant 0 : i32
    %c0_i32_1 = arith.constant 0 : i32
    return %arg0, %c0_i32, %c0_i32_0 : i32, i32, i32
  }
}

</mosaic_0001>

<llo_original>
// kernel: simplified_vae_forward.1
$region0: #{simplified_vae_forward.1}
  #allocation0 [shape = 'u32[]', space=smem, size = 0x4, offset = 0x4, fixed_abs, tag = 'smem constant byte address 0x4 - core index']
  #allocation1 [shape = 'u32[144,128]{1,0:T(1,128)}', space=vmem, size = 0x12000, scoped, tag = 'internal scratch']
  %s0 = inlined_call_operand.vmem [shape: f32[2,32,96], index: 0, kind: input, shape index: {}]
  %s1 = inlined_call_operand.hbm [shape: f32[4,16,32], index: 1, kind: input, shape index: {}]
  %s2 = inlined_call_operand.hbm [shape: f32[4,96,512], index: 2, kind: input, shape index: {}]
  %s3 = inlined_call_operand.hbm [shape: f32[1,512], index: 3, kind: input, shape index: {}]
  %s4 = inlined_call_operand.hbm [shape: f32[4,8,16], index: 4, kind: input, shape index: {}]
  %s5 = inlined_call_operand.hbm [shape: f32[4,512,256], index: 5, kind: input, shape index: {}]
  %s6 = inlined_call_operand.hbm [shape: f32[1,256], index: 6, kind: input, shape index: {}]
  %s7 = inlined_call_operand.hbm [shape: f32[3,4,8], index: 7, kind: input, shape index: {}]
  %s8 = inlined_call_operand.hbm [shape: f32[3,256,256], index: 8, kind: input, shape index: {}]
  %s9 = inlined_call_operand.hbm [shape: f32[1,256], index: 9, kind: input, shape index: {}]
  %s10 = inlined_call_operand.hbm [shape: f32[4,1,4], index: 10, kind: input, shape index: {}]
  %s11 = inlined_call_operand.hbm [shape: f32[4,256,256], index: 11, kind: input, shape index: {}]
  %s12 = inlined_call_operand.hbm [shape: f32[1,256], index: 12, kind: input, shape index: {}]
  %s13 = inlined_call_operand.hbm [shape: f32[256,128], index: 13, kind: input, shape index: {}]
  %s14 = inlined_call_operand.hbm [shape: f32[1,128], index: 14, kind: input, shape index: {}]
  %s15 = inlined_call_operand.vmem [shape: f32[2,1,128], index: 15, kind: output, shape index: {}]
  %s16 = sld [smem:[#allocation0]]
  $region149: #{simplified_vae_forward.1} parent=0
    _
  %s18 = ssub.s32 1, %s16
  %s19 = scalar_select 0, %s18, %s16
  $region1: #{simplified_vae_forward.1} parent=0
    #allocation2 [shape = 'u8[32768]{0}', space=vmem, size = 0x8000, scoped, tag = 'input window, operand 1, single buffered']
    #allocation3 [shape = 's32[2]{0}', space=sflag, size = 0x8, scoped, tag = 'scoped memory for simplified_vae_forward.1']
    #allocation4 [shape = 'u8[786432]{0}', space=vmem, size = 0xc0000, scoped, tag = 'input window, operand 2, single buffered']
    #allocation5 [shape = 's32[1]{0}', space=sflag, size = 0x4, scoped, tag = 'scoped memory for simplified_vae_forward.1']
    #allocation6 [shape = 'u8[2048]{0}', space=vmem, size = 0x800, scoped, tag = 'input window, operand 3, single buffered']
    #allocation7 [shape = 'u8[16384]{0}', space=vmem, size = 0x4000, scoped, tag = 'input window, operand 4, single buffered']
    #allocation8 [shape = 's32[1]{0}', space=sflag, size = 0x4, scoped, tag = 'scoped memory for simplified_vae_forward.1']
    #allocation9 [shape = 'u8[2097152]{0}', space=vmem, size = 0x200000, scoped, tag = 'input window, operand 5, single buffered']
    #allocation10 [shape = 'u8[1024]{0}', space=vmem, size = 0x400, scoped, tag = 'input window, operand 6, single buffered']
    #allocation11 [shape = 's32[1]{0}', space=sflag, size = 0x4, scoped, tag = 'scoped memory for simplified_vae_forward.1']
    #allocation12 [shape = 'u8[6144]{0}', space=vmem, size = 0x1800, scoped, tag = 'input window, operand 7, single buffered']
    #allocation13 [shape = 'u8[786432]{0}', space=vmem, size = 0xc0000, scoped, tag = 'input window, operand 8, single buffered']
    #allocation14 [shape = 's32[1]{0}', space=sflag, size = 0x4, scoped, tag = 'scoped memory for simplified_vae_forward.1']
    #allocation15 [shape = 'u8[1024]{0}', space=vmem, size = 0x400, scoped, tag = 'input window, operand 9, single buffered']
    #allocation16 [shape = 'u8[2048]{0}', space=vmem, size = 0x800, scoped, tag = 'input window, operand 10, single buffered']
    #allocation17 [shape = 's32[1]{0}', space=sflag, size = 0x4, scoped, tag = 'scoped memory for simplified_vae_forward.1']
    #allocation18 [shape = 'u8[1048576]{0}', space=vmem, size = 0x100000, scoped, tag = 'input window, operand 11, single buffered']
    #allocation19 [shape = 'u8[1024]{0}', space=vmem, size = 0x400, scoped, tag = 'input window, operand 12, single buffered']
    #allocation20 [shape = 's32[1]{0}', space=sflag, size = 0x4, scoped, tag = 'scoped memory for simplified_vae_forward.1']
    #allocation21 [shape = 'u8[131072]{0}', space=vmem, size = 0x20000, scoped, tag = 'input window, operand 13, single buffered']
    #allocation22 [shape = 'u8[512]{0}', space=vmem, size = 0x400, scoped, tag = 'input window, operand 14, single buffered']
    #allocation23 [shape = 's32[1]{0}', space=sflag, size = 0x4, scoped, tag = 'scoped memory for simplified_vae_forward.1']
    %20 = vsyncpa [#allocation3], 0
    %21 = vsyncpa [#allocation5], 0
    %22 = vsyncpa [#allocation8], 0
    %23 = vsyncpa [#allocation11], 0
    %24 = vsyncpa [#allocation14], 0
    %25 = vsyncpa [#allocation17], 0
    %26 = vsyncpa [#allocation20], 0
    %27 = vsyncpa [#allocation23], 0
    loop: start=0, step=1, limit=4
    $region2: #{simplified_vae_forward.1} parent=1 // loop_pre_header
      _
    $region3: #{simplified_vae_forward.1} parent=1 // loop_header
      %s29 = sphi 0, %s33
      %p30 = scmp.ge.s32.totalorder %s29, 4
      %s39 = sphi 0, %s41
      %s42 = sphi 0, %s39
      %s43 = sphi 0, %s42
      %s59 = sphi 0, %s43
      %s63 = sphi 0, %s63
      %s65 = sphi 0, %s63
      %s66 = sphi 0, %s65
      %s80 = sphi 0, %s66
      %s84 = sphi 0, %s84
      %s86 = sphi 0, %s84
      %s87 = sphi 0, %s86
      %s101 = sphi 0, %s87
      %s105 = sphi 0, %s105
      %s107 = sphi 0, %s105
      %s108 = sphi 0, %s107
      %s122 = sphi 0, %s108
      %s126 = sphi 0, %s126
      %s128 = sphi 0, %s126
      %s129 = sphi 0, %s128
      %s143 = sphi 0, %s129
      %s147 = sphi 0, %s147
      %s149 = sphi 0, %s147
      %s150 = sphi 0, %s149
      %s164 = sphi 0, %s150
      %s168 = sphi 0, %s168
      %s170 = sphi 0, %s168
      %s171 = sphi 0, %s170
      %s185 = sphi 0, %s171
      %s189 = sphi 0, %s189
      %s191 = sphi 0, %s189
      %s192 = sphi 0, %s191
      %s206 = sphi 0, %s192
      %s210 = sphi 0, %s210
      %s212 = sphi 0, %s210
      %s213 = sphi 0, %s212
      %s227 = sphi 0, %s213
      %s231 = sphi 0, %s231
      %s233 = sphi 0, %s231
      %s234 = sphi 0, %s233
      %s248 = sphi 0, %s234
      %s252 = sphi 0, %s252
      %s254 = sphi 0, %s252
      %s255 = sphi 0, %s254
      %s269 = sphi 0, %s255
      %s273 = sphi 0, %s273
      %s275 = sphi 0, %s273
      %s276 = sphi 0, %s275
      %s290 = sphi 0, %s276
      %s294 = sphi 0, %s294
      %s296 = sphi 0, %s294
      %s297 = sphi 0, %s296
      %s311 = sphi 0, %s297
      %s315 = sphi 0, %s315
      %s317 = sphi 0, %s315
      %s318 = sphi 0, %s317
      %s332 = sphi 0, %s318
      %s336 = sphi 0, %s336
      %s338 = sphi 0, %s336
      %s339 = sphi 0, %s338
      %s353 = sphi 0, %s339
      %s359 = sphi 0, %s361
      %s362 = sphi 0, %s359
      %s363 = sphi 0, %s362
      %s379 = sphi 0, %s363
    $region4: #{simplified_vae_forward.1} parent=1 // loop_header_branch
      %32 = sbr.rel (%p30) target = $region8
    $region5: #{simplified_vae_forward.1} parent=1 // loop_body
      %s34 = ssub.s32 %s29, 1
      %s35 = ssub.s32 %s29, 2
      %s36 = sadd.s32 %s29, 1
      %s37 = ssub.s32 %s29, %s36
      %p38 = scmp.eq.s32.totalorder %s37, 0
      %s40 = sadd.s32 %s39, 1
      %s41 = scalar_select %p38, %s39, %s40
      %p44 = pneg %p38
      %p45 = scmp.eq.s32.totalorder %s29, 1
      %p46 = por %p44, %p45
      %p47 = scmp.ne.s32.totalorder %s39, %s42
      %p48 = scmp.eq.s32.totalorder %s29, 0
      %p49 = por %p47, %p48
      %p50 = scmp.ne.s32.totalorder %s39, %s42
      %p51 = scmp.eq.s32.totalorder %s34, 1
      %p52 = por %p50, %p51
      %p53 = scmp.ne.s32.totalorder %s42, %s43
      %p54 = scmp.eq.s32.totalorder %s34, 0
      %p55 = por %p53, %p54
      %p56 = scmp.ne.s32.totalorder %s42, %s43
      %p57 = scmp.eq.s32.totalorder %s35, 1
      %p58 = por %p56, %p57
      %p60 = scmp.ne.s32.totalorder %s43, %s59
      %p61 = scmp.eq.s32.totalorder %s35, 0
      %p62 = por %p60, %p61
      %s64 = sadd.s32 %s63, 1
      %p67 = scmp.eq.s32.totalorder %s29, 1
      %p68 = scmp.ne.s32.totalorder %s63, %s65
      %p69 = scmp.eq.s32.totalorder %s29, 0
      %p70 = por %p68, %p69
      %p71 = scmp.ne.s32.totalorder %s63, %s65
      %p72 = scmp.eq.s32.totalorder %s34, 1
      %p73 = por %p71, %p72
      %p74 = scmp.ne.s32.totalorder %s65, %s66
      %p75 = scmp.eq.s32.totalorder %s34, 0
      %p76 = por %p74, %p75
      %p77 = scmp.ne.s32.totalorder %s65, %s66
      %p78 = scmp.eq.s32.totalorder %s35, 1
      %p79 = por %p77, %p78
      %p81 = scmp.ne.s32.totalorder %s66, %s80
      %p82 = scmp.eq.s32.totalorder %s35, 0
      %p83 = por %p81, %p82
      %s85 = sadd.s32 %s84, 1
      %p88 = scmp.eq.s32.totalorder %s29, 1
      %p89 = scmp.ne.s32.totalorder %s84, %s86
      %p90 = scmp.eq.s32.totalorder %s29, 0
      %p91 = por %p89, %p90
      %p92 = scmp.ne.s32.totalorder %s84, %s86
      %p93 = scmp.eq.s32.totalorder %s34, 1
      %p94 = por %p92, %p93
      %p95 = scmp.ne.s32.totalorder %s86, %s87
      %p96 = scmp.eq.s32.totalorder %s34, 0
      %p97 = por %p95, %p96
      %p98 = scmp.ne.s32.totalorder %s86, %s87
      %p99 = scmp.eq.s32.totalorder %s35, 1
      %p100 = por %p98, %p99
      %p102 = scmp.ne.s32.totalorder %s87, %s101
      %p103 = scmp.eq.s32.totalorder %s35, 0
      %p104 = por %p102, %p103
      %s106 = sadd.s32 %s105, 1
      %p109 = scmp.eq.s32.totalorder %s29, 1
      %p110 = scmp.ne.s32.totalorder %s105, %s107
      %p111 = scmp.eq.s32.totalorder %s29, 0
      %p112 = por %p110, %p111
      %p113 = scmp.ne.s32.totalorder %s105, %s107
      %p114 = scmp.eq.s32.totalorder %s34, 1
      %p115 = por %p113, %p114
      %p116 = scmp.ne.s32.totalorder %s107, %s108
      %p117 = scmp.eq.s32.totalorder %s34, 0
      %p118 = por %p116, %p117
      %p119 = scmp.ne.s32.totalorder %s107, %s108
      %p120 = scmp.eq.s32.totalorder %s35, 1
      %p121 = por %p119, %p120
      %p123 = scmp.ne.s32.totalorder %s108, %s122
      %p124 = scmp.eq.s32.totalorder %s35, 0
      %p125 = por %p123, %p124
      %s127 = sadd.s32 %s126, 1
      %p130 = scmp.eq.s32.totalorder %s29, 1
      %p131 = scmp.ne.s32.totalorder %s126, %s128
      %p132 = scmp.eq.s32.totalorder %s29, 0
      %p133 = por %p131, %p132
      %p134 = scmp.ne.s32.totalorder %s126, %s128
      %p135 = scmp.eq.s32.totalorder %s34, 1
      %p136 = por %p134, %p135
      %p137 = scmp.ne.s32.totalorder %s128, %s129
      %p138 = scmp.eq.s32.totalorder %s34, 0
      %p139 = por %p137, %p138
      %p140 = scmp.ne.s32.totalorder %s128, %s129
      %p141 = scmp.eq.s32.totalorder %s35, 1
      %p142 = por %p140, %p141
      %p144 = scmp.ne.s32.totalorder %s129, %s143
      %p145 = scmp.eq.s32.totalorder %s35, 0
      %p146 = por %p144, %p145
      %s148 = sadd.s32 %s147, 1
      %p151 = scmp.eq.s32.totalorder %s29, 1
      %p152 = scmp.ne.s32.totalorder %s147, %s149
      %p153 = scmp.eq.s32.totalorder %s29, 0
      %p154 = por %p152, %p153
      %p155 = scmp.ne.s32.totalorder %s147, %s149
      %p156 = scmp.eq.s32.totalorder %s34, 1
      %p157 = por %p155, %p156
      %p158 = scmp.ne.s32.totalorder %s149, %s150
      %p159 = scmp.eq.s32.totalorder %s34, 0
      %p160 = por %p158, %p159
      %p161 = scmp.ne.s32.totalorder %s149, %s150
      %p162 = scmp.eq.s32.totalorder %s35, 1
      %p163 = por %p161, %p162
      %p165 = scmp.ne.s32.totalorder %s150, %s164
      %p166 = scmp.eq.s32.totalorder %s35, 0
      %p167 = por %p165, %p166
      %s169 = sadd.s32 %s168, 1
      %p172 = scmp.eq.s32.totalorder %s29, 1
      %p173 = scmp.ne.s32.totalorder %s168, %s170
      %p174 = scmp.eq.s32.totalorder %s29, 0
      %p175 = por %p173, %p174
      %p176 = scmp.ne.s32.totalorder %s168, %s170
      %p177 = scmp.eq.s32.totalorder %s34, 1
      %p178 = por %p176, %p177
      %p179 = scmp.ne.s32.totalorder %s170, %s171
      %p180 = scmp.eq.s32.totalorder %s34, 0
      %p181 = por %p179, %p180
      %p182 = scmp.ne.s32.totalorder %s170, %s171
      %p183 = scmp.eq.s32.totalorder %s35, 1
      %p184 = por %p182, %p183
      %p186 = scmp.ne.s32.totalorder %s171, %s185
      %p187 = scmp.eq.s32.totalorder %s35, 0
      %p188 = por %p186, %p187
      %s190 = sadd.s32 %s189, 1
      %p193 = scmp.eq.s32.totalorder %s29, 1
      %p194 = scmp.ne.s32.totalorder %s189, %s191
      %p195 = scmp.eq.s32.totalorder %s29, 0
      %p196 = por %p194, %p195
      %p197 = scmp.ne.s32.totalorder %s189, %s191
      %p198 = scmp.eq.s32.totalorder %s34, 1
      %p199 = por %p197, %p198
      %p200 = scmp.ne.s32.totalorder %s191, %s192
      %p201 = scmp.eq.s32.totalorder %s34, 0
      %p202 = por %p200, %p201
      %p203 = scmp.ne.s32.totalorder %s191, %s192
      %p204 = scmp.eq.s32.totalorder %s35, 1
      %p205 = por %p203, %p204
      %p207 = scmp.ne.s32.totalorder %s192, %s206
      %p208 = scmp.eq.s32.totalorder %s35, 0
      %p209 = por %p207, %p208
      %s211 = sadd.s32 %s210, 1
      %p214 = scmp.eq.s32.totalorder %s29, 1
      %p215 = scmp.ne.s32.totalorder %s210, %s212
      %p216 = scmp.eq.s32.totalorder %s29, 0
      %p217 = por %p215, %p216
      %p218 = scmp.ne.s32.totalorder %s210, %s212
      %p219 = scmp.eq.s32.totalorder %s34, 1
      %p220 = por %p218, %p219
      %p221 = scmp.ne.s32.totalorder %s212, %s213
      %p222 = scmp.eq.s32.totalorder %s34, 0
      %p223 = por %p221, %p222
      %p224 = scmp.ne.s32.totalorder %s212, %s213
      %p225 = scmp.eq.s32.totalorder %s35, 1
      %p226 = por %p224, %p225
      %p228 = scmp.ne.s32.totalorder %s213, %s227
      %p229 = scmp.eq.s32.totalorder %s35, 0
      %p230 = por %p228, %p229
      %s232 = sadd.s32 %s231, 1
      %p235 = scmp.eq.s32.totalorder %s29, 1
      %p236 = scmp.ne.s32.totalorder %s231, %s233
      %p237 = scmp.eq.s32.totalorder %s29, 0
      %p238 = por %p236, %p237
      %p239 = scmp.ne.s32.totalorder %s231, %s233
      %p240 = scmp.eq.s32.totalorder %s34, 1
      %p241 = por %p239, %p240
      %p242 = scmp.ne.s32.totalorder %s233, %s234
      %p243 = scmp.eq.s32.totalorder %s34, 0
      %p244 = por %p242, %p243
      %p245 = scmp.ne.s32.totalorder %s233, %s234
      %p246 = scmp.eq.s32.totalorder %s35, 1
      %p247 = por %p245, %p246
      %p249 = scmp.ne.s32.totalorder %s234, %s248
      %p250 = scmp.eq.s32.totalorder %s35, 0
      %p251 = por %p249, %p250
      %s253 = sadd.s32 %s252, 1
      %p256 = scmp.eq.s32.totalorder %s29, 1
      %p257 = scmp.ne.s32.totalorder %s252, %s254
      %p258 = scmp.eq.s32.totalorder %s29, 0
      %p259 = por %p257, %p258
      %p260 = scmp.ne.s32.totalorder %s252, %s254
      %p261 = scmp.eq.s32.totalorder %s34, 1
      %p262 = por %p260, %p261
      %p263 = scmp.ne.s32.totalorder %s254, %s255
      %p264 = scmp.eq.s32.totalorder %s34, 0
      %p265 = por %p263, %p264
      %p266 = scmp.ne.s32.totalorder %s254, %s255
      %p267 = scmp.eq.s32.totalorder %s35, 1
      %p268 = por %p266, %p267
      %p270 = scmp.ne.s32.totalorder %s255, %s269
      %p271 = scmp.eq.s32.totalorder %s35, 0
      %p272 = por %p270, %p271
      %s274 = sadd.s32 %s273, 1
      %p277 = scmp.eq.s32.totalorder %s29, 1
      %p278 = scmp.ne.s32.totalorder %s273, %s275
      %p279 = scmp.eq.s32.totalorder %s29, 0
      %p280 = por %p278, %p279
      %p281 = scmp.ne.s32.totalorder %s273, %s275
      %p282 = scmp.eq.s32.totalorder %s34, 1
      %p283 = por %p281, %p282
      %p284 = scmp.ne.s32.totalorder %s275, %s276
      %p285 = scmp.eq.s32.totalorder %s34, 0
      %p286 = por %p284, %p285
      %p287 = scmp.ne.s32.totalorder %s275, %s276
      %p288 = scmp.eq.s32.totalorder %s35, 1
      %p289 = por %p287, %p288
      %p291 = scmp.ne.s32.totalorder %s276, %s290
      %p292 = scmp.eq.s32.totalorder %s35, 0
      %p293 = por %p291, %p292
      %s295 = sadd.s32 %s294, 1
      %p298 = scmp.eq.s32.totalorder %s29, 1
      %p299 = scmp.ne.s32.totalorder %s294, %s296
      %p300 = scmp.eq.s32.totalorder %s29, 0
      %p301 = por %p299, %p300
      %p302 = scmp.ne.s32.totalorder %s294, %s296
      %p303 = scmp.eq.s32.totalorder %s34, 1
      %p304 = por %p302, %p303
      %p305 = scmp.ne.s32.totalorder %s296, %s297
      %p306 = scmp.eq.s32.totalorder %s34, 0
      %p307 = por %p305, %p306
      %p308 = scmp.ne.s32.totalorder %s296, %s297
      %p309 = scmp.eq.s32.totalorder %s35, 1
      %p310 = por %p308, %p309
      %p312 = scmp.ne.s32.totalorder %s297, %s311
      %p313 = scmp.eq.s32.totalorder %s35, 0
      %p314 = por %p312, %p313
      %s316 = sadd.s32 %s315, 1
      %p319 = scmp.eq.s32.totalorder %s29, 1
      %p320 = scmp.ne.s32.totalorder %s315, %s317
      %p321 = scmp.eq.s32.totalorder %s29, 0
      %p322 = por %p320, %p321
      %p323 = scmp.ne.s32.totalorder %s315, %s317
      %p324 = scmp.eq.s32.totalorder %s34, 1
      %p325 = por %p323, %p324
      %p326 = scmp.ne.s32.totalorder %s317, %s318
      %p327 = scmp.eq.s32.totalorder %s34, 0
      %p328 = por %p326, %p327
      %p329 = scmp.ne.s32.totalorder %s317, %s318
      %p330 = scmp.eq.s32.totalorder %s35, 1
      %p331 = por %p329, %p330
      %p333 = scmp.ne.s32.totalorder %s318, %s332
      %p334 = scmp.eq.s32.totalorder %s35, 0
      %p335 = por %p333, %p334
      %s337 = sadd.s32 %s336, 1
      %p340 = scmp.eq.s32.totalorder %s29, 1
      %p341 = scmp.ne.s32.totalorder %s336, %s338
      %p342 = scmp.eq.s32.totalorder %s29, 0
      %p343 = por %p341, %p342
      %p344 = scmp.ne.s32.totalorder %s336, %s338
      %p345 = scmp.eq.s32.totalorder %s34, 1
      %p346 = por %p344, %p345
      %p347 = scmp.ne.s32.totalorder %s338, %s339
      %p348 = scmp.eq.s32.totalorder %s34, 0
      %p349 = por %p347, %p348
      %p350 = scmp.ne.s32.totalorder %s338, %s339
      %p351 = scmp.eq.s32.totalorder %s35, 1
      %p352 = por %p350, %p351
      %p354 = scmp.ne.s32.totalorder %s339, %s353
      %p355 = scmp.eq.s32.totalorder %s35, 0
      %p356 = por %p354, %p355
      %s357 = ssub.s32 %s29, %s36
      %p358 = scmp.eq.s32.totalorder %s357, 0
      %s360 = sadd.s32 %s359, 1
      %s361 = scalar_select %p358, %s359, %s360
      %p364 = pneg %p358
      %p365 = scmp.eq.s32.totalorder %s29, 1
      %p366 = por %p364, %p365
      %p367 = scmp.ne.s32.totalorder %s359, %s362
      %p368 = scmp.eq.s32.totalorder %s29, 0
      %p369 = por %p367, %p368
      %p370 = scmp.ne.s32.totalorder %s359, %s362
      %p371 = scmp.eq.s32.totalorder %s34, 1
      %p372 = por %p370, %p371
      %p373 = scmp.ne.s32.totalorder %s362, %s363
      %p374 = scmp.eq.s32.totalorder %s34, 0
      %p375 = por %p373, %p374
      %p376 = scmp.ne.s32.totalorder %s362, %s363
      %p377 = scmp.eq.s32.totalorder %s35, 1
      %p378 = por %p376, %p377
      %p380 = scmp.ne.s32.totalorder %s363, %s379
      %p381 = scmp.eq.s32.totalorder %s35, 0
      %p382 = por %p380, %p381
      %p383 = scmp.le.s32.totalorder 1, %s29
      %p384 = scmp.lt.s32.totalorder %s29, 3
      %p385 = pnand %p383, %p384
      %p386 = pneg %p385
      // Predicated region
      $region9: #{simplified_vae_forward.1} parent=5 // pred_check
        _
      $region10: #{simplified_vae_forward.1} parent=5 // pred_check_branch
        %388 = sbr.rel (%p385) target = $region12
      $region11: #{simplified_vae_forward.1} parent=5 // pred_region
        %s389 = ssub.s32 %s29, 1
        // Predicated region
        $region13: #{simplified_vae_forward.1} parent=11 // pred_check
          %p390 = pneg %p76
        $region14: #{simplified_vae_forward.1} parent=11 // pred_check_branch
          %392 = sbr.rel (%p390) target = $region16
        $region15: #{simplified_vae_forward.1} parent=11 // pred_region
          %s394 = ssub.s32 1024, 1024
          %395 = vsyncadd [#allocation3], %s394
          %s396 = sshll.u32 [#allocation2], 4
          %s397 = int_to_ptr.vmem [resolvable:$true] %s396
          %402 = dma.hbm_to_vmem [thread:$0]  %s1, 1024, %s397, [#allocation3], 128, 128, 8
        $region16: #{simplified_vae_forward.1} parent=11 // pred_fallthru
          _
        // Predicated region
        $region17: #{simplified_vae_forward.1} parent=11 // pred_check
          %p403 = pneg %p97
        $region18: #{simplified_vae_forward.1} parent=11 // pred_check_branch
          %405 = sbr.rel (%p403) target = $region20
        $region19: #{simplified_vae_forward.1} parent=11 // pred_region
          %s407 = ssub.s32 24576, 24576
          %408 = vsyncadd [#allocation5], %s407
          %s409 = sshll.u32 [#allocation4], 4
          %s410 = int_to_ptr.vmem [resolvable:$true] %s409
          %415 = dma.hbm_to_vmem [thread:$0]  %s2, 24576, %s410, [#allocation5], 512, 512, 32
        $region20: #{simplified_vae_forward.1} parent=11 // pred_fallthru
          _
        // Predicated region
        $region21: #{simplified_vae_forward.1} parent=11 // pred_check
          %p416 = pneg %p118
        $region22: #{simplified_vae_forward.1} parent=11 // pred_check_branch
          %418 = sbr.rel (%p416) target = $region24
        $region23: #{simplified_vae_forward.1} parent=11 // pred_region
          %s420 = ssub.s32 64, 64
          %421 = vsyncadd [#allocation5], %s420
          %s423 = sshll.u32 [#allocation6], 4
          %s424 = int_to_ptr.vmem [resolvable:$true] %s423
          %426 = dma.hbm_to_vmem [thread:$0]  %s3, 64, %s424, [#allocation5]
        $region24: #{simplified_vae_forward.1} parent=11 // pred_fallthru
          _
        // Predicated region
        $region25: #{simplified_vae_forward.1} parent=11 // pred_check
          %p427 = pneg %p139
        $region26: #{simplified_vae_forward.1} parent=11 // pred_check_branch
          %429 = sbr.rel (%p427) target = $region28
        $region27: #{simplified_vae_forward.1} parent=11 // pred_region
          %s431 = ssub.s32 512, 512
          %432 = vsyncadd [#allocation8], %s431
          %s433 = sshll.u32 [#allocation7], 4
          %s434 = int_to_ptr.vmem [resolvable:$true] %s433
          %439 = dma.hbm_to_vmem [thread:$0]  %s4, 512, %s434, [#allocation8], 128, 128, 8
        $region28: #{simplified_vae_forward.1} parent=11 // pred_fallthru
          _
        // Predicated region
        $region29: #{simplified_vae_forward.1} parent=11 // pred_check
          %p440 = pneg %p160
        $region30: #{simplified_vae_forward.1} parent=11 // pred_check_branch
          %442 = sbr.rel (%p440) target = $region32
        $region31: #{simplified_vae_forward.1} parent=11 // pred_region
          %s444 = ssub.s32 65536, 65536
          %445 = vsyncadd [#allocation8], %s444
          %s446 = sshll.u32 [#allocation9], 4
          %s447 = int_to_ptr.vmem [resolvable:$true] %s446
          %452 = dma.hbm_to_vmem [thread:$0]  %s5, 65536, %s447, [#allocation8], 256, 256, 16
        $region32: #{simplified_vae_forward.1} parent=11 // pred_fallthru
          _
        // Predicated region
        $region33: #{simplified_vae_forward.1} parent=11 // pred_check
          %p453 = pneg %p181
        $region34: #{simplified_vae_forward.1} parent=11 // pred_check_branch
          %455 = sbr.rel (%p453) target = $region36
        $region35: #{simplified_vae_forward.1} parent=11 // pred_region
          %s457 = ssub.s32 32, 32
          %458 = vsyncadd [#allocation11], %s457
          %s460 = sshll.u32 [#allocation10], 4
          %s461 = int_to_ptr.vmem [resolvable:$true] %s460
          %463 = dma.hbm_to_vmem [thread:$0]  %s6, 32, %s461, [#allocation11]
        $region36: #{simplified_vae_forward.1} parent=11 // pred_fallthru
          _
        // Predicated region
        $region37: #{simplified_vae_forward.1} parent=11 // pred_check
          %p464 = pneg %p202
        $region38: #{simplified_vae_forward.1} parent=11 // pred_check_branch
          %466 = sbr.rel (%p464) target = $region40
        $region39: #{simplified_vae_forward.1} parent=11 // pred_region
          %s468 = ssub.s32 192, 192
          %469 = vsyncadd [#allocation11], %s468
          %s470 = sshll.u32 [#allocation12], 4
          %s471 = int_to_ptr.vmem [resolvable:$true] %s470
          %476 = dma.hbm_to_vmem [thread:$0]  %s7, 192, %s471, [#allocation11], 64, 64, 4
        $region40: #{simplified_vae_forward.1} parent=11 // pred_fallthru
          _
        // Predicated region
        $region41: #{simplified_vae_forward.1} parent=11 // pred_check
          %p477 = pneg %p223
        $region42: #{simplified_vae_forward.1} parent=11 // pred_check_branch
          %479 = sbr.rel (%p477) target = $region44
        $region43: #{simplified_vae_forward.1} parent=11 // pred_region
          %s481 = ssub.s32 24576, 24576
          %482 = vsyncadd [#allocation14], %s481
          %s483 = sshll.u32 [#allocation13], 4
          %s484 = int_to_ptr.vmem [resolvable:$true] %s483
          %489 = dma.hbm_to_vmem [thread:$0]  %s8, 24576, %s484, [#allocation14], 256, 256, 16
        $region44: #{simplified_vae_forward.1} parent=11 // pred_fallthru
          _
        // Predicated region
        $region45: #{simplified_vae_forward.1} parent=11 // pred_check
          %p490 = pneg %p244
        $region46: #{simplified_vae_forward.1} parent=11 // pred_check_branch
          %492 = sbr.rel (%p490) target = $region48
        $region47: #{simplified_vae_forward.1} parent=11 // pred_region
          %s494 = ssub.s32 32, 32
          %495 = vsyncadd [#allocation14], %s494
          %s497 = sshll.u32 [#allocation15], 4
          %s498 = int_to_ptr.vmem [resolvable:$true] %s497
          %500 = dma.hbm_to_vmem [thread:$0]  %s9, 32, %s498, [#allocation14]
        $region48: #{simplified_vae_forward.1} parent=11 // pred_fallthru
          _
        // Predicated region
        $region49: #{simplified_vae_forward.1} parent=11 // pred_check
          %p501 = pneg %p265
        $region50: #{simplified_vae_forward.1} parent=11 // pred_check_branch
          %503 = sbr.rel (%p501) target = $region52
        $region51: #{simplified_vae_forward.1} parent=11 // pred_region
          %s505 = ssub.s32 64, 64
          %506 = vsyncadd [#allocation17], %s505
          %s507 = sshll.u32 [#allocation16], 4
          %s508 = int_to_ptr.vmem [resolvable:$true] %s507
          %513 = dma.hbm_to_vmem [thread:$0]  %s10, 64, %s508, [#allocation17], 16, 16, 1
        $region52: #{simplified_vae_forward.1} parent=11 // pred_fallthru
          _
        // Predicated region
        $region53: #{simplified_vae_forward.1} parent=11 // pred_check
          %p514 = pneg %p286
        $region54: #{simplified_vae_forward.1} parent=11 // pred_check_branch
          %516 = sbr.rel (%p514) target = $region56
        $region55: #{simplified_vae_forward.1} parent=11 // pred_region
          %s518 = ssub.s32 32768, 32768
          %519 = vsyncadd [#allocation17], %s518
          %s520 = sshll.u32 [#allocation18], 4
          %s521 = int_to_ptr.vmem [resolvable:$true] %s520
          %526 = dma.hbm_to_vmem [thread:$0]  %s11, 32768, %s521, [#allocation17], 256, 256, 16
        $region56: #{simplified_vae_forward.1} parent=11 // pred_fallthru
          _
        // Predicated region
        $region57: #{simplified_vae_forward.1} parent=11 // pred_check
          %p527 = pneg %p307
        $region58: #{simplified_vae_forward.1} parent=11 // pred_check_branch
          %529 = sbr.rel (%p527) target = $region60
        $region59: #{simplified_vae_forward.1} parent=11 // pred_region
          %s531 = ssub.s32 32, 32
          %532 = vsyncadd [#allocation20], %s531
          %s534 = sshll.u32 [#allocation19], 4
          %s535 = int_to_ptr.vmem [resolvable:$true] %s534
          %537 = dma.hbm_to_vmem [thread:$0]  %s12, 32, %s535, [#allocation20]
        $region60: #{simplified_vae_forward.1} parent=11 // pred_fallthru
          _
        // Predicated region
        $region61: #{simplified_vae_forward.1} parent=11 // pred_check
          %p538 = pneg %p328
        $region62: #{simplified_vae_forward.1} parent=11 // pred_check_branch
          %540 = sbr.rel (%p538) target = $region64
        $region63: #{simplified_vae_forward.1} parent=11 // pred_region
          %s542 = ssub.s32 4096, 4096
          %543 = vsyncadd [#allocation20], %s542
          %s544 = sshll.u32 [#allocation21], 4
          %s545 = int_to_ptr.vmem [resolvable:$true] %s544
          %550 = dma.hbm_to_vmem [thread:$0]  %s13, 4096, %s545, [#allocation20], 128, 128, 8
        $region64: #{simplified_vae_forward.1} parent=11 // pred_fallthru
          _
        // Predicated region
        $region65: #{simplified_vae_forward.1} parent=11 // pred_check
          %p551 = pneg %p349
        $region66: #{simplified_vae_forward.1} parent=11 // pred_check_branch
          %553 = sbr.rel (%p551) target = $region68
        $region67: #{simplified_vae_forward.1} parent=11 // pred_region
          %s555 = ssub.s32 16, 16
          %556 = vsyncadd [#allocation23], %s555
          %s558 = sshll.u32 [#allocation22], 4
          %s559 = int_to_ptr.vmem [resolvable:$true] %s558
          %561 = dma.hbm_to_vmem [thread:$0]  %s14, 16, %s559, [#allocation23]
        $region68: #{simplified_vae_forward.1} parent=11 // pred_fallthru
          _
      $region12: #{simplified_vae_forward.1} parent=5 // pred_fallthru
        _
      %p562 = scmp.lt.s32.totalorder %s29, 2
      // Predicated region
      $region69: #{simplified_vae_forward.1} parent=5 // pred_check
        %p563 = pneg %p562
      $region70: #{simplified_vae_forward.1} parent=5 // pred_check_branch
        %565 = sbr.rel (%p563) target = $region72
      $region71: #{simplified_vae_forward.1} parent=5 // pred_region
        // Predicated region
        $region73: #{simplified_vae_forward.1} parent=71 // pred_check
          %p566 = pneg %p49
        $region74: #{simplified_vae_forward.1} parent=71 // pred_check_branch
          %568 = sbr.rel (%p566) target = $region76
        $region75: #{simplified_vae_forward.1} parent=71 // pred_region
          %p569 = scmp.lt.s32.totalorder %s29, 1
          %s570 = scalar_select %p569, %s29, 1
          %s571 = smul.addr %s570, 4
          %s572 = smul.addr %s571, 8
          %s573 = scalar_lea.vmem %s0, %s572
        $region76: #{simplified_vae_forward.1} parent=71 // pred_fallthru
          _
      $region72: #{simplified_vae_forward.1} parent=5 // pred_fallthru
        _
      %p574 = scmp.le.s32.totalorder 1, %s29
      %p575 = scmp.lt.s32.totalorder %s29, 3
      %p576 = pnand %p574, %p575
      %p577 = pneg %p576
      // Predicated region
      $region77: #{simplified_vae_forward.1} parent=5 // pred_check
        _
      $region78: #{simplified_vae_forward.1} parent=5 // pred_check_branch
        %579 = sbr.rel (%p576) target = $region80
      $region79: #{simplified_vae_forward.1} parent=5 // pred_region
        %s580 = ssub.s32 %s29, 1
        // Predicated region
        $region81: #{simplified_vae_forward.1} parent=79 // pred_check
          %p581 = pneg %p76
        $region82: #{simplified_vae_forward.1} parent=79 // pred_check_branch
          %583 = sbr.rel (%p581) target = $region84
        $region83: #{simplified_vae_forward.1} parent=79 // pred_region
          %584 = dma.done [#allocation3], 1024
        $region84: #{simplified_vae_forward.1} parent=79 // pred_fallthru
          _
        // Predicated region
        $region85: #{simplified_vae_forward.1} parent=79 // pred_check
          %p585 = pneg %p97
        $region86: #{simplified_vae_forward.1} parent=79 // pred_check_branch
          %587 = sbr.rel (%p585) target = $region88
        $region87: #{simplified_vae_forward.1} parent=79 // pred_region
          %588 = dma.done [#allocation5], 24576
        $region88: #{simplified_vae_forward.1} parent=79 // pred_fallthru
          _
        // Predicated region
        $region89: #{simplified_vae_forward.1} parent=79 // pred_check
          %p589 = pneg %p118
        $region90: #{simplified_vae_forward.1} parent=79 // pred_check_branch
          %591 = sbr.rel (%p589) target = $region92
        $region91: #{simplified_vae_forward.1} parent=79 // pred_region
          %592 = dma.done [#allocation5], 64
        $region92: #{simplified_vae_forward.1} parent=79 // pred_fallthru
          _
        // Predicated region
        $region93: #{simplified_vae_forward.1} parent=79 // pred_check
          %p593 = pneg %p139
        $region94: #{simplified_vae_forward.1} parent=79 // pred_check_branch
          %595 = sbr.rel (%p593) target = $region96
        $region95: #{simplified_vae_forward.1} parent=79 // pred_region
          %596 = dma.done [#allocation8], 512
        $region96: #{simplified_vae_forward.1} parent=79 // pred_fallthru
          _
        // Predicated region
        $region97: #{simplified_vae_forward.1} parent=79 // pred_check
          %p597 = pneg %p160
        $region98: #{simplified_vae_forward.1} parent=79 // pred_check_branch
          %599 = sbr.rel (%p597) target = $region100
        $region99: #{simplified_vae_forward.1} parent=79 // pred_region
          %600 = dma.done [#allocation8], 65536
        $region100: #{simplified_vae_forward.1} parent=79 // pred_fallthru
          _
        // Predicated region
        $region101: #{simplified_vae_forward.1} parent=79 // pred_check
          %p601 = pneg %p181
        $region102: #{simplified_vae_forward.1} parent=79 // pred_check_branch
          %603 = sbr.rel (%p601) target = $region104
        $region103: #{simplified_vae_forward.1} parent=79 // pred_region
          %604 = dma.done [#allocation11], 32
        $region104: #{simplified_vae_forward.1} parent=79 // pred_fallthru
          _
        // Predicated region
        $region105: #{simplified_vae_forward.1} parent=79 // pred_check
          %p605 = pneg %p202
        $region106: #{simplified_vae_forward.1} parent=79 // pred_check_branch
          %607 = sbr.rel (%p605) target = $region108
        $region107: #{simplified_vae_forward.1} parent=79 // pred_region
          %608 = dma.done [#allocation11], 192
        $region108: #{simplified_vae_forward.1} parent=79 // pred_fallthru
          _
        // Predicated region
        $region109: #{simplified_vae_forward.1} parent=79 // pred_check
          %p609 = pneg %p223
        $region110: #{simplified_vae_forward.1} parent=79 // pred_check_branch
          %611 = sbr.rel (%p609) target = $region112
        $region111: #{simplified_vae_forward.1} parent=79 // pred_region
          %612 = dma.done [#allocation14], 24576
        $region112: #{simplified_vae_forward.1} parent=79 // pred_fallthru
          _
        // Predicated region
        $region113: #{simplified_vae_forward.1} parent=79 // pred_check
          %p613 = pneg %p244
        $region114: #{simplified_vae_forward.1} parent=79 // pred_check_branch
          %615 = sbr.rel (%p613) target = $region116
        $region115: #{simplified_vae_forward.1} parent=79 // pred_region
          %616 = dma.done [#allocation14], 32
        $region116: #{simplified_vae_forward.1} parent=79 // pred_fallthru
          _
        // Predicated region
        $region117: #{simplified_vae_forward.1} parent=79 // pred_check
          %p617 = pneg %p265
        $region118: #{simplified_vae_forward.1} parent=79 // pred_check_branch
          %619 = sbr.rel (%p617) target = $region120
        $region119: #{simplified_vae_forward.1} parent=79 // pred_region
          %620 = dma.done [#allocation17], 64
        $region120: #{simplified_vae_forward.1} parent=79 // pred_fallthru
          _
        // Predicated region
        $region121: #{simplified_vae_forward.1} parent=79 // pred_check
          %p621 = pneg %p286
        $region122: #{simplified_vae_forward.1} parent=79 // pred_check_branch
          %623 = sbr.rel (%p621) target = $region124
        $region123: #{simplified_vae_forward.1} parent=79 // pred_region
          %624 = dma.done [#allocation17], 32768
        $region124: #{simplified_vae_forward.1} parent=79 // pred_fallthru
          _
        // Predicated region
        $region125: #{simplified_vae_forward.1} parent=79 // pred_check
          %p625 = pneg %p307
        $region126: #{simplified_vae_forward.1} parent=79 // pred_check_branch
          %627 = sbr.rel (%p625) target = $region128
        $region127: #{simplified_vae_forward.1} parent=79 // pred_region
          %628 = dma.done [#allocation20], 32
        $region128: #{simplified_vae_forward.1} parent=79 // pred_fallthru
          _
        // Predicated region
        $region129: #{simplified_vae_forward.1} parent=79 // pred_check
          %p629 = pneg %p328
        $region130: #{simplified_vae_forward.1} parent=79 // pred_check_branch
          %631 = sbr.rel (%p629) target = $region132
        $region131: #{simplified_vae_forward.1} parent=79 // pred_region
          %632 = dma.done [#allocation20], 4096
        $region132: #{simplified_vae_forward.1} parent=79 // pred_fallthru
          _
        // Predicated region
        $region133: #{simplified_vae_forward.1} parent=79 // pred_check
          %p633 = pneg %p349
        $region134: #{simplified_vae_forward.1} parent=79 // pred_check_branch
          %635 = sbr.rel (%p633) target = $region136
        $region135: #{simplified_vae_forward.1} parent=79 // pred_region
          %636 = dma.done [#allocation23], 16
        $region136: #{simplified_vae_forward.1} parent=79 // pred_fallthru
          _
        %p637 = scmp.lt.s32.totalorder %s34, 1
        %s638 = scalar_select %p637, %s34, 1
        %s639 = smul.addr %s638, 4
        %s640 = smul.addr %s639, 8
        %s641 = scalar_lea.vmem %s0, %s640
        %p642 = pneg %p55
        %p643 = pneg %p52
        %p644 = pneg %p76
        %p645 = pneg %p73
        %p646 = pneg %p97
        %p647 = pneg %p94
        %p648 = pneg %p118
        %p649 = pneg %p115
        %p650 = pneg %p139
        %p651 = pneg %p136
        %p652 = pneg %p160
        %p653 = pneg %p157
        %p654 = pneg %p181
        %p655 = pneg %p178
        %p656 = pneg %p202
        %p657 = pneg %p199
        %p658 = pneg %p223
        %p659 = pneg %p220
        %p660 = pneg %p244
        %p661 = pneg %p241
        %p662 = pneg %p265
        %p663 = pneg %p262
        %p664 = pneg %p286
        %p665 = pneg %p283
        %p666 = pneg %p307
        %p667 = pneg %p304
        %p668 = pneg %p328
        %p669 = pneg %p325
        %p670 = pneg %p349
        %p671 = pneg %p346
        %p672 = pneg %p375
        %p673 = pneg %p372
        %p674 = scmp.lt.s32.totalorder %s34, 1
        %s675 = scalar_select %p674, %s34, 1
        %s676 = scalar_lea.vmem %s15, %s675
        %p677 = scmp.lt.s32.totalorder %s34, 1
        %s678 = scalar_select %p677, %s34, 1
        %s679 = smul.addr %s678, 4
        %s680 = smul.addr %s679, 8
        %s681 = scalar_lea.vmem %s0, %s680
        %p682 = scmp.lt.s32.totalorder %s34, 1
        %s683 = scalar_select %p682, %s34, 1
        %s684 = scalar_lea.vmem %s15, %s683
        %v685 = vld [vmem:[%s681] sm:$0xff]
        %v686 = vld [vmem:[%s681 + $0x8] sm:$0xff]
        %v687 = vld [vmem:[%s681 + $0x10] sm:$0xff]
        %v688 = vld [vmem:[%s681 + $0x18] sm:$0xff]
        %v689 = vld [vmem:[#allocation2] sm:$0xff]
        %v690 = vld [vmem:[#allocation2 + $0x8] sm:$0xff]
        %vm691 = vcmask 261120
        %v693 = vsel %vm691, %v689, 0
        %v696 = vsel %vm691, %v690, 0
        %698 = vmatprep.subr.mxu0 0.0
        %699 = vmatpush1.msra.mxu0 0.0
        %700 = vmatprep.subr.mxu0 0.0
        %701 = vmatpush1.msra.mxu0 0.0
        %702 = vmatprep.subr.mxu0 0.0
        %703 = vmatpush1.msra.mxu0 0.0
        %704 = vmatprep.subr.mxu0 0.0
        %705 = vmatpush1.msra.mxu0 0.0
        %706 = vmatprep.subr.mxu0 0.0
        %707 = vmatpush1.msra.mxu0 0.0
        %708 = vmatprep.subr.mxu0 0.0
        %709 = vmatpush1.msra.mxu0 0.0
        %710 = vmatprep.subr.mxu0 0.0
        %711 = vmatpush1.msra.mxu0 0.0
        %712 = vmatprep.subr.mxu0 0.0
        %713 = vmatpush1.msra.mxu0 0.0
        %714 = vmatprep.subr.mxu0 0.0
        %715 = vmatpush1.msra.mxu0 0.0
        %716 = vmatprep.subr.mxu0 0.0
        %717 = vmatpush1.msra.mxu0 0.0
        %718 = vmatprep.subr.mxu0 0.0
        %719 = vmatpush1.msra.mxu0 0.0
        %720 = vmatprep.subr.mxu0 0.0
        %721 = vmatpush1.msra.mxu0 0.0
        %722 = vmatprep.subr.mxu0 0.0
        %723 = vmatpush1.msra.mxu0 %v688
        %724 = vmatprep.subr.mxu0 0.0
        %725 = vmatpush1.msra.mxu0 %v687
        %726 = vmatprep.subr.mxu0 0.0
        %727 = vmatpush1.msra.mxu0 %v686
        %728 = vmatprep.subr.mxu0 0.0
        %729 = vmatpush1.msra.mxu0 %v685
        %730 = vmatprep.subr.mxu0 0.0
        %731 = vmatpush2.msra.mxu0 0.0
        %732 = vmatprep.subr.mxu0 0.0
        %733 = vmatpush2.msra.mxu0 0.0
        %734 = vmatprep.subr.mxu0 0.0
        %735 = vmatpush2.msra.mxu0 0.0
        %736 = vmatprep.subr.mxu0 0.0
        %737 = vmatpush2.msra.mxu0 0.0
        %738 = vmatprep.subr.mxu0 0.0
        %739 = vmatpush2.msra.mxu0 0.0
        %740 = vmatprep.subr.mxu0 0.0
        %741 = vmatpush2.msra.mxu0 0.0
        %742 = vmatprep.subr.mxu0 0.0
        %743 = vmatpush2.msra.mxu0 0.0
        %744 = vmatprep.subr.mxu0 0.0
        %745 = vmatpush2.msra.mxu0 0.0
        %746 = vmatprep.subr.mxu0 0.0
        %747 = vmatpush2.msra.mxu0 0.0
        %748 = vmatprep.subr.mxu0 0.0
        %749 = vmatpush2.msra.mxu0 0.0
        %750 = vmatprep.subr.mxu0 0.0
        %751 = vmatpush2.msra.mxu0 0.0
        %752 = vmatprep.subr.mxu0 0.0
        %753 = vmatpush2.msra.mxu0 0.0
        %754 = vmatprep.subr.mxu0 0.0
        %755 = vmatpush2.msra.mxu0 0.0
        %756 = vmatprep.subr.mxu0 0.0
        %757 = vmatpush2.msra.mxu0 0.0
        %758 = vmatprep.subr.mxu0 0.0
        %759 = vmatpush2.msra.mxu0 0.0
        %760 = vmatprep.subr.mxu0 0.0
        %761 = vmatpush2.msra.mxu0 0.0
        %762 = vmatprep.mubr.f32.mxu0 0.0
        %763 = vmatmul.mubr.f32.gmra.mxu0 %v693
        %v764 = vpop.f32.mrf.mxu0
        %v765 = vadd.f32 0.0, %v764
        %v766 = vpop.f32.mrf.mxu0
        %767 = vmatprep.mubr.f32.mxu0 0.0
        %768 = vmatmul.mubr.f32.gmra.mxu0 %v696
        %v769 = vpop.f32.mrf.mxu0
        %v770 = vadd.f32 0.0, %v769
        %v771 = vpop.f32.mrf.mxu0
        %772 = vdwg.mxu0
        %v773 = vld [vmem:[#allocation4] sm:$0xff]
        %v774 = vld [vmem:[#allocation4 + $0x8] sm:$0xff]
        %v775 = vld [vmem:[#allocation4 + $0x10] sm:$0xff]
        %v776 = vld [vmem:[#allocation4 + $0x18] sm:$0xff]
        %v777 = vld [vmem:[#allocation4 + $0x20] sm:$0xff]
        %v778 = vld [vmem:[#allocation4 + $0x28] sm:$0xff]
        %v779 = vld [vmem:[#allocation4 + $0x30] sm:$0xff]
        %v780 = vld [vmem:[#allocation4 + $0x38] sm:$0xff]
        %v781 = vld [vmem:[#allocation4 + $0x40] sm:$0xff]
        %v782 = vld [vmem:[#allocation4 + $0x48] sm:$0xff]
        %v783 = vld [vmem:[#allocation4 + $0x50] sm:$0xff]
        %v784 = vld [vmem:[#allocation4 + $0x58] sm:$0xff]
        %v785 = vld [vmem:[#allocation4 + $0x60] sm:$0xff]
        %v786 = vld [vmem:[#allocation4 + $0x68] sm:$0xff]
        %v787 = vld [vmem:[#allocation4 + $0x70] sm:$0xff]
        %v788 = vld [vmem:[#allocation4 + $0x78] sm:$0xff]
        %v789 = vld [vmem:[#allocation4 + $0x80] sm:$0xff]
        %v790 = vld [vmem:[#allocation4 + $0x88] sm:$0xff]
        %v791 = vld [vmem:[#allocation4 + $0x90] sm:$0xff]
        %v792 = vld [vmem:[#allocation4 + $0x98] sm:$0xff]
        %v793 = vld [vmem:[#allocation4 + $0xa0] sm:$0xff]
        %v794 = vld [vmem:[#allocation4 + $0xa8] sm:$0xff]
        %v795 = vld [vmem:[#allocation4 + $0xb0] sm:$0xff]
        %v796 = vld [vmem:[#allocation4 + $0xb8] sm:$0xff]
        %v797 = vld [vmem:[#allocation4 + $0xc0] sm:$0xff]
        %v798 = vld [vmem:[#allocation4 + $0xc8] sm:$0xff]
        %v799 = vld [vmem:[#allocation4 + $0xd0] sm:$0xff]
        %v800 = vld [vmem:[#allocation4 + $0xd8] sm:$0xff]
        %v801 = vld [vmem:[#allocation4 + $0xe0] sm:$0xff]
        %v802 = vld [vmem:[#allocation4 + $0xe8] sm:$0xff]
        %v803 = vld [vmem:[#allocation4 + $0xf0] sm:$0xff]
        %v804 = vld [vmem:[#allocation4 + $0xf8] sm:$0xff]
        %v805 = vld [vmem:[#allocation4 + $0x100] sm:$0xff]
        %v806 = vld [vmem:[#allocation4 + $0x108] sm:$0xff]
        %v807 = vld [vmem:[#allocation4 + $0x110] sm:$0xff]
        %v808 = vld [vmem:[#allocation4 + $0x118] sm:$0xff]
        %v809 = vld [vmem:[#allocation4 + $0x120] sm:$0xff]
        %v810 = vld [vmem:[#allocation4 + $0x128] sm:$0xff]
        %v811 = vld [vmem:[#allocation4 + $0x130] sm:$0xff]
        %v812 = vld [vmem:[#allocation4 + $0x138] sm:$0xff]
        %v813 = vld [vmem:[#allocation4 + $0x140] sm:$0xff]
        %v814 = vld [vmem:[#allocation4 + $0x148] sm:$0xff]
        %v815 = vld [vmem:[#allocation4 + $0x150] sm:$0xff]
        %v816 = vld [vmem:[#allocation4 + $0x158] sm:$0xff]
        %v817 = vld [vmem:[#allocation4 + $0x160] sm:$0xff]
        %v818 = vld [vmem:[#allocation4 + $0x168] sm:$0xff]
        %v819 = vld [vmem:[#allocation4 + $0x170] sm:$0xff]
        %v820 = vld [vmem:[#allocation4 + $0x178] sm:$0xff]
        %s821 = scalar_lea.vmem [#allocation2], 16
        %v822 = vld [vmem:[%s821] sm:$0xff]
        %v823 = vld [vmem:[%s821 + $0x8] sm:$0xff]
        %v825 = vsel %vm691, %v822, 0
        %v828 = vsel %vm691, %v823, 0
        %830 = vmatprep.subr.mxu0 0.0
        %831 = vmatpush1.msra.mxu0 0.0
        %832 = vmatprep.subr.mxu0 0.0
        %833 = vmatpush1.msra.mxu0 0.0
        %834 = vmatprep.subr.mxu0 0.0
        %835 = vmatpush1.msra.mxu0 0.0
        %836 = vmatprep.subr.mxu0 0.0
        %837 = vmatpush1.msra.mxu0 0.0
        %838 = vmatprep.subr.mxu0 0.0
        %839 = vmatpush1.msra.mxu0 0.0
        %840 = vmatprep.subr.mxu0 0.0
        %841 = vmatpush1.msra.mxu0 0.0
        %842 = vmatprep.subr.mxu0 0.0
        %843 = vmatpush1.msra.mxu0 0.0
        %844 = vmatprep.subr.mxu0 0.0
        %845 = vmatpush1.msra.mxu0 0.0
        %846 = vmatprep.subr.mxu0 0.0
        %847 = vmatpush1.msra.mxu0 0.0
        %848 = vmatprep.subr.mxu0 0.0
        %849 = vmatpush1.msra.mxu0 0.0
        %850 = vmatprep.subr.mxu0 0.0
        %851 = vmatpush1.msra.mxu0 0.0
        %852 = vmatprep.subr.mxu0 0.0
        %853 = vmatpush1.msra.mxu0 0.0
        %854 = vmatprep.subr.mxu0 0.0
        %855 = vmatpush1.msra.mxu0 %v688
        %856 = vmatprep.subr.mxu0 0.0
        %857 = vmatpush1.msra.mxu0 %v687
        %858 = vmatprep.subr.mxu0 0.0
        %859 = vmatpush1.msra.mxu0 %v686
        %860 = vmatprep.subr.mxu0 0.0
        %861 = vmatpush1.msra.mxu0 %v685
        %862 = vmatprep.subr.mxu0 0.0
        %863 = vmatpush2.msra.mxu0 0.0
        %864 = vmatprep.subr.mxu0 0.0
        %865 = vmatpush2.msra.mxu0 0.0
        %866 = vmatprep.subr.mxu0 0.0
        %867 = vmatpush2.msra.mxu0 0.0
        %868 = vmatprep.subr.mxu0 0.0
        %869 = vmatpush2.msra.mxu0 0.0
        %870 = vmatprep.subr.mxu0 0.0
        %871 = vmatpush2.msra.mxu0 0.0
        %872 = vmatprep.subr.mxu0 0.0
        %873 = vmatpush2.msra.mxu0 0.0
        %874 = vmatprep.subr.mxu0 0.0
        %875 = vmatpush2.msra.mxu0 0.0
        %876 = vmatprep.subr.mxu0 0.0
        %877 = vmatpush2.msra.mxu0 0.0
        %878 = vmatprep.subr.mxu0 0.0
        %879 = vmatpush2.msra.mxu0 0.0
        %880 = vmatprep.subr.mxu0 0.0
        %881 = vmatpush2.msra.mxu0 0.0
        %882 = vmatprep.subr.mxu0 0.0
        %883 = vmatpush2.msra.mxu0 0.0
        %884 = vmatprep.subr.mxu0 0.0
        %885 = vmatpush2.msra.mxu0 0.0
        %886 = vmatprep.subr.mxu0 0.0
        %887 = vmatpush2.msra.mxu0 0.0
        %888 = vmatprep.subr.mxu0 0.0
        %889 = vmatpush2.msra.mxu0 0.0
        %890 = vmatprep.subr.mxu0 0.0
        %891 = vmatpush2.msra.mxu0 0.0
        %892 = vmatprep.subr.mxu0 0.0
        %893 = vmatpush2.msra.mxu0 0.0
        %894 = vmatprep.mubr.f32.mxu0 0.0
        %895 = vmatmul.mubr.f32.gmra.mxu0 %v825
        %v896 = vpop.f32.mrf.mxu0
        %v897 = vadd.f32 0.0, %v896
        %v898 = vpop.f32.mrf.mxu0
        %899 = vmatprep.mubr.f32.mxu0 0.0
        %900 = vmatmul.mubr.f32.gmra.mxu0 %v828
        %v901 = vpop.f32.mrf.mxu0
        %v902 = vadd.f32 0.0, %v901
        %v903 = vpop.f32.mrf.mxu0
        %904 = vdwg.mxu0
        %s905 = scalar_lea.vmem [#allocation4], 384
        %v906 = vld [vmem:[%s905] sm:$0xff]
        %v907 = vld [vmem:[%s905 + $0x8] sm:$0xff]
        %v908 = vld [vmem:[%s905 + $0x10] sm:$0xff]
        %v909 = vld [vmem:[%s905 + $0x18] sm:$0xff]
        %v910 = vld [vmem:[%s905 + $0x20] sm:$0xff]
        %v911 = vld [vmem:[%s905 + $0x28] sm:$0xff]
        %v912 = vld [vmem:[%s905 + $0x30] sm:$0xff]
        %v913 = vld [vmem:[%s905 + $0x38] sm:$0xff]
        %v914 = vld [vmem:[%s905 + $0x40] sm:$0xff]
        %v915 = vld [vmem:[%s905 + $0x48] sm:$0xff]
        %v916 = vld [vmem:[%s905 + $0x50] sm:$0xff]
        %v917 = vld [vmem:[%s905 + $0x58] sm:$0xff]
        %v918 = vld [vmem:[%s905 + $0x60] sm:$0xff]
        %v919 = vld [vmem:[%s905 + $0x68] sm:$0xff]
        %v920 = vld [vmem:[%s905 + $0x70] sm:$0xff]
        %v921 = vld [vmem:[%s905 + $0x78] sm:$0xff]
        %v922 = vld [vmem:[%s905 + $0x80] sm:$0xff]
        %v923 = vld [vmem:[%s905 + $0x88] sm:$0xff]
        %v924 = vld [vmem:[%s905 + $0x90] sm:$0xff]
        %v925 = vld [vmem:[%s905 + $0x98] sm:$0xff]
        %v926 = vld [vmem:[%s905 + $0xa0] sm:$0xff]
        %v927 = vld [vmem:[%s905 + $0xa8] sm:$0xff]
        %v928 = vld [vmem:[%s905 + $0xb0] sm:$0xff]
        %v929 = vld [vmem:[%s905 + $0xb8] sm:$0xff]
        %v930 = vld [vmem:[%s905 + $0xc0] sm:$0xff]
        %v931 = vld [vmem:[%s905 + $0xc8] sm:$0xff]
        %v932 = vld [vmem:[%s905 + $0xd0] sm:$0xff]
        %v933 = vld [vmem:[%s905 + $0xd8] sm:$0xff]
        %v934 = vld [vmem:[%s905 + $0xe0] sm:$0xff]
        %v935 = vld [vmem:[%s905 + $0xe8] sm:$0xff]
        %v936 = vld [vmem:[%s905 + $0xf0] sm:$0xff]
        %v937 = vld [vmem:[%s905 + $0xf8] sm:$0xff]
        %v938 = vld [vmem:[%s905 + $0x100] sm:$0xff]
        %v939 = vld [vmem:[%s905 + $0x108] sm:$0xff]
        %v940 = vld [vmem:[%s905 + $0x110] sm:$0xff]
        %v941 = vld [vmem:[%s905 + $0x118] sm:$0xff]
        %v942 = vld [vmem:[%s905 + $0x120] sm:$0xff]
        %v943 = vld [vmem:[%s905 + $0x128] sm:$0xff]
        %v944 = vld [vmem:[%s905 + $0x130] sm:$0xff]
        %v945 = vld [vmem:[%s905 + $0x138] sm:$0xff]
        %v946 = vld [vmem:[%s905 + $0x140] sm:$0xff]
        %v947 = vld [vmem:[%s905 + $0x148] sm:$0xff]
        %v948 = vld [vmem:[%s905 + $0x150] sm:$0xff]
        %v949 = vld [vmem:[%s905 + $0x158] sm:$0xff]
        %v950 = vld [vmem:[%s905 + $0x160] sm:$0xff]
        %v951 = vld [vmem:[%s905 + $0x168] sm:$0xff]
        %v952 = vld [vmem:[%s905 + $0x170] sm:$0xff]
        %v953 = vld [vmem:[%s905 + $0x178] sm:$0xff]
        %vm954 = vcmask 785408
        %v956 = vsel %vm954, %v897, 0
        %v959 = vsel %vm954, %v902, 0
        %961 = vmatprep.subr.mxu0 0.0
        %962 = vmatpush1.msra.mxu0 0.0
        %963 = vmatprep.subr.mxu0 0.0
        %964 = vmatpush1.msra.mxu0 0.0
        %965 = vmatprep.subr.mxu0 0.0
        %966 = vmatpush1.msra.mxu0 0.0
        %967 = vmatprep.subr.mxu0 0.0
        %968 = vmatpush1.msra.mxu0 0.0
        %969 = vmatprep.subr.mxu0 %v951
        %970 = vmatpush1.msra.mxu0 %v950
        %971 = vmatprep.subr.mxu0 %v947
        %972 = vmatpush1.msra.mxu0 %v946
        %973 = vmatprep.subr.mxu0 %v943
        %974 = vmatpush1.msra.mxu0 %v942
        %975 = vmatprep.subr.mxu0 %v939
        %976 = vmatpush1.msra.mxu0 %v938
        %977 = vmatprep.subr.mxu0 %v935
        %978 = vmatpush1.msra.mxu0 %v934
        %979 = vmatprep.subr.mxu0 %v931
        %980 = vmatpush1.msra.mxu0 %v930
        %981 = vmatprep.subr.mxu0 %v927
        %982 = vmatpush1.msra.mxu0 %v926
        %983 = vmatprep.subr.mxu0 %v923
        %984 = vmatpush1.msra.mxu0 %v922
        %985 = vmatprep.subr.mxu0 %v919
        %986 = vmatpush1.msra.mxu0 %v918
        %987 = vmatprep.subr.mxu0 %v915
        %988 = vmatpush1.msra.mxu0 %v914
        %989 = vmatprep.subr.mxu0 %v911
        %990 = vmatpush1.msra.mxu0 %v910
        %991 = vmatprep.subr.mxu0 %v907
        %992 = vmatpush1.msra.mxu0 %v906
        %993 = vmatprep.subr.mxu0 0.0
        %994 = vmatpush2.msra.mxu0 0.0
        %995 = vmatprep.subr.mxu0 0.0
        %996 = vmatpush2.msra.mxu0 0.0
        %997 = vmatprep.subr.mxu0 0.0
        %998 = vmatpush2.msra.mxu0 0.0
        %999 = vmatprep.subr.mxu0 0.0
        %1000 = vmatpush2.msra.mxu0 0.0
        %1001 = vmatprep.subr.mxu0 0.0
        %1002 = vmatpush2.msra.mxu0 0.0
        %1003 = vmatprep.subr.mxu0 0.0
        %1004 = vmatpush2.msra.mxu0 0.0
        %1005 = vmatprep.subr.mxu0 0.0
        %1006 = vmatpush2.msra.mxu0 0.0
        %1007 = vmatprep.subr.mxu0 0.0
        %1008 = vmatpush2.msra.mxu0 0.0
        %1009 = vmatprep.subr.mxu0 0.0
        %1010 = vmatpush2.msra.mxu0 0.0
        %1011 = vmatprep.subr.mxu0 0.0
        %1012 = vmatpush2.msra.mxu0 0.0
        %1013 = vmatprep.subr.mxu0 0.0
        %1014 = vmatpush2.msra.mxu0 0.0
        %1015 = vmatprep.subr.mxu0 0.0
        %1016 = vmatpush2.msra.mxu0 0.0
        %1017 = vmatprep.subr.mxu0 0.0
        %1018 = vmatpush2.msra.mxu0 0.0
        %1019 = vmatprep.subr.mxu0 0.0
        %1020 = vmatpush2.msra.mxu0 0.0
        %1021 = vmatprep.subr.mxu0 0.0
        %1022 = vmatpush2.msra.mxu0 0.0
        %1023 = vmatprep.subr.mxu0 0.0
        %1024 = vmatpush2.msra.mxu0 0.0
        %1025 = vmatprep.mubr.f32.mxu0 0.0
        %1026 = vmatmul.mubr.f32.gmra.mxu0 %v956
        %v1027 = vpop.f32.mrf.mxu0
        %v1028 = vadd.f32 0.0, %v1027
        %v1029 = vpop.f32.mrf.mxu0
        %v1030 = vadd.f32 0.0, %v1029
        %1031 = vmatprep.mubr.f32.mxu0 0.0
        %1032 = vmatmul.mubr.f32.gmra.mxu0 %v959
        %v1033 = vpop.f32.mrf.mxu0
        %v1034 = vadd.f32 0.0, %v1033
        %v1035 = vpop.f32.mrf.mxu0
        %v1036 = vadd.f32 0.0, %v1035
        %1037 = vdwg.mxu0
        %1038 = vmatprep.subr.mxu0 0.0
        %1039 = vmatpush1.msra.mxu0 0.0
        %1040 = vmatprep.subr.mxu0 0.0
        %1041 = vmatpush1.msra.mxu0 0.0
        %1042 = vmatprep.subr.mxu0 0.0
        %1043 = vmatpush1.msra.mxu0 0.0
        %1044 = vmatprep.subr.mxu0 0.0
        %1045 = vmatpush1.msra.mxu0 0.0
        %1046 = vmatprep.subr.mxu0 %v953
        %1047 = vmatpush1.msra.mxu0 %v952
        %1048 = vmatprep.subr.mxu0 %v949
        %1049 = vmatpush1.msra.mxu0 %v948
        %1050 = vmatprep.subr.mxu0 %v945
        %1051 = vmatpush1.msra.mxu0 %v944
        %1052 = vmatprep.subr.mxu0 %v941
        %1053 = vmatpush1.msra.mxu0 %v940
        %1054 = vmatprep.subr.mxu0 %v937
        %1055 = vmatpush1.msra.mxu0 %v936
        %1056 = vmatprep.subr.mxu0 %v933
        %1057 = vmatpush1.msra.mxu0 %v932
        %1058 = vmatprep.subr.mxu0 %v929
        %1059 = vmatpush1.msra.mxu0 %v928
        %1060 = vmatprep.subr.mxu0 %v925
        %1061 = vmatpush1.msra.mxu0 %v924
        %1062 = vmatprep.subr.mxu0 %v921
        %1063 = vmatpush1.msra.mxu0 %v920
        %1064 = vmatprep.subr.mxu0 %v917
        %1065 = vmatpush1.msra.mxu0 %v916
        %1066 = vmatprep.subr.mxu0 %v913
        %1067 = vmatpush1.msra.mxu0 %v912
        %1068 = vmatprep.subr.mxu0 %v909
        %1069 = vmatpush1.msra.mxu0 %v908
        %1070 = vmatprep.subr.mxu0 0.0
        %1071 = vmatpush2.msra.mxu0 0.0
        %1072 = vmatprep.subr.mxu0 0.0
        %1073 = vmatpush2.msra.mxu0 0.0
        %1074 = vmatprep.subr.mxu0 0.0
        %1075 = vmatpush2.msra.mxu0 0.0
        %1076 = vmatprep.subr.mxu0 0.0
        %1077 = vmatpush2.msra.mxu0 0.0
        %1078 = vmatprep.subr.mxu0 0.0
        %1079 = vmatpush2.msra.mxu0 0.0
        %1080 = vmatprep.subr.mxu0 0.0
        %1081 = vmatpush2.msra.mxu0 0.0
        %1082 = vmatprep.subr.mxu0 0.0
        %1083 = vmatpush2.msra.mxu0 0.0
        %1084 = vmatprep.subr.mxu0 0.0
        %1085 = vmatpush2.msra.mxu0 0.0
        %1086 = vmatprep.subr.mxu0 0.0
        %1087 = vmatpush2.msra.mxu0 0.0
        %1088 = vmatprep.subr.mxu0 0.0
        %1089 = vmatpush2.msra.mxu0 0.0
        %1090 = vmatprep.subr.mxu0 0.0
        %1091 = vmatpush2.msra.mxu0 0.0
        %1092 = vmatprep.subr.mxu0 0.0
        %1093 = vmatpush2.msra.mxu0 0.0
        %1094 = vmatprep.subr.mxu0 0.0
        %1095 = vmatpush2.msra.mxu0 0.0
        %1096 = vmatprep.subr.mxu0 0.0
        %1097 = vmatpush2.msra.mxu0 0.0
        %1098 = vmatprep.subr.mxu0 0.0
        %1099 = vmatpush2.msra.mxu0 0.0
        %1100 = vmatprep.subr.mxu0 0.0
        %1101 = vmatpush2.msra.mxu0 0.0
        %1102 = vmatprep.mubr.f32.mxu0 0.0
        %1103 = vmatmul.mubr.f32.gmra.mxu0 %v956
        %v1104 = vpop.f32.mrf.mxu0
        %v1105 = vadd.f32 0.0, %v1104
        %v1106 = vpop.f32.mrf.mxu0
        %v1107 = vadd.f32 0.0, %v1106
        %1108 = vmatprep.mubr.f32.mxu0 0.0
        %1109 = vmatmul.mubr.f32.gmra.mxu0 %v959
        %v1110 = vpop.f32.mrf.mxu0
        %v1111 = vadd.f32 0.0, %v1110
        %v1112 = vpop.f32.mrf.mxu0
        %v1113 = vadd.f32 0.0, %v1112
        %1114 = vdwg.mxu0
        %v1116 = vsel %vm954, %v765, 0
        %v1119 = vsel %vm954, %v770, 0
        %1121 = vmatprep.subr.mxu0 0.0
        %1122 = vmatpush1.msra.mxu0 0.0
        %1123 = vmatprep.subr.mxu0 0.0
        %1124 = vmatpush1.msra.mxu0 0.0
        %1125 = vmatprep.subr.mxu0 0.0
        %1126 = vmatpush1.msra.mxu0 0.0
        %1127 = vmatprep.subr.mxu0 0.0
        %1128 = vmatpush1.msra.mxu0 0.0
        %1129 = vmatprep.subr.mxu0 %v818
        %1130 = vmatpush1.msra.mxu0 %v817
        %1131 = vmatprep.subr.mxu0 %v814
        %1132 = vmatpush1.msra.mxu0 %v813
        %1133 = vmatprep.subr.mxu0 %v810
        %1134 = vmatpush1.msra.mxu0 %v809
        %1135 = vmatprep.subr.mxu0 %v806
        %1136 = vmatpush1.msra.mxu0 %v805
        %1137 = vmatprep.subr.mxu0 %v802
        %1138 = vmatpush1.msra.mxu0 %v801
        %1139 = vmatprep.subr.mxu0 %v798
        %1140 = vmatpush1.msra.mxu0 %v797
        %1141 = vmatprep.subr.mxu0 %v794
        %1142 = vmatpush1.msra.mxu0 %v793
        %1143 = vmatprep.subr.mxu0 %v790
        %1144 = vmatpush1.msra.mxu0 %v789
        %1145 = vmatprep.subr.mxu0 %v786
        %1146 = vmatpush1.msra.mxu0 %v785
        %1147 = vmatprep.subr.mxu0 %v782
        %1148 = vmatpush1.msra.mxu0 %v781
        %1149 = vmatprep.subr.mxu0 %v778
        %1150 = vmatpush1.msra.mxu0 %v777
        %1151 = vmatprep.subr.mxu0 %v774
        %1152 = vmatpush1.msra.mxu0 %v773
        %1153 = vmatprep.subr.mxu0 0.0
        %1154 = vmatpush2.msra.mxu0 0.0
        %1155 = vmatprep.subr.mxu0 0.0
        %1156 = vmatpush2.msra.mxu0 0.0
        %1157 = vmatprep.subr.mxu0 0.0
        %1158 = vmatpush2.msra.mxu0 0.0
        %1159 = vmatprep.subr.mxu0 0.0
        %1160 = vmatpush2.msra.mxu0 0.0
        %1161 = vmatprep.subr.mxu0 0.0
        %1162 = vmatpush2.msra.mxu0 0.0
        %1163 = vmatprep.subr.mxu0 0.0
        %1164 = vmatpush2.msra.mxu0 0.0
        %1165 = vmatprep.subr.mxu0 0.0
        %1166 = vmatpush2.msra.mxu0 0.0
        %1167 = vmatprep.subr.mxu0 0.0
        %1168 = vmatpush2.msra.mxu0 0.0
        %1169 = vmatprep.subr.mxu0 0.0
        %1170 = vmatpush2.msra.mxu0 0.0
        %1171 = vmatprep.subr.mxu0 0.0
        %1172 = vmatpush2.msra.mxu0 0.0
        %1173 = vmatprep.subr.mxu0 0.0
        %1174 = vmatpush2.msra.mxu0 0.0
        %1175 = vmatprep.subr.mxu0 0.0
        %1176 = vmatpush2.msra.mxu0 0.0
        %1177 = vmatprep.subr.mxu0 0.0
        %1178 = vmatpush2.msra.mxu0 0.0
        %1179 = vmatprep.subr.mxu0 0.0
        %1180 = vmatpush2.msra.mxu0 0.0
        %1181 = vmatprep.subr.mxu0 0.0
        %1182 = vmatpush2.msra.mxu0 0.0
        %1183 = vmatprep.subr.mxu0 0.0
        %1184 = vmatpush2.msra.mxu0 0.0
        %1185 = vmatprep.mubr.f32.mxu0 0.0
        %1186 = vmatmul.mubr.f32.gmra.mxu0 %v1116
        %v1187 = vpop.f32.mrf.mxu0
        %v1188 = vadd.f32 %v1028, %v1187
        %v1189 = vpop.f32.mrf.mxu0
        %v1190 = vadd.f32 %v1030, %v1189
        %1191 = vmatprep.mubr.f32.mxu0 0.0
        %1192 = vmatmul.mubr.f32.gmra.mxu0 %v1119
        %v1193 = vpop.f32.mrf.mxu0
        %v1194 = vadd.f32 %v1034, %v1193
        %v1195 = vpop.f32.mrf.mxu0
        %v1196 = vadd.f32 %v1036, %v1195
        %1197 = vdwg.mxu0
        %1198 = vmatprep.subr.mxu0 0.0
        %1199 = vmatpush1.msra.mxu0 0.0
        %1200 = vmatprep.subr.mxu0 0.0
        %1201 = vmatpush1.msra.mxu0 0.0
        %1202 = vmatprep.subr.mxu0 0.0
        %1203 = vmatpush1.msra.mxu0 0.0
        %1204 = vmatprep.subr.mxu0 0.0
        %1205 = vmatpush1.msra.mxu0 0.0
        %1206 = vmatprep.subr.mxu0 %v820
        %1207 = vmatpush1.msra.mxu0 %v819
        %1208 = vmatprep.subr.mxu0 %v816
        %1209 = vmatpush1.msra.mxu0 %v815
        %1210 = vmatprep.subr.mxu0 %v812
        %1211 = vmatpush1.msra.mxu0 %v811
        %1212 = vmatprep.subr.mxu0 %v808
        %1213 = vmatpush1.msra.mxu0 %v807
        %1214 = vmatprep.subr.mxu0 %v804
        %1215 = vmatpush1.msra.mxu0 %v803
        %1216 = vmatprep.subr.mxu0 %v800
        %1217 = vmatpush1.msra.mxu0 %v799
        %1218 = vmatprep.subr.mxu0 %v796
        %1219 = vmatpush1.msra.mxu0 %v795
        %1220 = vmatprep.subr.mxu0 %v792
        %1221 = vmatpush1.msra.mxu0 %v791
        %1222 = vmatprep.subr.mxu0 %v788
        %1223 = vmatpush1.msra.mxu0 %v787
        %1224 = vmatprep.subr.mxu0 %v784
        %1225 = vmatpush1.msra.mxu0 %v783
        %1226 = vmatprep.subr.mxu0 %v780
        %1227 = vmatpush1.msra.mxu0 %v779
        %1228 = vmatprep.subr.mxu0 %v776
        %1229 = vmatpush1.msra.mxu0 %v775
        %1230 = vmatprep.subr.mxu0 0.0
        %1231 = vmatpush2.msra.mxu0 0.0
        %1232 = vmatprep.subr.mxu0 0.0
        %1233 = vmatpush2.msra.mxu0 0.0
        %1234 = vmatprep.subr.mxu0 0.0
        %1235 = vmatpush2.msra.mxu0 0.0
        %1236 = vmatprep.subr.mxu0 0.0
        %1237 = vmatpush2.msra.mxu0 0.0
        %1238 = vmatprep.subr.mxu0 0.0
        %1239 = vmatpush2.msra.mxu0 0.0
        %1240 = vmatprep.subr.mxu0 0.0
        %1241 = vmatpush2.msra.mxu0 0.0
        %1242 = vmatprep.subr.mxu0 0.0
        %1243 = vmatpush2.msra.mxu0 0.0
        %1244 = vmatprep.subr.mxu0 0.0
        %1245 = vmatpush2.msra.mxu0 0.0
        %1246 = vmatprep.subr.mxu0 0.0
        %1247 = vmatpush2.msra.mxu0 0.0
        %1248 = vmatprep.subr.mxu0 0.0
        %1249 = vmatpush2.msra.mxu0 0.0
        %1250 = vmatprep.subr.mxu0 0.0
        %1251 = vmatpush2.msra.mxu0 0.0
        %1252 = vmatprep.subr.mxu0 0.0
        %1253 = vmatpush2.msra.mxu0 0.0
        %1254 = vmatprep.subr.mxu0 0.0
        %1255 = vmatpush2.msra.mxu0 0.0
        %1256 = vmatprep.subr.mxu0 0.0
        %1257 = vmatpush2.msra.mxu0 0.0
        %1258 = vmatprep.subr.mxu0 0.0
        %1259 = vmatpush2.msra.mxu0 0.0
        %1260 = vmatprep.subr.mxu0 0.0
        %1261 = vmatpush2.msra.mxu0 0.0
        %1262 = vmatprep.mubr.f32.mxu0 0.0
        %1263 = vmatmul.mubr.f32.gmra.mxu0 %v1116
        %v1264 = vpop.f32.mrf.mxu0
        %v1265 = vadd.f32 %v1105, %v1264
        %v1266 = vpop.f32.mrf.mxu0
        %v1267 = vadd.f32 %v1107, %v1266
        %1268 = vmatprep.mubr.f32.mxu0 0.0
        %1269 = vmatmul.mubr.f32.gmra.mxu0 %v1119
        %v1270 = vpop.f32.mrf.mxu0
        %v1271 = vadd.f32 %v1111, %v1270
        %v1272 = vpop.f32.mrf.mxu0
        %v1273 = vadd.f32 %v1113, %v1272
        %1274 = vdwg.mxu0
        %s1275 = scalar_lea.vmem [#allocation2], 32
        %v1276 = vld [vmem:[%s1275] sm:$0xff]
        %v1277 = vld [vmem:[%s1275 + $0x8] sm:$0xff]
        %v1279 = vsel %vm691, %v1276, 0
        %v1282 = vsel %vm691, %v1277, 0
        %1284 = vmatprep.subr.mxu0 0.0
        %1285 = vmatpush1.msra.mxu0 0.0
        %1286 = vmatprep.subr.mxu0 0.0
        %1287 = vmatpush1.msra.mxu0 0.0
        %1288 = vmatprep.subr.mxu0 0.0
        %1289 = vmatpush1.msra.mxu0 0.0
        %1290 = vmatprep.subr.mxu0 0.0
        %1291 = vmatpush1.msra.mxu0 0.0
        %1292 = vmatprep.subr.mxu0 0.0
        %1293 = vmatpush1.msra.mxu0 0.0
        %1294 = vmatprep.subr.mxu0 0.0
        %1295 = vmatpush1.msra.mxu0 0.0
        %1296 = vmatprep.subr.mxu0 0.0
        %1297 = vmatpush1.msra.mxu0 0.0
        %1298 = vmatprep.subr.mxu0 0.0
        %1299 = vmatpush1.msra.mxu0 0.0
        %1300 = vmatprep.subr.mxu0 0.0
        %1301 = vmatpush1.msra.mxu0 0.0
        %1302 = vmatprep.subr.mxu0 0.0
        %1303 = vmatpush1.msra.mxu0 0.0
        %1304 = vmatprep.subr.mxu0 0.0
        %1305 = vmatpush1.msra.mxu0 0.0
        %1306 = vmatprep.subr.mxu0 0.0
        %1307 = vmatpush1.msra.mxu0 0.0
        %1308 = vmatprep.subr.mxu0 0.0
        %1309 = vmatpush1.msra.mxu0 %v688
        %1310 = vmatprep.subr.mxu0 0.0
        %1311 = vmatpush1.msra.mxu0 %v687
        %1312 = vmatprep.subr.mxu0 0.0
        %1313 = vmatpush1.msra.mxu0 %v686
        %1314 = vmatprep.subr.mxu0 0.0
        %1315 = vmatpush1.msra.mxu0 %v685
        %1316 = vmatprep.subr.mxu0 0.0
        %1317 = vmatpush2.msra.mxu0 0.0
        %1318 = vmatprep.subr.mxu0 0.0
        %1319 = vmatpush2.msra.mxu0 0.0
        %1320 = vmatprep.subr.mxu0 0.0
        %1321 = vmatpush2.msra.mxu0 0.0
        %1322 = vmatprep.subr.mxu0 0.0
        %1323 = vmatpush2.msra.mxu0 0.0
        %1324 = vmatprep.subr.mxu0 0.0
        %1325 = vmatpush2.msra.mxu0 0.0
        %1326 = vmatprep.subr.mxu0 0.0
        %1327 = vmatpush2.msra.mxu0 0.0
        %1328 = vmatprep.subr.mxu0 0.0
        %1329 = vmatpush2.msra.mxu0 0.0
        %1330 = vmatprep.subr.mxu0 0.0
        %1331 = vmatpush2.msra.mxu0 0.0
        %1332 = vmatprep.subr.mxu0 0.0
        %1333 = vmatpush2.msra.mxu0 0.0
        %1334 = vmatprep.subr.mxu0 0.0
        %1335 = vmatpush2.msra.mxu0 0.0
        %1336 = vmatprep.subr.mxu0 0.0
        %1337 = vmatpush2.msra.mxu0 0.0
        %1338 = vmatprep.subr.mxu0 0.0
        %1339 = vmatpush2.msra.mxu0 0.0
        %1340 = vmatprep.subr.mxu0 0.0
        %1341 = vmatpush2.msra.mxu0 0.0
        %1342 = vmatprep.subr.mxu0 0.0
        %1343 = vmatpush2.msra.mxu0 0.0
        %1344 = vmatprep.subr.mxu0 0.0
        %1345 = vmatpush2.msra.mxu0 0.0
        %1346 = vmatprep.subr.mxu0 0.0
        %1347 = vmatpush2.msra.mxu0 0.0
        %1348 = vmatprep.mubr.f32.mxu0 0.0
        %1349 = vmatmul.mubr.f32.gmra.mxu0 %v1279
        %v1350 = vpop.f32.mrf.mxu0
        %v1351 = vadd.f32 0.0, %v1350
        %v1352 = vpop.f32.mrf.mxu0
        %1353 = vmatprep.mubr.f32.mxu0 0.0
        %1354 = vmatmul.mubr.f32.gmra.mxu0 %v1282
        %v1355 = vpop.f32.mrf.mxu0
        %v1356 = vadd.f32 0.0, %v1355
        %v1357 = vpop.f32.mrf.mxu0
        %1358 = vdwg.mxu0
        %s1359 = scalar_lea.vmem [#allocation4], 768
        %v1360 = vld [vmem:[%s1359] sm:$0xff]
        %v1361 = vld [vmem:[%s1359 + $0x8] sm:$0xff]
        %v1362 = vld [vmem:[%s1359 + $0x10] sm:$0xff]
        %v1363 = vld [vmem:[%s1359 + $0x18] sm:$0xff]
        %v1364 = vld [vmem:[%s1359 + $0x20] sm:$0xff]
        %v1365 = vld [vmem:[%s1359 + $0x28] sm:$0xff]
        %v1366 = vld [vmem:[%s1359 + $0x30] sm:$0xff]
        %v1367 = vld [vmem:[%s1359 + $0x38] sm:$0xff]
        %v1368 = vld [vmem:[%s1359 + $0x40] sm:$0xff]
        %v1369 = vld [vmem:[%s1359 + $0x48] sm:$0xff]
        %v1370 = vld [vmem:[%s1359 + $0x50] sm:$0xff]
        %v1371 = vld [vmem:[%s1359 + $0x58] sm:$0xff]
        %v1372 = vld [vmem:[%s1359 + $0x60] sm:$0xff]
        %v1373 = vld [vmem:[%s1359 + $0x68] sm:$0xff]
        %v1374 = vld [vmem:[%s1359 + $0x70] sm:$0xff]
        %v1375 = vld [vmem:[%s1359 + $0x78] sm:$0xff]
        %v1376 = vld [vmem:[%s1359 + $0x80] sm:$0xff]
        %v1377 = vld [vmem:[%s1359 + $0x88] sm:$0xff]
        %v1378 = vld [vmem:[%s1359 + $0x90] sm:$0xff]
        %v1379 = vld [vmem:[%s1359 + $0x98] sm:$0xff]
        %v1380 = vld [vmem:[%s1359 + $0xa0] sm:$0xff]
        %v1381 = vld [vmem:[%s1359 + $0xa8] sm:$0xff]
        %v1382 = vld [vmem:[%s1359 + $0xb0] sm:$0xff]
        %v1383 = vld [vmem:[%s1359 + $0xb8] sm:$0xff]
        %v1384 = vld [vmem:[%s1359 + $0xc0] sm:$0xff]
        %v1385 = vld [vmem:[%s1359 + $0xc8] sm:$0xff]
        %v1386 = vld [vmem:[%s1359 + $0xd0] sm:$0xff]
        %v1387 = vld [vmem:[%s1359 + $0xd8] sm:$0xff]
        %v1388 = vld [vmem:[%s1359 + $0xe0] sm:$0xff]
        %v1389 = vld [vmem:[%s1359 + $0xe8] sm:$0xff]
        %v1390 = vld [vmem:[%s1359 + $0xf0] sm:$0xff]
        %v1391 = vld [vmem:[%s1359 + $0xf8] sm:$0xff]
        %v1392 = vld [vmem:[%s1359 + $0x100] sm:$0xff]
        %v1393 = vld [vmem:[%s1359 + $0x108] sm:$0xff]
        %v1394 = vld [vmem:[%s1359 + $0x110] sm:$0xff]
        %v1395 = vld [vmem:[%s1359 + $0x118] sm:$0xff]
        %v1396 = vld [vmem:[%s1359 + $0x120] sm:$0xff]
        %v1397 = vld [vmem:[%s1359 + $0x128] sm:$0xff]
        %v1398 = vld [vmem:[%s1359 + $0x130] sm:$0xff]
        %v1399 = vld [vmem:[%s1359 + $0x138] sm:$0xff]
        %v1400 = vld [vmem:[%s1359 + $0x140] sm:$0xff]
        %v1401 = vld [vmem:[%s1359 + $0x148] sm:$0xff]
        %v1402 = vld [vmem:[%s1359 + $0x150] sm:$0xff]
        %v1403 = vld [vmem:[%s1359 + $0x158] sm:$0xff]
        %v1404 = vld [vmem:[%s1359 + $0x160] sm:$0xff]
        %v1405 = vld [vmem:[%s1359 + $0x168] sm:$0xff]
        %v1406 = vld [vmem:[%s1359 + $0x170] sm:$0xff]
        %v1407 = vld [vmem:[%s1359 + $0x178] sm:$0xff]
        %v1409 = vsel %vm954, %v1351, 0
        %v1412 = vsel %vm954, %v1356, 0
        %1414 = vmatprep.subr.mxu0 0.0
        %1415 = vmatpush1.msra.mxu0 0.0
        %1416 = vmatprep.subr.mxu0 0.0
        %1417 = vmatpush1.msra.mxu0 0.0
        %1418 = vmatprep.subr.mxu0 0.0
        %1419 = vmatpush1.msra.mxu0 0.0
        %1420 = vmatprep.subr.mxu0 0.0
        %1421 = vmatpush1.msra.mxu0 0.0
        %1422 = vmatprep.subr.mxu0 %v1405
        %1423 = vmatpush1.msra.mxu0 %v1404
        %1424 = vmatprep.subr.mxu0 %v1401
        %1425 = vmatpush1.msra.mxu0 %v1400
        %1426 = vmatprep.subr.mxu0 %v1397
        %1427 = vmatpush1.msra.mxu0 %v1396
        %1428 = vmatprep.subr.mxu0 %v1393
        %1429 = vmatpush1.msra.mxu0 %v1392
        %1430 = vmatprep.subr.mxu0 %v1389
        %1431 = vmatpush1.msra.mxu0 %v1388
        %1432 = vmatprep.subr.mxu0 %v1385
        %1433 = vmatpush1.msra.mxu0 %v1384
        %1434 = vmatprep.subr.mxu0 %v1381
        %1435 = vmatpush1.msra.mxu0 %v1380
        %1436 = vmatprep.subr.mxu0 %v1377
        %1437 = vmatpush1.msra.mxu0 %v1376
        %1438 = vmatprep.subr.mxu0 %v1373
        %1439 = vmatpush1.msra.mxu0 %v1372
        %1440 = vmatprep.subr.mxu0 %v1369
        %1441 = vmatpush1.msra.mxu0 %v1368
        %1442 = vmatprep.subr.mxu0 %v1365
        %1443 = vmatpush1.msra.mxu0 %v1364
        %1444 = vmatprep.subr.mxu0 %v1361
        %1445 = vmatpush1.msra.mxu0 %v1360
        %1446 = vmatprep.subr.mxu0 0.0
        %1447 = vmatpush2.msra.mxu0 0.0
        %1448 = vmatprep.subr.mxu0 0.0
        %1449 = vmatpush2.msra.mxu0 0.0
        %1450 = vmatprep.subr.mxu0 0.0
        %1451 = vmatpush2.msra.mxu0 0.0
        %1452 = vmatprep.subr.mxu0 0.0
        %1453 = vmatpush2.msra.mxu0 0.0
        %1454 = vmatprep.subr.mxu0 0.0
        %1455 = vmatpush2.msra.mxu0 0.0
        %1456 = vmatprep.subr.mxu0 0.0
        %1457 = vmatpush2.msra.mxu0 0.0
        %1458 = vmatprep.subr.mxu0 0.0
        %1459 = vmatpush2.msra.mxu0 0.0
        %1460 = vmatprep.subr.mxu0 0.0
        %1461 = vmatpush2.msra.mxu0 0.0
        %1462 = vmatprep.subr.mxu0 0.0
        %1463 = vmatpush2.msra.mxu0 0.0
        %1464 = vmatprep.subr.mxu0 0.0
        %1465 = vmatpush2.msra.mxu0 0.0
        %1466 = vmatprep.subr.mxu0 0.0
        %1467 = vmatpush2.msra.mxu0 0.0
        %1468 = vmatprep.subr.mxu0 0.0
        %1469 = vmatpush2.msra.mxu0 0.0
        %1470 = vmatprep.subr.mxu0 0.0
        %1471 = vmatpush2.msra.mxu0 0.0
        %1472 = vmatprep.subr.mxu0 0.0
        %1473 = vmatpush2.msra.mxu0 0.0
        %1474 = vmatprep.subr.mxu0 0.0
        %1475 = vmatpush2.msra.mxu0 0.0
        %1476 = vmatprep.subr.mxu0 0.0
        %1477 = vmatpush2.msra.mxu0 0.0
        %1478 = vmatprep.mubr.f32.mxu0 0.0
        %1479 = vmatmul.mubr.f32.gmra.mxu0 %v1409
        %v1480 = vpop.f32.mrf.mxu0
        %v1481 = vadd.f32 0.0, %v1480
        %v1482 = vpop.f32.mrf.mxu0
        %v1483 = vadd.f32 0.0, %v1482
        %1484 = vmatprep.mubr.f32.mxu0 0.0
        %1485 = vmatmul.mubr.f32.gmra.mxu0 %v1412
        %v1486 = vpop.f32.mrf.mxu0
        %v1487 = vadd.f32 0.0, %v1486
        %v1488 = vpop.f32.mrf.mxu0
        %v1489 = vadd.f32 0.0, %v1488
        %1490 = vdwg.mxu0
        %1491 = vmatprep.subr.mxu0 0.0
        %1492 = vmatpush1.msra.mxu0 0.0
        %1493 = vmatprep.subr.mxu0 0.0
        %1494 = vmatpush1.msra.mxu0 0.0
        %1495 = vmatprep.subr.mxu0 0.0
        %1496 = vmatpush1.msra.mxu0 0.0
        %1497 = vmatprep.subr.mxu0 0.0
        %1498 = vmatpush1.msra.mxu0 0.0
        %1499 = vmatprep.subr.mxu0 %v1407
        %1500 = vmatpush1.msra.mxu0 %v1406
        %1501 = vmatprep.subr.mxu0 %v1403
        %1502 = vmatpush1.msra.mxu0 %v1402
        %1503 = vmatprep.subr.mxu0 %v1399
        %1504 = vmatpush1.msra.mxu0 %v1398
        %1505 = vmatprep.subr.mxu0 %v1395
        %1506 = vmatpush1.msra.mxu0 %v1394
        %1507 = vmatprep.subr.mxu0 %v1391
        %1508 = vmatpush1.msra.mxu0 %v1390
        %1509 = vmatprep.subr.mxu0 %v1387
        %1510 = vmatpush1.msra.mxu0 %v1386
        %1511 = vmatprep.subr.mxu0 %v1383
        %1512 = vmatpush1.msra.mxu0 %v1382
        %1513 = vmatprep.subr.mxu0 %v1379
        %1514 = vmatpush1.msra.mxu0 %v1378
        %1515 = vmatprep.subr.mxu0 %v1375
        %1516 = vmatpush1.msra.mxu0 %v1374
        %1517 = vmatprep.subr.mxu0 %v1371
        %1518 = vmatpush1.msra.mxu0 %v1370
        %1519 = vmatprep.subr.mxu0 %v1367
        %1520 = vmatpush1.msra.mxu0 %v1366
        %1521 = vmatprep.subr.mxu0 %v1363
        %1522 = vmatpush1.msra.mxu0 %v1362
        %1523 = vmatprep.subr.mxu0 0.0
        %1524 = vmatpush2.msra.mxu0 0.0
        %1525 = vmatprep.subr.mxu0 0.0
        %1526 = vmatpush2.msra.mxu0 0.0
        %1527 = vmatprep.subr.mxu0 0.0
        %1528 = vmatpush2.msra.mxu0 0.0
        %1529 = vmatprep.subr.mxu0 0.0
        %1530 = vmatpush2.msra.mxu0 0.0
        %1531 = vmatprep.subr.mxu0 0.0
        %1532 = vmatpush2.msra.mxu0 0.0
        %1533 = vmatprep.subr.mxu0 0.0
        %1534 = vmatpush2.msra.mxu0 0.0
        %1535 = vmatprep.subr.mxu0 0.0
        %1536 = vmatpush2.msra.mxu0 0.0
        %1537 = vmatprep.subr.mxu0 0.0
        %1538 = vmatpush2.msra.mxu0 0.0
        %1539 = vmatprep.subr.mxu0 0.0
        %1540 = vmatpush2.msra.mxu0 0.0
        %1541 = vmatprep.subr.mxu0 0.0
        %1542 = vmatpush2.msra.mxu0 0.0
        %1543 = vmatprep.subr.mxu0 0.0
        %1544 = vmatpush2.msra.mxu0 0.0
        %1545 = vmatprep.subr.mxu0 0.0
        %1546 = vmatpush2.msra.mxu0 0.0
        %1547 = vmatprep.subr.mxu0 0.0
        %1548 = vmatpush2.msra.mxu0 0.0
        %1549 = vmatprep.subr.mxu0 0.0
        %1550 = vmatpush2.msra.mxu0 0.0
        %1551 = vmatprep.subr.mxu0 0.0
        %1552 = vmatpush2.msra.mxu0 0.0
        %1553 = vmatprep.subr.mxu0 0.0
        %1554 = vmatpush2.msra.mxu0 0.0
        %1555 = vmatprep.mubr.f32.mxu0 0.0
        %1556 = vmatmul.mubr.f32.gmra.mxu0 %v1409
        %v1557 = vpop.f32.mrf.mxu0
        %v1558 = vadd.f32 0.0, %v1557
        %v1559 = vpop.f32.mrf.mxu0
        %v1560 = vadd.f32 0.0, %v1559
        %1561 = vmatprep.mubr.f32.mxu0 0.0
        %1562 = vmatmul.mubr.f32.gmra.mxu0 %v1412
        %v1563 = vpop.f32.mrf.mxu0
        %v1564 = vadd.f32 0.0, %v1563
        %v1565 = vpop.f32.mrf.mxu0
        %v1566 = vadd.f32 0.0, %v1565
        %1567 = vdwg.mxu0
        %v1568 = vadd.f32 %v1188, %v1481
        %v1569 = vadd.f32 %v1190, %v1483
        %v1570 = vadd.f32 %v1265, %v1558
        %v1571 = vadd.f32 %v1267, %v1560
        %v1572 = vadd.f32 %v1194, %v1487
        %v1573 = vadd.f32 %v1196, %v1489
        %v1574 = vadd.f32 %v1271, %v1564
        %v1575 = vadd.f32 %v1273, %v1566
        %s1576 = scalar_lea.vmem [#allocation2], 48
        %v1577 = vld [vmem:[%s1576] sm:$0xff]
        %v1578 = vld [vmem:[%s1576 + $0x8] sm:$0xff]
        %v1580 = vsel %vm691, %v1577, 0
        %v1583 = vsel %vm691, %v1578, 0
        %1585 = vmatprep.subr.mxu0 0.0
        %1586 = vmatpush1.msra.mxu0 0.0
        %1587 = vmatprep.subr.mxu0 0.0
        %1588 = vmatpush1.msra.mxu0 0.0
        %1589 = vmatprep.subr.mxu0 0.0
        %1590 = vmatpush1.msra.mxu0 0.0
        %1591 = vmatprep.subr.mxu0 0.0
        %1592 = vmatpush1.msra.mxu0 0.0
        %1593 = vmatprep.subr.mxu0 0.0
        %1594 = vmatpush1.msra.mxu0 0.0
        %1595 = vmatprep.subr.mxu0 0.0
        %1596 = vmatpush1.msra.mxu0 0.0
        %1597 = vmatprep.subr.mxu0 0.0
        %1598 = vmatpush1.msra.mxu0 0.0
        %1599 = vmatprep.subr.mxu0 0.0
        %1600 = vmatpush1.msra.mxu0 0.0
        %1601 = vmatprep.subr.mxu0 0.0
        %1602 = vmatpush1.msra.mxu0 0.0
        %1603 = vmatprep.subr.mxu0 0.0
        %1604 = vmatpush1.msra.mxu0 0.0
        %1605 = vmatprep.subr.mxu0 0.0
        %1606 = vmatpush1.msra.mxu0 0.0
        %1607 = vmatprep.subr.mxu0 0.0
        %1608 = vmatpush1.msra.mxu0 0.0
        %1609 = vmatprep.subr.mxu0 0.0
        %1610 = vmatpush1.msra.mxu0 %v688
        %1611 = vmatprep.subr.mxu0 0.0
        %1612 = vmatpush1.msra.mxu0 %v687
        %1613 = vmatprep.subr.mxu0 0.0
        %1614 = vmatpush1.msra.mxu0 %v686
        %1615 = vmatprep.subr.mxu0 0.0
        %1616 = vmatpush1.msra.mxu0 %v685
        %1617 = vmatprep.subr.mxu0 0.0
        %1618 = vmatpush2.msra.mxu0 0.0
        %1619 = vmatprep.subr.mxu0 0.0
        %1620 = vmatpush2.msra.mxu0 0.0
        %1621 = vmatprep.subr.mxu0 0.0
        %1622 = vmatpush2.msra.mxu0 0.0
        %1623 = vmatprep.subr.mxu0 0.0
        %1624 = vmatpush2.msra.mxu0 0.0
        %1625 = vmatprep.subr.mxu0 0.0
        %1626 = vmatpush2.msra.mxu0 0.0
        %1627 = vmatprep.subr.mxu0 0.0
        %1628 = vmatpush2.msra.mxu0 0.0
        %1629 = vmatprep.subr.mxu0 0.0
        %1630 = vmatpush2.msra.mxu0 0.0
        %1631 = vmatprep.subr.mxu0 0.0
        %1632 = vmatpush2.msra.mxu0 0.0
        %1633 = vmatprep.subr.mxu0 0.0
        %1634 = vmatpush2.msra.mxu0 0.0
        %1635 = vmatprep.subr.mxu0 0.0
        %1636 = vmatpush2.msra.mxu0 0.0
        %1637 = vmatprep.subr.mxu0 0.0
        %1638 = vmatpush2.msra.mxu0 0.0
        %1639 = vmatprep.subr.mxu0 0.0
        %1640 = vmatpush2.msra.mxu0 0.0
        %1641 = vmatprep.subr.mxu0 0.0
        %1642 = vmatpush2.msra.mxu0 0.0
        %1643 = vmatprep.subr.mxu0 0.0
        %1644 = vmatpush2.msra.mxu0 0.0
        %1645 = vmatprep.subr.mxu0 0.0
        %1646 = vmatpush2.msra.mxu0 0.0
        %1647 = vmatprep.subr.mxu0 0.0
        %1648 = vmatpush2.msra.mxu0 0.0
        %1649 = vmatprep.mubr.f32.mxu0 0.0
        %1650 = vmatmul.mubr.f32.gmra.mxu0 %v1580
        %v1651 = vpop.f32.mrf.mxu0
        %v1652 = vadd.f32 0.0, %v1651
        %v1653 = vpop.f32.mrf.mxu0
        %1654 = vmatprep.mubr.f32.mxu0 0.0
        %1655 = vmatmul.mubr.f32.gmra.mxu0 %v1583
        %v1656 = vpop.f32.mrf.mxu0
        %v1657 = vadd.f32 0.0, %v1656
        %v1658 = vpop.f32.mrf.mxu0
        %1659 = vdwg.mxu0
        %s1660 = scalar_lea.vmem [#allocation4], 1152
        %v1661 = vld [vmem:[%s1660] sm:$0xff]
        %v1662 = vld [vmem:[%s1660 + $0x8] sm:$0xff]
        %v1663 = vld [vmem:[%s1660 + $0x10] sm:$0xff]
        %v1664 = vld [vmem:[%s1660 + $0x18] sm:$0xff]
        %v1665 = vld [vmem:[%s1660 + $0x20] sm:$0xff]
        %v1666 = vld [vmem:[%s1660 + $0x28] sm:$0xff]
        %v1667 = vld [vmem:[%s1660 + $0x30] sm:$0xff]
        %v1668 = vld [vmem:[%s1660 + $0x38] sm:$0xff]
        %v1669 = vld [vmem:[%s1660 + $0x40] sm:$0xff]
        %v1670 = vld [vmem:[%s1660 + $0x48] sm:$0xff]
        %v1671 = vld [vmem:[%s1660 + $0x50] sm:$0xff]
        %v1672 = vld [vmem:[%s1660 + $0x58] sm:$0xff]
        %v1673 = vld [vmem:[%s1660 + $0x60] sm:$0xff]
        %v1674 = vld [vmem:[%s1660 + $0x68] sm:$0xff]
        %v1675 = vld [vmem:[%s1660 + $0x70] sm:$0xff]
        %v1676 = vld [vmem:[%s1660 + $0x78] sm:$0xff]
        %v1677 = vld [vmem:[%s1660 + $0x80] sm:$0xff]
        %v1678 = vld [vmem:[%s1660 + $0x88] sm:$0xff]
        %v1679 = vld [vmem:[%s1660 + $0x90] sm:$0xff]
        %v1680 = vld [vmem:[%s1660 + $0x98] sm:$0xff]
        %v1681 = vld [vmem:[%s1660 + $0xa0] sm:$0xff]
        %v1682 = vld [vmem:[%s1660 + $0xa8] sm:$0xff]
        %v1683 = vld [vmem:[%s1660 + $0xb0] sm:$0xff]
        %v1684 = vld [vmem:[%s1660 + $0xb8] sm:$0xff]
        %v1685 = vld [vmem:[%s1660 + $0xc0] sm:$0xff]
        %v1686 = vld [vmem:[%s1660 + $0xc8] sm:$0xff]
        %v1687 = vld [vmem:[%s1660 + $0xd0] sm:$0xff]
        %v1688 = vld [vmem:[%s1660 + $0xd8] sm:$0xff]
        %v1689 = vld [vmem:[%s1660 + $0xe0] sm:$0xff]
        %v1690 = vld [vmem:[%s1660 + $0xe8] sm:$0xff]
        %v1691 = vld [vmem:[%s1660 + $0xf0] sm:$0xff]
        %v1692 = vld [vmem:[%s1660 + $0xf8] sm:$0xff]
        %v1693 = vld [vmem:[%s1660 + $0x100] sm:$0xff]
        %v1694 = vld [vmem:[%s1660 + $0x108] sm:$0xff]
        %v1695 = vld [vmem:[%s1660 + $0x110] sm:$0xff]
        %v1696 = vld [vmem:[%s1660 + $0x118] sm:$0xff]
        %v1697 = vld [vmem:[%s1660 + $0x120] sm:$0xff]
        %v1698 = vld [vmem:[%s1660 + $0x128] sm:$0xff]
        %v1699 = vld [vmem:[%s1660 + $0x130] sm:$0xff]
        %v1700 = vld [vmem:[%s1660 + $0x138] sm:$0xff]
        %v1701 = vld [vmem:[%s1660 + $0x140] sm:$0xff]
        %v1702 = vld [vmem:[%s1660 + $0x148] sm:$0xff]
        %v1703 = vld [vmem:[%s1660 + $0x150] sm:$0xff]
        %v1704 = vld [vmem:[%s1660 + $0x158] sm:$0xff]
        %v1705 = vld [vmem:[%s1660 + $0x160] sm:$0xff]
        %v1706 = vld [vmem:[%s1660 + $0x168] sm:$0xff]
        %v1707 = vld [vmem:[%s1660 + $0x170] sm:$0xff]
        %v1708 = vld [vmem:[%s1660 + $0x178] sm:$0xff]
        %v1710 = vsel %vm954, %v1652, 0
        %v1713 = vsel %vm954, %v1657, 0
        %1715 = vmatprep.subr.mxu0 0.0
        %1716 = vmatpush1.msra.mxu0 0.0
        %1717 = vmatprep.subr.mxu0 0.0
        %1718 = vmatpush1.msra.mxu0 0.0
        %1719 = vmatprep.subr.mxu0 0.0
        %1720 = vmatpush1.msra.mxu0 0.0
        %1721 = vmatprep.subr.mxu0 0.0
        %1722 = vmatpush1.msra.mxu0 0.0
        %1723 = vmatprep.subr.mxu0 %v1706
        %1724 = vmatpush1.msra.mxu0 %v1705
        %1725 = vmatprep.subr.mxu0 %v1702
        %1726 = vmatpush1.msra.mxu0 %v1701
        %1727 = vmatprep.subr.mxu0 %v1698
        %1728 = vmatpush1.msra.mxu0 %v1697
        %1729 = vmatprep.subr.mxu0 %v1694
        %1730 = vmatpush1.msra.mxu0 %v1693
        %1731 = vmatprep.subr.mxu0 %v1690
        %1732 = vmatpush1.msra.mxu0 %v1689
        %1733 = vmatprep.subr.mxu0 %v1686
        %1734 = vmatpush1.msra.mxu0 %v1685
        %1735 = vmatprep.subr.mxu0 %v1682
        %1736 = vmatpush1.msra.mxu0 %v1681
        %1737 = vmatprep.subr.mxu0 %v1678
        %1738 = vmatpush1.msra.mxu0 %v1677
        %1739 = vmatprep.subr.mxu0 %v1674
        %1740 = vmatpush1.msra.mxu0 %v1673
        %1741 = vmatprep.subr.mxu0 %v1670
        %1742 = vmatpush1.msra.mxu0 %v1669
        %1743 = vmatprep.subr.mxu0 %v1666
        %1744 = vmatpush1.msra.mxu0 %v1665
        %1745 = vmatprep.subr.mxu0 %v1662
        %1746 = vmatpush1.msra.mxu0 %v1661
        %1747 = vmatprep.subr.mxu0 0.0
        %1748 = vmatpush2.msra.mxu0 0.0
        %1749 = vmatprep.subr.mxu0 0.0
        %1750 = vmatpush2.msra.mxu0 0.0
        %1751 = vmatprep.subr.mxu0 0.0
        %1752 = vmatpush2.msra.mxu0 0.0
        %1753 = vmatprep.subr.mxu0 0.0
        %1754 = vmatpush2.msra.mxu0 0.0
        %1755 = vmatprep.subr.mxu0 0.0
        %1756 = vmatpush2.msra.mxu0 0.0
        %1757 = vmatprep.subr.mxu0 0.0
        %1758 = vmatpush2.msra.mxu0 0.0
        %1759 = vmatprep.subr.mxu0 0.0
        %1760 = vmatpush2.msra.mxu0 0.0
        %1761 = vmatprep.subr.mxu0 0.0
        %1762 = vmatpush2.msra.mxu0 0.0
        %1763 = vmatprep.subr.mxu0 0.0
        %1764 = vmatpush2.msra.mxu0 0.0
        %1765 = vmatprep.subr.mxu0 0.0
        %1766 = vmatpush2.msra.mxu0 0.0
        %1767 = vmatprep.subr.mxu0 0.0
        %1768 = vmatpush2.msra.mxu0 0.0
        %1769 = vmatprep.subr.mxu0 0.0
        %1770 = vmatpush2.msra.mxu0 0.0
        %1771 = vmatprep.subr.mxu0 0.0
        %1772 = vmatpush2.msra.mxu0 0.0
        %1773 = vmatprep.subr.mxu0 0.0
        %1774 = vmatpush2.msra.mxu0 0.0
        %1775 = vmatprep.subr.mxu0 0.0
        %1776 = vmatpush2.msra.mxu0 0.0
        %1777 = vmatprep.subr.mxu0 0.0
        %1778 = vmatpush2.msra.mxu0 0.0
        %1779 = vmatprep.mubr.f32.mxu0 0.0
        %1780 = vmatmul.mubr.f32.gmra.mxu0 %v1710
        %v1781 = vpop.f32.mrf.mxu0
        %v1782 = vadd.f32 0.0, %v1781
        %v1783 = vpop.f32.mrf.mxu0
        %v1784 = vadd.f32 0.0, %v1783
        %1785 = vmatprep.mubr.f32.mxu0 0.0
        %1786 = vmatmul.mubr.f32.gmra.mxu0 %v1713
        %v1787 = vpop.f32.mrf.mxu0
        %v1788 = vadd.f32 0.0, %v1787
        %v1789 = vpop.f32.mrf.mxu0
        %v1790 = vadd.f32 0.0, %v1789
        %1791 = vdwg.mxu0
        %1792 = vmatprep.subr.mxu0 0.0
        %1793 = vmatpush1.msra.mxu0 0.0
        %1794 = vmatprep.subr.mxu0 0.0
        %1795 = vmatpush1.msra.mxu0 0.0
        %1796 = vmatprep.subr.mxu0 0.0
        %1797 = vmatpush1.msra.mxu0 0.0
        %1798 = vmatprep.subr.mxu0 0.0
        %1799 = vmatpush1.msra.mxu0 0.0
        %1800 = vmatprep.subr.mxu0 %v1708
        %1801 = vmatpush1.msra.mxu0 %v1707
        %1802 = vmatprep.subr.mxu0 %v1704
        %1803 = vmatpush1.msra.mxu0 %v1703
        %1804 = vmatprep.subr.mxu0 %v1700
        %1805 = vmatpush1.msra.mxu0 %v1699
        %1806 = vmatprep.subr.mxu0 %v1696
        %1807 = vmatpush1.msra.mxu0 %v1695
        %1808 = vmatprep.subr.mxu0 %v1692
        %1809 = vmatpush1.msra.mxu0 %v1691
        %1810 = vmatprep.subr.mxu0 %v1688
        %1811 = vmatpush1.msra.mxu0 %v1687
        %1812 = vmatprep.subr.mxu0 %v1684
        %1813 = vmatpush1.msra.mxu0 %v1683
        %1814 = vmatprep.subr.mxu0 %v1680
        %1815 = vmatpush1.msra.mxu0 %v1679
        %1816 = vmatprep.subr.mxu0 %v1676
        %1817 = vmatpush1.msra.mxu0 %v1675
        %1818 = vmatprep.subr.mxu0 %v1672
        %1819 = vmatpush1.msra.mxu0 %v1671
        %1820 = vmatprep.subr.mxu0 %v1668
        %1821 = vmatpush1.msra.mxu0 %v1667
        %1822 = vmatprep.subr.mxu0 %v1664
        %1823 = vmatpush1.msra.mxu0 %v1663
        %1824 = vmatprep.subr.mxu0 0.0
        %1825 = vmatpush2.msra.mxu0 0.0
        %1826 = vmatprep.subr.mxu0 0.0
        %1827 = vmatpush2.msra.mxu0 0.0
        %1828 = vmatprep.subr.mxu0 0.0
        %1829 = vmatpush2.msra.mxu0 0.0
        %1830 = vmatprep.subr.mxu0 0.0
        %1831 = vmatpush2.msra.mxu0 0.0
        %1832 = vmatprep.subr.mxu0 0.0
        %1833 = vmatpush2.msra.mxu0 0.0
        %1834 = vmatprep.subr.mxu0 0.0
        %1835 = vmatpush2.msra.mxu0 0.0
        %1836 = vmatprep.subr.mxu0 0.0
        %1837 = vmatpush2.msra.mxu0 0.0
        %1838 = vmatprep.subr.mxu0 0.0
        %1839 = vmatpush2.msra.mxu0 0.0
        %1840 = vmatprep.subr.mxu0 0.0
        %1841 = vmatpush2.msra.mxu0 0.0
        %1842 = vmatprep.subr.mxu0 0.0
        %1843 = vmatpush2.msra.mxu0 0.0
        %1844 = vmatprep.subr.mxu0 0.0
        %1845 = vmatpush2.msra.mxu0 0.0
        %1846 = vmatprep.subr.mxu0 0.0
        %1847 = vmatpush2.msra.mxu0 0.0
        %1848 = vmatprep.subr.mxu0 0.0
        %1849 = vmatpush2.msra.mxu0 0.0
        %1850 = vmatprep.subr.mxu0 0.0
        %1851 = vmatpush2.msra.mxu0 0.0
        %1852 = vmatprep.subr.mxu0 0.0
        %1853 = vmatpush2.msra.mxu0 0.0
        %1854 = vmatprep.subr.mxu0 0.0
        %1855 = vmatpush2.msra.mxu0 0.0
        %1856 = vmatprep.mubr.f32.mxu0 0.0
        %1857 = vmatmul.mubr.f32.gmra.mxu0 %v1710
        %v1858 = vpop.f32.mrf.mxu0
        %v1859 = vadd.f32 0.0, %v1858
        %v1860 = vpop.f32.mrf.mxu0
        %v1861 = vadd.f32 0.0, %v1860
        %1862 = vmatprep.mubr.f32.mxu0 0.0
        %1863 = vmatmul.mubr.f32.gmra.mxu0 %v1713
        %v1864 = vpop.f32.mrf.mxu0
        %v1865 = vadd.f32 0.0, %v1864
        %v1866 = vpop.f32.mrf.mxu0
        %v1867 = vadd.f32 0.0, %v1866
        %1868 = vdwg.mxu0
        %v1869 = vadd.f32 %v1568, %v1782
        %v1870 = vadd.f32 %v1569, %v1784
        %v1871 = vadd.f32 %v1570, %v1859
        %v1872 = vadd.f32 %v1571, %v1861
        %v1873 = vadd.f32 %v1572, %v1788
        %v1874 = vadd.f32 %v1573, %v1790
        %v1875 = vadd.f32 %v1574, %v1865
        %v1876 = vadd.f32 %v1575, %v1867
        %v1877 = vld [vmem:[#allocation6] sm:$0xf]
        %v1879 = vlaneseq
        %v1880 = vshrl.u32 %v1879, 7
        %v1881 = vsub.s32 0, %v1880
        %v1882 = vrot.slane %v1877, %v1881
        %v1883 = vlaneseq
        %v1884 = vshrl.u32 %v1883, 7
        %v1885 = vsub.s32 1, %v1884
        %v1886 = vrot.slane %v1877, %v1885
        %v1887 = vlaneseq
        %v1888 = vshrl.u32 %v1887, 7
        %v1889 = vsub.s32 2, %v1888
        %v1890 = vrot.slane %v1877, %v1889
        %v1891 = vlaneseq
        %v1892 = vshrl.u32 %v1891, 7
        %v1893 = vsub.s32 3, %v1892
        %v1894 = vrot.slane %v1877, %v1893
        %v1899 = vadd.f32 %v1869, %v1882
        %v1900 = vadd.f32 %v1870, %v1886
        %v1901 = vadd.f32 %v1871, %v1890
        %v1902 = vadd.f32 %v1872, %v1894
        %v1903 = vadd.f32 %v1873, %v1882
        %v1904 = vadd.f32 %v1874, %v1886
        %v1905 = vadd.f32 %v1875, %v1890
        %v1906 = vadd.f32 %v1876, %v1894
        %v1907 = vmax.f32 %v1899, 0.0
        %v1908 = vmax.f32 %v1900, 0.0
        %v1909 = vmax.f32 %v1901, 0.0
        %v1910 = vmax.f32 %v1902, 0.0
        %v1911 = vmax.f32 %v1903, 0.0
        %v1912 = vmax.f32 %v1904, 0.0
        %v1913 = vmax.f32 %v1905, 0.0
        %v1914 = vmax.f32 %v1906, 0.0
        %v1915 = vld [vmem:[#allocation7] sm:$0xff]
        %vm1916 = vcmask 130048
        %v1918 = vsel %vm1916, %v1915, 0
        %1920 = vmatprep.subr.mxu0 0.0
        %1921 = vmatpush1.msra.mxu0 0.0
        %1922 = vmatprep.subr.mxu0 0.0
        %1923 = vmatpush1.msra.mxu0 0.0
        %1924 = vmatprep.subr.mxu0 0.0
        %1925 = vmatpush1.msra.mxu0 0.0
        %1926 = vmatprep.subr.mxu0 0.0
        %1927 = vmatpush1.msra.mxu0 0.0
        %1928 = vmatprep.subr.mxu0 0.0
        %1929 = vmatpush1.msra.mxu0 0.0
        %1930 = vmatprep.subr.mxu0 0.0
        %1931 = vmatpush1.msra.mxu0 0.0
        %1932 = vmatprep.subr.mxu0 0.0
        %1933 = vmatpush1.msra.mxu0 0.0
        %1934 = vmatprep.subr.mxu0 0.0
        %1935 = vmatpush1.msra.mxu0 0.0
        %1936 = vmatprep.subr.mxu0 0.0
        %1937 = vmatpush1.msra.mxu0 0.0
        %1938 = vmatprep.subr.mxu0 0.0
        %1939 = vmatpush1.msra.mxu0 0.0
        %1940 = vmatprep.subr.mxu0 0.0
        %1941 = vmatpush1.msra.mxu0 0.0
        %1942 = vmatprep.subr.mxu0 0.0
        %1943 = vmatpush1.msra.mxu0 0.0
        %1944 = vmatprep.subr.mxu0 0.0
        %1945 = vmatpush1.msra.mxu0 0.0
        %1946 = vmatprep.subr.mxu0 0.0
        %1947 = vmatpush1.msra.mxu0 0.0
        %1948 = vmatprep.subr.mxu0 %v1912
        %1949 = vmatpush1.msra.mxu0 %v1911
        %1950 = vmatprep.subr.mxu0 %v1908
        %1951 = vmatpush1.msra.mxu0 %v1907
        %1952 = vmatprep.subr.mxu0 0.0
        %1953 = vmatpush2.msra.mxu0 0.0
        %1954 = vmatprep.subr.mxu0 0.0
        %1955 = vmatpush2.msra.mxu0 0.0
        %1956 = vmatprep.subr.mxu0 0.0
        %1957 = vmatpush2.msra.mxu0 0.0
        %1958 = vmatprep.subr.mxu0 0.0
        %1959 = vmatpush2.msra.mxu0 0.0
        %1960 = vmatprep.subr.mxu0 0.0
        %1961 = vmatpush2.msra.mxu0 0.0
        %1962 = vmatprep.subr.mxu0 0.0
        %1963 = vmatpush2.msra.mxu0 0.0
        %1964 = vmatprep.subr.mxu0 0.0
        %1965 = vmatpush2.msra.mxu0 0.0
        %1966 = vmatprep.subr.mxu0 0.0
        %1967 = vmatpush2.msra.mxu0 0.0
        %1968 = vmatprep.subr.mxu0 0.0
        %1969 = vmatpush2.msra.mxu0 0.0
        %1970 = vmatprep.subr.mxu0 0.0
        %1971 = vmatpush2.msra.mxu0 0.0
        %1972 = vmatprep.subr.mxu0 0.0
        %1973 = vmatpush2.msra.mxu0 0.0
        %1974 = vmatprep.subr.mxu0 0.0
        %1975 = vmatpush2.msra.mxu0 0.0
        %1976 = vmatprep.subr.mxu0 0.0
        %1977 = vmatpush2.msra.mxu0 0.0
        %1978 = vmatprep.subr.mxu0 0.0
        %1979 = vmatpush2.msra.mxu0 0.0
        %1980 = vmatprep.subr.mxu0 0.0
        %1981 = vmatpush2.msra.mxu0 0.0
        %1982 = vmatprep.subr.mxu0 0.0
        %1983 = vmatpush2.msra.mxu0 0.0
        %1984 = vmatprep.mubr.f32.mxu0 0.0
        %1985 = vmatmul.mubr.f32.gmra.mxu0 %v1918
        %v1986 = vpop.f32.mrf.mxu0
        %v1987 = vadd.f32 0.0, %v1986
        %v1988 = vpop.f32.mrf.mxu0
        %v1989 = vadd.f32 0.0, %v1988
        %1990 = vdwg.mxu0
        %1991 = vmatprep.subr.mxu0 0.0
        %1992 = vmatpush1.msra.mxu0 0.0
        %1993 = vmatprep.subr.mxu0 0.0
        %1994 = vmatpush1.msra.mxu0 0.0
        %1995 = vmatprep.subr.mxu0 0.0
        %1996 = vmatpush1.msra.mxu0 0.0
        %1997 = vmatprep.subr.mxu0 0.0
        %1998 = vmatpush1.msra.mxu0 0.0
        %1999 = vmatprep.subr.mxu0 0.0
        %2000 = vmatpush1.msra.mxu0 0.0
        %2001 = vmatprep.subr.mxu0 0.0
        %2002 = vmatpush1.msra.mxu0 0.0
        %2003 = vmatprep.subr.mxu0 0.0
        %2004 = vmatpush1.msra.mxu0 0.0
        %2005 = vmatprep.subr.mxu0 0.0
        %2006 = vmatpush1.msra.mxu0 0.0
        %2007 = vmatprep.subr.mxu0 0.0
        %2008 = vmatpush1.msra.mxu0 0.0
        %2009 = vmatprep.subr.mxu0 0.0
        %2010 = vmatpush1.msra.mxu0 0.0
        %2011 = vmatprep.subr.mxu0 0.0
        %2012 = vmatpush1.msra.mxu0 0.0
        %2013 = vmatprep.subr.mxu0 0.0
        %2014 = vmatpush1.msra.mxu0 0.0
        %2015 = vmatprep.subr.mxu0 0.0
        %2016 = vmatpush1.msra.mxu0 0.0
        %2017 = vmatprep.subr.mxu0 0.0
        %2018 = vmatpush1.msra.mxu0 0.0
        %2019 = vmatprep.subr.mxu0 %v1914
        %2020 = vmatpush1.msra.mxu0 %v1913
        %2021 = vmatprep.subr.mxu0 %v1910
        %2022 = vmatpush1.msra.mxu0 %v1909
        %2023 = vmatprep.subr.mxu0 0.0
        %2024 = vmatpush2.msra.mxu0 0.0
        %2025 = vmatprep.subr.mxu0 0.0
        %2026 = vmatpush2.msra.mxu0 0.0
        %2027 = vmatprep.subr.mxu0 0.0
        %2028 = vmatpush2.msra.mxu0 0.0
        %2029 = vmatprep.subr.mxu0 0.0
        %2030 = vmatpush2.msra.mxu0 0.0
        %2031 = vmatprep.subr.mxu0 0.0
        %2032 = vmatpush2.msra.mxu0 0.0
        %2033 = vmatprep.subr.mxu0 0.0
        %2034 = vmatpush2.msra.mxu0 0.0
        %2035 = vmatprep.subr.mxu0 0.0
        %2036 = vmatpush2.msra.mxu0 0.0
        %2037 = vmatprep.subr.mxu0 0.0
        %2038 = vmatpush2.msra.mxu0 0.0
        %2039 = vmatprep.subr.mxu0 0.0
        %2040 = vmatpush2.msra.mxu0 0.0
        %2041 = vmatprep.subr.mxu0 0.0
        %2042 = vmatpush2.msra.mxu0 0.0
        %2043 = vmatprep.subr.mxu0 0.0
        %2044 = vmatpush2.msra.mxu0 0.0
        %2045 = vmatprep.subr.mxu0 0.0
        %2046 = vmatpush2.msra.mxu0 0.0
        %2047 = vmatprep.subr.mxu0 0.0
        %2048 = vmatpush2.msra.mxu0 0.0
        %2049 = vmatprep.subr.mxu0 0.0
        %2050 = vmatpush2.msra.mxu0 0.0
        %2051 = vmatprep.subr.mxu0 0.0
        %2052 = vmatpush2.msra.mxu0 0.0
        %2053 = vmatprep.subr.mxu0 0.0
        %2054 = vmatpush2.msra.mxu0 0.0
        %2055 = vmatprep.mubr.f32.mxu0 0.0
        %2056 = vmatmul.mubr.f32.gmra.mxu0 %v1918
        %v2057 = vpop.f32.mrf.mxu0
        %v2058 = vadd.f32 0.0, %v2057
        %v2059 = vpop.f32.mrf.mxu0
        %v2060 = vadd.f32 0.0, %v2059
        %2061 = vdwg.mxu0
        %v2062 = vld [vmem:[#allocation9] sm:$0xff]
        %v2063 = vld [vmem:[#allocation9 + $0x8] sm:$0xff]
        %v2064 = vld [vmem:[#allocation9 + $0x10] sm:$0xff]
        %v2065 = vld [vmem:[#allocation9 + $0x18] sm:$0xff]
        %v2066 = vld [vmem:[#allocation9 + $0x20] sm:$0xff]
        %v2067 = vld [vmem:[#allocation9 + $0x28] sm:$0xff]
        %v2068 = vld [vmem:[#allocation9 + $0x30] sm:$0xff]
        %v2069 = vld [vmem:[#allocation9 + $0x38] sm:$0xff]
        %v2070 = vld [vmem:[#allocation9 + $0x40] sm:$0xff]
        %v2071 = vld [vmem:[#allocation9 + $0x48] sm:$0xff]
        %v2072 = vld [vmem:[#allocation9 + $0x50] sm:$0xff]
        %v2073 = vld [vmem:[#allocation9 + $0x58] sm:$0xff]
        %v2074 = vld [vmem:[#allocation9 + $0x60] sm:$0xff]
        %v2075 = vld [vmem:[#allocation9 + $0x68] sm:$0xff]
        %v2076 = vld [vmem:[#allocation9 + $0x70] sm:$0xff]
        %v2077 = vld [vmem:[#allocation9 + $0x78] sm:$0xff]
        %v2078 = vld [vmem:[#allocation9 + $0x80] sm:$0xff]
        %v2079 = vld [vmem:[#allocation9 + $0x88] sm:$0xff]
        %v2080 = vld [vmem:[#allocation9 + $0x90] sm:$0xff]
        %v2081 = vld [vmem:[#allocation9 + $0x98] sm:$0xff]
        %v2082 = vld [vmem:[#allocation9 + $0xa0] sm:$0xff]
        %v2083 = vld [vmem:[#allocation9 + $0xa8] sm:$0xff]
        %v2084 = vld [vmem:[#allocation9 + $0xb0] sm:$0xff]
        %v2085 = vld [vmem:[#allocation9 + $0xb8] sm:$0xff]
        %v2086 = vld [vmem:[#allocation9 + $0xc0] sm:$0xff]
        %v2087 = vld [vmem:[#allocation9 + $0xc8] sm:$0xff]
        %v2088 = vld [vmem:[#allocation9 + $0xd0] sm:$0xff]
        %v2089 = vld [vmem:[#allocation9 + $0xd8] sm:$0xff]
        %v2090 = vld [vmem:[#allocation9 + $0xe0] sm:$0xff]
        %v2091 = vld [vmem:[#allocation9 + $0xe8] sm:$0xff]
        %v2092 = vld [vmem:[#allocation9 + $0xf0] sm:$0xff]
        %v2093 = vld [vmem:[#allocation9 + $0xf8] sm:$0xff]
        %v2094 = vld [vmem:[#allocation9 + $0x100] sm:$0xff]
        %v2095 = vld [vmem:[#allocation9 + $0x108] sm:$0xff]
        %v2096 = vld [vmem:[#allocation9 + $0x110] sm:$0xff]
        %v2097 = vld [vmem:[#allocation9 + $0x118] sm:$0xff]
        %v2098 = vld [vmem:[#allocation9 + $0x120] sm:$0xff]
        %v2099 = vld [vmem:[#allocation9 + $0x128] sm:$0xff]
        %v2100 = vld [vmem:[#allocation9 + $0x130] sm:$0xff]
        %v2101 = vld [vmem:[#allocation9 + $0x138] sm:$0xff]
        %v2102 = vld [vmem:[#allocation9 + $0x140] sm:$0xff]
        %v2103 = vld [vmem:[#allocation9 + $0x148] sm:$0xff]
        %v2104 = vld [vmem:[#allocation9 + $0x150] sm:$0xff]
        %v2105 = vld [vmem:[#allocation9 + $0x158] sm:$0xff]
        %v2106 = vld [vmem:[#allocation9 + $0x160] sm:$0xff]
        %v2107 = vld [vmem:[#allocation9 + $0x168] sm:$0xff]
        %v2108 = vld [vmem:[#allocation9 + $0x170] sm:$0xff]
        %v2109 = vld [vmem:[#allocation9 + $0x178] sm:$0xff]
        %v2110 = vld [vmem:[#allocation9 + $0x180] sm:$0xff]
        %v2111 = vld [vmem:[#allocation9 + $0x188] sm:$0xff]
        %v2112 = vld [vmem:[#allocation9 + $0x190] sm:$0xff]
        %v2113 = vld [vmem:[#allocation9 + $0x198] sm:$0xff]
        %v2114 = vld [vmem:[#allocation9 + $0x1a0] sm:$0xff]
        %v2115 = vld [vmem:[#allocation9 + $0x1a8] sm:$0xff]
        %v2116 = vld [vmem:[#allocation9 + $0x1b0] sm:$0xff]
        %v2117 = vld [vmem:[#allocation9 + $0x1b8] sm:$0xff]
        %v2118 = vld [vmem:[#allocation9 + $0x1c0] sm:$0xff]
        %v2119 = vld [vmem:[#allocation9 + $0x1c8] sm:$0xff]
        %v2120 = vld [vmem:[#allocation9 + $0x1d0] sm:$0xff]
        %v2121 = vld [vmem:[#allocation9 + $0x1d8] sm:$0xff]
        %v2122 = vld [vmem:[#allocation9 + $0x1e0] sm:$0xff]
        %v2123 = vld [vmem:[#allocation9 + $0x1e8] sm:$0xff]
        %v2124 = vld [vmem:[#allocation9 + $0x1f0] sm:$0xff]
        %v2125 = vld [vmem:[#allocation9 + $0x1f8] sm:$0xff]
        %v2126 = vld [vmem:[#allocation9 + $0x200] sm:$0xff]
        %v2127 = vld [vmem:[#allocation9 + $0x208] sm:$0xff]
        %v2128 = vld [vmem:[#allocation9 + $0x210] sm:$0xff]
        %v2129 = vld [vmem:[#allocation9 + $0x218] sm:$0xff]
        %v2130 = vld [vmem:[#allocation9 + $0x220] sm:$0xff]
        %v2131 = vld [vmem:[#allocation9 + $0x228] sm:$0xff]
        %v2132 = vld [vmem:[#allocation9 + $0x230] sm:$0xff]
        %v2133 = vld [vmem:[#allocation9 + $0x238] sm:$0xff]
        %v2134 = vld [vmem:[#allocation9 + $0x240] sm:$0xff]
        %v2135 = vld [vmem:[#allocation9 + $0x248] sm:$0xff]
        %v2136 = vld [vmem:[#allocation9 + $0x250] sm:$0xff]
        %v2137 = vld [vmem:[#allocation9 + $0x258] sm:$0xff]
        %v2138 = vld [vmem:[#allocation9 + $0x260] sm:$0xff]
        %v2139 = vld [vmem:[#allocation9 + $0x268] sm:$0xff]
        %v2140 = vld [vmem:[#allocation9 + $0x270] sm:$0xff]
        %v2141 = vld [vmem:[#allocation9 + $0x278] sm:$0xff]
        %v2142 = vld [vmem:[#allocation9 + $0x280] sm:$0xff]
        %v2143 = vld [vmem:[#allocation9 + $0x288] sm:$0xff]
        %v2144 = vld [vmem:[#allocation9 + $0x290] sm:$0xff]
        %v2145 = vld [vmem:[#allocation9 + $0x298] sm:$0xff]
        %v2146 = vld [vmem:[#allocation9 + $0x2a0] sm:$0xff]
        %v2147 = vld [vmem:[#allocation9 + $0x2a8] sm:$0xff]
        %v2148 = vld [vmem:[#allocation9 + $0x2b0] sm:$0xff]
        %v2149 = vld [vmem:[#allocation9 + $0x2b8] sm:$0xff]
        %v2150 = vld [vmem:[#allocation9 + $0x2c0] sm:$0xff]
        %v2151 = vld [vmem:[#allocation9 + $0x2c8] sm:$0xff]
        %v2152 = vld [vmem:[#allocation9 + $0x2d0] sm:$0xff]
        %v2153 = vld [vmem:[#allocation9 + $0x2d8] sm:$0xff]
        %v2154 = vld [vmem:[#allocation9 + $0x2e0] sm:$0xff]
        %v2155 = vld [vmem:[#allocation9 + $0x2e8] sm:$0xff]
        %v2156 = vld [vmem:[#allocation9 + $0x2f0] sm:$0xff]
        %v2157 = vld [vmem:[#allocation9 + $0x2f8] sm:$0xff]
        %v2158 = vld [vmem:[#allocation9 + $0x300] sm:$0xff]
        %v2159 = vld [vmem:[#allocation9 + $0x308] sm:$0xff]
        %v2160 = vld [vmem:[#allocation9 + $0x310] sm:$0xff]
        %v2161 = vld [vmem:[#allocation9 + $0x318] sm:$0xff]
        %v2162 = vld [vmem:[#allocation9 + $0x320] sm:$0xff]
        %v2163 = vld [vmem:[#allocation9 + $0x328] sm:$0xff]
        %v2164 = vld [vmem:[#allocation9 + $0x330] sm:$0xff]
        %v2165 = vld [vmem:[#allocation9 + $0x338] sm:$0xff]
        %v2166 = vld [vmem:[#allocation9 + $0x340] sm:$0xff]
        %v2167 = vld [vmem:[#allocation9 + $0x348] sm:$0xff]
        %v2168 = vld [vmem:[#allocation9 + $0x350] sm:$0xff]
        %v2169 = vld [vmem:[#allocation9 + $0x358] sm:$0xff]
        %v2170 = vld [vmem:[#allocation9 + $0x360] sm:$0xff]
        %v2171 = vld [vmem:[#allocation9 + $0x368] sm:$0xff]
        %v2172 = vld [vmem:[#allocation9 + $0x370] sm:$0xff]
        %v2173 = vld [vmem:[#allocation9 + $0x378] sm:$0xff]
        %v2174 = vld [vmem:[#allocation9 + $0x380] sm:$0xff]
        %v2175 = vld [vmem:[#allocation9 + $0x388] sm:$0xff]
        %v2176 = vld [vmem:[#allocation9 + $0x390] sm:$0xff]
        %v2177 = vld [vmem:[#allocation9 + $0x398] sm:$0xff]
        %v2178 = vld [vmem:[#allocation9 + $0x3a0] sm:$0xff]
        %v2179 = vld [vmem:[#allocation9 + $0x3a8] sm:$0xff]
        %v2180 = vld [vmem:[#allocation9 + $0x3b0] sm:$0xff]
        %v2181 = vld [vmem:[#allocation9 + $0x3b8] sm:$0xff]
        %v2182 = vld [vmem:[#allocation9 + $0x3c0] sm:$0xff]
        %v2183 = vld [vmem:[#allocation9 + $0x3c8] sm:$0xff]
        %v2184 = vld [vmem:[#allocation9 + $0x3d0] sm:$0xff]
        %v2185 = vld [vmem:[#allocation9 + $0x3d8] sm:$0xff]
        %v2186 = vld [vmem:[#allocation9 + $0x3e0] sm:$0xff]
        %v2187 = vld [vmem:[#allocation9 + $0x3e8] sm:$0xff]
        %v2188 = vld [vmem:[#allocation9 + $0x3f0] sm:$0xff]
        %v2189 = vld [vmem:[#allocation9 + $0x3f8] sm:$0xff]
        %s2190 = scalar_lea.vmem [#allocation7], 8
        %v2191 = vld [vmem:[%s2190] sm:$0xff]
        %v2193 = vsel %vm1916, %v2191, 0
        %2195 = vmatprep.subr.mxu0 0.0
        %2196 = vmatpush1.msra.mxu0 0.0
        %2197 = vmatprep.subr.mxu0 0.0
        %2198 = vmatpush1.msra.mxu0 0.0
        %2199 = vmatprep.subr.mxu0 0.0
        %2200 = vmatpush1.msra.mxu0 0.0
        %2201 = vmatprep.subr.mxu0 0.0
        %2202 = vmatpush1.msra.mxu0 0.0
        %2203 = vmatprep.subr.mxu0 0.0
        %2204 = vmatpush1.msra.mxu0 0.0
        %2205 = vmatprep.subr.mxu0 0.0
        %2206 = vmatpush1.msra.mxu0 0.0
        %2207 = vmatprep.subr.mxu0 0.0
        %2208 = vmatpush1.msra.mxu0 0.0
        %2209 = vmatprep.subr.mxu0 0.0
        %2210 = vmatpush1.msra.mxu0 0.0
        %2211 = vmatprep.subr.mxu0 0.0
        %2212 = vmatpush1.msra.mxu0 0.0
        %2213 = vmatprep.subr.mxu0 0.0
        %2214 = vmatpush1.msra.mxu0 0.0
        %2215 = vmatprep.subr.mxu0 0.0
        %2216 = vmatpush1.msra.mxu0 0.0
        %2217 = vmatprep.subr.mxu0 0.0
        %2218 = vmatpush1.msra.mxu0 0.0
        %2219 = vmatprep.subr.mxu0 0.0
        %2220 = vmatpush1.msra.mxu0 0.0
        %2221 = vmatprep.subr.mxu0 0.0
        %2222 = vmatpush1.msra.mxu0 0.0
        %2223 = vmatprep.subr.mxu0 %v1912
        %2224 = vmatpush1.msra.mxu0 %v1911
        %2225 = vmatprep.subr.mxu0 %v1908
        %2226 = vmatpush1.msra.mxu0 %v1907
        %2227 = vmatprep.subr.mxu0 0.0
        %2228 = vmatpush2.msra.mxu0 0.0
        %2229 = vmatprep.subr.mxu0 0.0
        %2230 = vmatpush2.msra.mxu0 0.0
        %2231 = vmatprep.subr.mxu0 0.0
        %2232 = vmatpush2.msra.mxu0 0.0
        %2233 = vmatprep.subr.mxu0 0.0
        %2234 = vmatpush2.msra.mxu0 0.0
        %2235 = vmatprep.subr.mxu0 0.0
        %2236 = vmatpush2.msra.mxu0 0.0
        %2237 = vmatprep.subr.mxu0 0.0
        %2238 = vmatpush2.msra.mxu0 0.0
        %2239 = vmatprep.subr.mxu0 0.0
        %2240 = vmatpush2.msra.mxu0 0.0
        %2241 = vmatprep.subr.mxu0 0.0
        %2242 = vmatpush2.msra.mxu0 0.0
        %2243 = vmatprep.subr.mxu0 0.0
        %2244 = vmatpush2.msra.mxu0 0.0
        %2245 = vmatprep.subr.mxu0 0.0
        %2246 = vmatpush2.msra.mxu0 0.0
        %2247 = vmatprep.subr.mxu0 0.0
        %2248 = vmatpush2.msra.mxu0 0.0
        %2249 = vmatprep.subr.mxu0 0.0
        %2250 = vmatpush2.msra.mxu0 0.0
        %2251 = vmatprep.subr.mxu0 0.0
        %2252 = vmatpush2.msra.mxu0 0.0
        %2253 = vmatprep.subr.mxu0 0.0
        %2254 = vmatpush2.msra.mxu0 0.0
        %2255 = vmatprep.subr.mxu0 0.0
        %2256 = vmatpush2.msra.mxu0 0.0
        %2257 = vmatprep.subr.mxu0 0.0
        %2258 = vmatpush2.msra.mxu0 0.0
        %2259 = vmatprep.mubr.f32.mxu0 0.0
        %2260 = vmatmul.mubr.f32.gmra.mxu0 %v2193
        %v2261 = vpop.f32.mrf.mxu0
        %v2262 = vadd.f32 0.0, %v2261
        %v2263 = vpop.f32.mrf.mxu0
        %v2264 = vadd.f32 0.0, %v2263
        %2265 = vdwg.mxu0
        %2266 = vmatprep.subr.mxu0 0.0
        %2267 = vmatpush1.msra.mxu0 0.0
        %2268 = vmatprep.subr.mxu0 0.0
        %2269 = vmatpush1.msra.mxu0 0.0
        %2270 = vmatprep.subr.mxu0 0.0
        %2271 = vmatpush1.msra.mxu0 0.0
        %2272 = vmatprep.subr.mxu0 0.0
        %2273 = vmatpush1.msra.mxu0 0.0
        %2274 = vmatprep.subr.mxu0 0.0
        %2275 = vmatpush1.msra.mxu0 0.0
        %2276 = vmatprep.subr.mxu0 0.0
        %2277 = vmatpush1.msra.mxu0 0.0
        %2278 = vmatprep.subr.mxu0 0.0
        %2279 = vmatpush1.msra.mxu0 0.0
        %2280 = vmatprep.subr.mxu0 0.0
        %2281 = vmatpush1.msra.mxu0 0.0
        %2282 = vmatprep.subr.mxu0 0.0
        %2283 = vmatpush1.msra.mxu0 0.0
        %2284 = vmatprep.subr.mxu0 0.0
        %2285 = vmatpush1.msra.mxu0 0.0
        %2286 = vmatprep.subr.mxu0 0.0
        %2287 = vmatpush1.msra.mxu0 0.0
        %2288 = vmatprep.subr.mxu0 0.0
        %2289 = vmatpush1.msra.mxu0 0.0
        %2290 = vmatprep.subr.mxu0 0.0
        %2291 = vmatpush1.msra.mxu0 0.0
        %2292 = vmatprep.subr.mxu0 0.0
        %2293 = vmatpush1.msra.mxu0 0.0
        %2294 = vmatprep.subr.mxu0 %v1914
        %2295 = vmatpush1.msra.mxu0 %v1913
        %2296 = vmatprep.subr.mxu0 %v1910
        %2297 = vmatpush1.msra.mxu0 %v1909
        %2298 = vmatprep.subr.mxu0 0.0
        %2299 = vmatpush2.msra.mxu0 0.0
        %2300 = vmatprep.subr.mxu0 0.0
        %2301 = vmatpush2.msra.mxu0 0.0
        %2302 = vmatprep.subr.mxu0 0.0
        %2303 = vmatpush2.msra.mxu0 0.0
        %2304 = vmatprep.subr.mxu0 0.0
        %2305 = vmatpush2.msra.mxu0 0.0
        %2306 = vmatprep.subr.mxu0 0.0
        %2307 = vmatpush2.msra.mxu0 0.0
        %2308 = vmatprep.subr.mxu0 0.0
        %2309 = vmatpush2.msra.mxu0 0.0
        %2310 = vmatprep.subr.mxu0 0.0
        %2311 = vmatpush2.msra.mxu0 0.0
        %2312 = vmatprep.subr.mxu0 0.0
        %2313 = vmatpush2.msra.mxu0 0.0
        %2314 = vmatprep.subr.mxu0 0.0
        %2315 = vmatpush2.msra.mxu0 0.0
        %2316 = vmatprep.subr.mxu0 0.0
        %2317 = vmatpush2.msra.mxu0 0.0
        %2318 = vmatprep.subr.mxu0 0.0
        %2319 = vmatpush2.msra.mxu0 0.0
        %2320 = vmatprep.subr.mxu0 0.0
        %2321 = vmatpush2.msra.mxu0 0.0
        %2322 = vmatprep.subr.mxu0 0.0
        %2323 = vmatpush2.msra.mxu0 0.0
        %2324 = vmatprep.subr.mxu0 0.0
        %2325 = vmatpush2.msra.mxu0 0.0
        %2326 = vmatprep.subr.mxu0 0.0
        %2327 = vmatpush2.msra.mxu0 0.0
        %2328 = vmatprep.subr.mxu0 0.0
        %2329 = vmatpush2.msra.mxu0 0.0
        %2330 = vmatprep.mubr.f32.mxu0 0.0
        %2331 = vmatmul.mubr.f32.gmra.mxu0 %v2193
        %v2332 = vpop.f32.mrf.mxu0
        %v2333 = vadd.f32 0.0, %v2332
        %v2334 = vpop.f32.mrf.mxu0
        %v2335 = vadd.f32 0.0, %v2334
        %2336 = vdwg.mxu0
        %s2337 = scalar_lea.vmem [#allocation9], 1024
        %v2338 = vld [vmem:[%s2337] sm:$0xff]
        %v2339 = vld [vmem:[%s2337 + $0x8] sm:$0xff]
        %v2340 = vld [vmem:[%s2337 + $0x10] sm:$0xff]
        %v2341 = vld [vmem:[%s2337 + $0x18] sm:$0xff]
        %v2342 = vld [vmem:[%s2337 + $0x20] sm:$0xff]
        %v2343 = vld [vmem:[%s2337 + $0x28] sm:$0xff]
        %v2344 = vld [vmem:[%s2337 + $0x30] sm:$0xff]
        %v2345 = vld [vmem:[%s2337 + $0x38] sm:$0xff]
        %v2346 = vld [vmem:[%s2337 + $0x40] sm:$0xff]
        %v2347 = vld [vmem:[%s2337 + $0x48] sm:$0xff]
        %v2348 = vld [vmem:[%s2337 + $0x50] sm:$0xff]
        %v2349 = vld [vmem:[%s2337 + $0x58] sm:$0xff]
        %v2350 = vld [vmem:[%s2337 + $0x60] sm:$0xff]
        %v2351 = vld [vmem:[%s2337 + $0x68] sm:$0xff]
        %v2352 = vld [vmem:[%s2337 + $0x70] sm:$0xff]
        %v2353 = vld [vmem:[%s2337 + $0x78] sm:$0xff]
        %v2354 = vld [vmem:[%s2337 + $0x80] sm:$0xff]
        %v2355 = vld [vmem:[%s2337 + $0x88] sm:$0xff]
        %v2356 = vld [vmem:[%s2337 + $0x90] sm:$0xff]
        %v2357 = vld [vmem:[%s2337 + $0x98] sm:$0xff]
        %v2358 = vld [vmem:[%s2337 + $0xa0] sm:$0xff]
        %v2359 = vld [vmem:[%s2337 + $0xa8] sm:$0xff]
        %v2360 = vld [vmem:[%s2337 + $0xb0] sm:$0xff]
        %v2361 = vld [vmem:[%s2337 + $0xb8] sm:$0xff]
        %v2362 = vld [vmem:[%s2337 + $0xc0] sm:$0xff]
        %v2363 = vld [vmem:[%s2337 + $0xc8] sm:$0xff]
        %v2364 = vld [vmem:[%s2337 + $0xd0] sm:$0xff]
        %v2365 = vld [vmem:[%s2337 + $0xd8] sm:$0xff]
        %v2366 = vld [vmem:[%s2337 + $0xe0] sm:$0xff]
        %v2367 = vld [vmem:[%s2337 + $0xe8] sm:$0xff]
        %v2368 = vld [vmem:[%s2337 + $0xf0] sm:$0xff]
        %v2369 = vld [vmem:[%s2337 + $0xf8] sm:$0xff]
        %v2370 = vld [vmem:[%s2337 + $0x100] sm:$0xff]
        %v2371 = vld [vmem:[%s2337 + $0x108] sm:$0xff]
        %v2372 = vld [vmem:[%s2337 + $0x110] sm:$0xff]
        %v2373 = vld [vmem:[%s2337 + $0x118] sm:$0xff]
        %v2374 = vld [vmem:[%s2337 + $0x120] sm:$0xff]
        %v2375 = vld [vmem:[%s2337 + $0x128] sm:$0xff]
        %v2376 = vld [vmem:[%s2337 + $0x130] sm:$0xff]
        %v2377 = vld [vmem:[%s2337 + $0x138] sm:$0xff]
        %v2378 = vld [vmem:[%s2337 + $0x140] sm:$0xff]
        %v2379 = vld [vmem:[%s2337 + $0x148] sm:$0xff]
        %v2380 = vld [vmem:[%s2337 + $0x150] sm:$0xff]
        %v2381 = vld [vmem:[%s2337 + $0x158] sm:$0xff]
        %v2382 = vld [vmem:[%s2337 + $0x160] sm:$0xff]
        %v2383 = vld [vmem:[%s2337 + $0x168] sm:$0xff]
        %v2384 = vld [vmem:[%s2337 + $0x170] sm:$0xff]
        %v2385 = vld [vmem:[%s2337 + $0x178] sm:$0xff]
        %v2386 = vld [vmem:[%s2337 + $0x180] sm:$0xff]
        %v2387 = vld [vmem:[%s2337 + $0x188] sm:$0xff]
        %v2388 = vld [vmem:[%s2337 + $0x190] sm:$0xff]
        %v2389 = vld [vmem:[%s2337 + $0x198] sm:$0xff]
        %v2390 = vld [vmem:[%s2337 + $0x1a0] sm:$0xff]
        %v2391 = vld [vmem:[%s2337 + $0x1a8] sm:$0xff]
        %v2392 = vld [vmem:[%s2337 + $0x1b0] sm:$0xff]
        %v2393 = vld [vmem:[%s2337 + $0x1b8] sm:$0xff]
        %v2394 = vld [vmem:[%s2337 + $0x1c0] sm:$0xff]
        %v2395 = vld [vmem:[%s2337 + $0x1c8] sm:$0xff]
        %v2396 = vld [vmem:[%s2337 + $0x1d0] sm:$0xff]
        %v2397 = vld [vmem:[%s2337 + $0x1d8] sm:$0xff]
        %v2398 = vld [vmem:[%s2337 + $0x1e0] sm:$0xff]
        %v2399 = vld [vmem:[%s2337 + $0x1e8] sm:$0xff]
        %v2400 = vld [vmem:[%s2337 + $0x1f0] sm:$0xff]
        %v2401 = vld [vmem:[%s2337 + $0x1f8] sm:$0xff]
        %v2402 = vld [vmem:[%s2337 + $0x200] sm:$0xff]
        %v2403 = vld [vmem:[%s2337 + $0x208] sm:$0xff]
        %v2404 = vld [vmem:[%s2337 + $0x210] sm:$0xff]
        %v2405 = vld [vmem:[%s2337 + $0x218] sm:$0xff]
        %v2406 = vld [vmem:[%s2337 + $0x220] sm:$0xff]
        %v2407 = vld [vmem:[%s2337 + $0x228] sm:$0xff]
        %v2408 = vld [vmem:[%s2337 + $0x230] sm:$0xff]
        %v2409 = vld [vmem:[%s2337 + $0x238] sm:$0xff]
        %v2410 = vld [vmem:[%s2337 + $0x240] sm:$0xff]
        %v2411 = vld [vmem:[%s2337 + $0x248] sm:$0xff]
        %v2412 = vld [vmem:[%s2337 + $0x250] sm:$0xff]
        %v2413 = vld [vmem:[%s2337 + $0x258] sm:$0xff]
        %v2414 = vld [vmem:[%s2337 + $0x260] sm:$0xff]
        %v2415 = vld [vmem:[%s2337 + $0x268] sm:$0xff]
        %v2416 = vld [vmem:[%s2337 + $0x270] sm:$0xff]
        %v2417 = vld [vmem:[%s2337 + $0x278] sm:$0xff]
        %v2418 = vld [vmem:[%s2337 + $0x280] sm:$0xff]
        %v2419 = vld [vmem:[%s2337 + $0x288] sm:$0xff]
        %v2420 = vld [vmem:[%s2337 + $0x290] sm:$0xff]
        %v2421 = vld [vmem:[%s2337 + $0x298] sm:$0xff]
        %v2422 = vld [vmem:[%s2337 + $0x2a0] sm:$0xff]
        %v2423 = vld [vmem:[%s2337 + $0x2a8] sm:$0xff]
        %v2424 = vld [vmem:[%s2337 + $0x2b0] sm:$0xff]
        %v2425 = vld [vmem:[%s2337 + $0x2b8] sm:$0xff]
        %v2426 = vld [vmem:[%s2337 + $0x2c0] sm:$0xff]
        %v2427 = vld [vmem:[%s2337 + $0x2c8] sm:$0xff]
        %v2428 = vld [vmem:[%s2337 + $0x2d0] sm:$0xff]
        %v2429 = vld [vmem:[%s2337 + $0x2d8] sm:$0xff]
        %v2430 = vld [vmem:[%s2337 + $0x2e0] sm:$0xff]
        %v2431 = vld [vmem:[%s2337 + $0x2e8] sm:$0xff]
        %v2432 = vld [vmem:[%s2337 + $0x2f0] sm:$0xff]
        %v2433 = vld [vmem:[%s2337 + $0x2f8] sm:$0xff]
        %v2434 = vld [vmem:[%s2337 + $0x300] sm:$0xff]
        %v2435 = vld [vmem:[%s2337 + $0x308] sm:$0xff]
        %v2436 = vld [vmem:[%s2337 + $0x310] sm:$0xff]
        %v2437 = vld [vmem:[%s2337 + $0x318] sm:$0xff]
        %v2438 = vld [vmem:[%s2337 + $0x320] sm:$0xff]
        %v2439 = vld [vmem:[%s2337 + $0x328] sm:$0xff]
        %v2440 = vld [vmem:[%s2337 + $0x330] sm:$0xff]
        %v2441 = vld [vmem:[%s2337 + $0x338] sm:$0xff]
        %v2442 = vld [vmem:[%s2337 + $0x340] sm:$0xff]
        %v2443 = vld [vmem:[%s2337 + $0x348] sm:$0xff]
        %v2444 = vld [vmem:[%s2337 + $0x350] sm:$0xff]
        %v2445 = vld [vmem:[%s2337 + $0x358] sm:$0xff]
        %v2446 = vld [vmem:[%s2337 + $0x360] sm:$0xff]
        %v2447 = vld [vmem:[%s2337 + $0x368] sm:$0xff]
        %v2448 = vld [vmem:[%s2337 + $0x370] sm:$0xff]
        %v2449 = vld [vmem:[%s2337 + $0x378] sm:$0xff]
        %v2450 = vld [vmem:[%s2337 + $0x380] sm:$0xff]
        %v2451 = vld [vmem:[%s2337 + $0x388] sm:$0xff]
        %v2452 = vld [vmem:[%s2337 + $0x390] sm:$0xff]
        %v2453 = vld [vmem:[%s2337 + $0x398] sm:$0xff]
        %v2454 = vld [vmem:[%s2337 + $0x3a0] sm:$0xff]
        %v2455 = vld [vmem:[%s2337 + $0x3a8] sm:$0xff]
        %v2456 = vld [vmem:[%s2337 + $0x3b0] sm:$0xff]
        %v2457 = vld [vmem:[%s2337 + $0x3b8] sm:$0xff]
        %v2458 = vld [vmem:[%s2337 + $0x3c0] sm:$0xff]
        %v2459 = vld [vmem:[%s2337 + $0x3c8] sm:$0xff]
        %v2460 = vld [vmem:[%s2337 + $0x3d0] sm:$0xff]
        %v2461 = vld [vmem:[%s2337 + $0x3d8] sm:$0xff]
        %v2462 = vld [vmem:[%s2337 + $0x3e0] sm:$0xff]
        %v2463 = vld [vmem:[%s2337 + $0x3e8] sm:$0xff]
        %v2464 = vld [vmem:[%s2337 + $0x3f0] sm:$0xff]
        %v2465 = vld [vmem:[%s2337 + $0x3f8] sm:$0xff]
        %2466 = vmatprep.subr.mxu0 %v2369
        %2467 = vmatpush1.msra.mxu0 %v2368
        %2468 = vmatprep.subr.mxu0 %v2367
        %2469 = vmatpush1.msra.mxu0 %v2366
        %2470 = vmatprep.subr.mxu0 %v2365
        %2471 = vmatpush1.msra.mxu0 %v2364
        %2472 = vmatprep.subr.mxu0 %v2363
        %2473 = vmatpush1.msra.mxu0 %v2362
        %2474 = vmatprep.subr.mxu0 %v2361
        %2475 = vmatpush1.msra.mxu0 %v2360
        %2476 = vmatprep.subr.mxu0 %v2359
        %2477 = vmatpush1.msra.mxu0 %v2358
        %2478 = vmatprep.subr.mxu0 %v2357
        %2479 = vmatpush1.msra.mxu0 %v2356
        %2480 = vmatprep.subr.mxu0 %v2355
        %2481 = vmatpush1.msra.mxu0 %v2354
        %2482 = vmatprep.subr.mxu0 %v2353
        %2483 = vmatpush1.msra.mxu0 %v2352
        %2484 = vmatprep.subr.mxu0 %v2351
        %2485 = vmatpush1.msra.mxu0 %v2350
        %2486 = vmatprep.subr.mxu0 %v2349
        %2487 = vmatpush1.msra.mxu0 %v2348
        %2488 = vmatprep.subr.mxu0 %v2347
        %2489 = vmatpush1.msra.mxu0 %v2346
        %2490 = vmatprep.subr.mxu0 %v2345
        %2491 = vmatpush1.msra.mxu0 %v2344
        %2492 = vmatprep.subr.mxu0 %v2343
        %2493 = vmatpush1.msra.mxu0 %v2342
        %2494 = vmatprep.subr.mxu0 %v2341
        %2495 = vmatpush1.msra.mxu0 %v2340
        %2496 = vmatprep.subr.mxu0 %v2339
        %2497 = vmatpush1.msra.mxu0 %v2338
        %2498 = vmatprep.subr.mxu0 %v2401
        %2499 = vmatpush2.msra.mxu0 %v2400
        %2500 = vmatprep.subr.mxu0 %v2399
        %2501 = vmatpush2.msra.mxu0 %v2398
        %2502 = vmatprep.subr.mxu0 %v2397
        %2503 = vmatpush2.msra.mxu0 %v2396
        %2504 = vmatprep.subr.mxu0 %v2395
        %2505 = vmatpush2.msra.mxu0 %v2394
        %2506 = vmatprep.subr.mxu0 %v2393
        %2507 = vmatpush2.msra.mxu0 %v2392
        %2508 = vmatprep.subr.mxu0 %v2391
        %2509 = vmatpush2.msra.mxu0 %v2390
        %2510 = vmatprep.subr.mxu0 %v2389
        %2511 = vmatpush2.msra.mxu0 %v2388
        %2512 = vmatprep.subr.mxu0 %v2387
        %2513 = vmatpush2.msra.mxu0 %v2386
        %2514 = vmatprep.subr.mxu0 %v2385
        %2515 = vmatpush2.msra.mxu0 %v2384
        %2516 = vmatprep.subr.mxu0 %v2383
        %2517 = vmatpush2.msra.mxu0 %v2382
        %2518 = vmatprep.subr.mxu0 %v2381
        %2519 = vmatpush2.msra.mxu0 %v2380
        %2520 = vmatprep.subr.mxu0 %v2379
        %2521 = vmatpush2.msra.mxu0 %v2378
        %2522 = vmatprep.subr.mxu0 %v2377
        %2523 = vmatpush2.msra.mxu0 %v2376
        %2524 = vmatprep.subr.mxu0 %v2375
        %2525 = vmatpush2.msra.mxu0 %v2374
        %2526 = vmatprep.subr.mxu0 %v2373
        %2527 = vmatpush2.msra.mxu0 %v2372
        %2528 = vmatprep.subr.mxu0 %v2371
        %2529 = vmatpush2.msra.mxu0 %v2370
        %2530 = vmatprep.mubr.f32.mxu0 %v2264
        %2531 = vmatmul.mubr.f32.gmra.mxu0 %v2262
        %v2532 = vpop.f32.mrf.mxu0
        %v2533 = vadd.f32 0.0, %v2532
        %v2534 = vpop.f32.mrf.mxu0
        %v2535 = vadd.f32 0.0, %v2534
        %2536 = vdwg.mxu0
        %2537 = vmatprep.subr.mxu0 %v2433
        %2538 = vmatpush1.msra.mxu0 %v2432
        %2539 = vmatprep.subr.mxu0 %v2431
        %2540 = vmatpush1.msra.mxu0 %v2430
        %2541 = vmatprep.subr.mxu0 %v2429
        %2542 = vmatpush1.msra.mxu0 %v2428
        %2543 = vmatprep.subr.mxu0 %v2427
        %2544 = vmatpush1.msra.mxu0 %v2426
        %2545 = vmatprep.subr.mxu0 %v2425
        %2546 = vmatpush1.msra.mxu0 %v2424
        %2547 = vmatprep.subr.mxu0 %v2423
        %2548 = vmatpush1.msra.mxu0 %v2422
        %2549 = vmatprep.subr.mxu0 %v2421
        %2550 = vmatpush1.msra.mxu0 %v2420
        %2551 = vmatprep.subr.mxu0 %v2419
        %2552 = vmatpush1.msra.mxu0 %v2418
        %2553 = vmatprep.subr.mxu0 %v2417
        %2554 = vmatpush1.msra.mxu0 %v2416
        %2555 = vmatprep.subr.mxu0 %v2415
        %2556 = vmatpush1.msra.mxu0 %v2414
        %2557 = vmatprep.subr.mxu0 %v2413
        %2558 = vmatpush1.msra.mxu0 %v2412
        %2559 = vmatprep.subr.mxu0 %v2411
        %2560 = vmatpush1.msra.mxu0 %v2410
        %2561 = vmatprep.subr.mxu0 %v2409
        %2562 = vmatpush1.msra.mxu0 %v2408
        %2563 = vmatprep.subr.mxu0 %v2407
        %2564 = vmatpush1.msra.mxu0 %v2406
        %2565 = vmatprep.subr.mxu0 %v2405
        %2566 = vmatpush1.msra.mxu0 %v2404
        %2567 = vmatprep.subr.mxu0 %v2403
        %2568 = vmatpush1.msra.mxu0 %v2402
        %2569 = vmatprep.subr.mxu0 %v2465
        %2570 = vmatpush2.msra.mxu0 %v2464
        %2571 = vmatprep.subr.mxu0 %v2463
        %2572 = vmatpush2.msra.mxu0 %v2462
        %2573 = vmatprep.subr.mxu0 %v2461
        %2574 = vmatpush2.msra.mxu0 %v2460
        %2575 = vmatprep.subr.mxu0 %v2459
        %2576 = vmatpush2.msra.mxu0 %v2458
        %2577 = vmatprep.subr.mxu0 %v2457
        %2578 = vmatpush2.msra.mxu0 %v2456
        %2579 = vmatprep.subr.mxu0 %v2455
        %2580 = vmatpush2.msra.mxu0 %v2454
        %2581 = vmatprep.subr.mxu0 %v2453
        %2582 = vmatpush2.msra.mxu0 %v2452
        %2583 = vmatprep.subr.mxu0 %v2451
        %2584 = vmatpush2.msra.mxu0 %v2450
        %2585 = vmatprep.subr.mxu0 %v2449
        %2586 = vmatpush2.msra.mxu0 %v2448
        %2587 = vmatprep.subr.mxu0 %v2447
        %2588 = vmatpush2.msra.mxu0 %v2446
        %2589 = vmatprep.subr.mxu0 %v2445
        %2590 = vmatpush2.msra.mxu0 %v2444
        %2591 = vmatprep.subr.mxu0 %v2443
        %2592 = vmatpush2.msra.mxu0 %v2442
        %2593 = vmatprep.subr.mxu0 %v2441
        %2594 = vmatpush2.msra.mxu0 %v2440
        %2595 = vmatprep.subr.mxu0 %v2439
        %2596 = vmatpush2.msra.mxu0 %v2438
        %2597 = vmatprep.subr.mxu0 %v2437
        %2598 = vmatpush2.msra.mxu0 %v2436
        %2599 = vmatprep.subr.mxu0 %v2435
        %2600 = vmatpush2.msra.mxu0 %v2434
        %2601 = vmatprep.mubr.f32.mxu0 %v2335
        %2602 = vmatmul.mubr.f32.gmra.mxu0 %v2333
        %v2603 = vpop.f32.mrf.mxu0
        %v2604 = vadd.f32 %v2533, %v2603
        %v2605 = vpop.f32.mrf.mxu0
        %v2606 = vadd.f32 %v2535, %v2605
        %2607 = vdwg.mxu0
        %2608 = vmatprep.subr.mxu0 %v2093
        %2609 = vmatpush1.msra.mxu0 %v2092
        %2610 = vmatprep.subr.mxu0 %v2091
        %2611 = vmatpush1.msra.mxu0 %v2090
        %2612 = vmatprep.subr.mxu0 %v2089
        %2613 = vmatpush1.msra.mxu0 %v2088
        %2614 = vmatprep.subr.mxu0 %v2087
        %2615 = vmatpush1.msra.mxu0 %v2086
        %2616 = vmatprep.subr.mxu0 %v2085
        %2617 = vmatpush1.msra.mxu0 %v2084
        %2618 = vmatprep.subr.mxu0 %v2083
        %2619 = vmatpush1.msra.mxu0 %v2082
        %2620 = vmatprep.subr.mxu0 %v2081
        %2621 = vmatpush1.msra.mxu0 %v2080
        %2622 = vmatprep.subr.mxu0 %v2079
        %2623 = vmatpush1.msra.mxu0 %v2078
        %2624 = vmatprep.subr.mxu0 %v2077
        %2625 = vmatpush1.msra.mxu0 %v2076
        %2626 = vmatprep.subr.mxu0 %v2075
        %2627 = vmatpush1.msra.mxu0 %v2074
        %2628 = vmatprep.subr.mxu0 %v2073
        %2629 = vmatpush1.msra.mxu0 %v2072
        %2630 = vmatprep.subr.mxu0 %v2071
        %2631 = vmatpush1.msra.mxu0 %v2070
        %2632 = vmatprep.subr.mxu0 %v2069
        %2633 = vmatpush1.msra.mxu0 %v2068
        %2634 = vmatprep.subr.mxu0 %v2067
        %2635 = vmatpush1.msra.mxu0 %v2066
        %2636 = vmatprep.subr.mxu0 %v2065
        %2637 = vmatpush1.msra.mxu0 %v2064
        %2638 = vmatprep.subr.mxu0 %v2063
        %2639 = vmatpush1.msra.mxu0 %v2062
        %2640 = vmatprep.subr.mxu0 %v2125
        %2641 = vmatpush2.msra.mxu0 %v2124
        %2642 = vmatprep.subr.mxu0 %v2123
        %2643 = vmatpush2.msra.mxu0 %v2122
        %2644 = vmatprep.subr.mxu0 %v2121
        %2645 = vmatpush2.msra.mxu0 %v2120
        %2646 = vmatprep.subr.mxu0 %v2119
        %2647 = vmatpush2.msra.mxu0 %v2118
        %2648 = vmatprep.subr.mxu0 %v2117
        %2649 = vmatpush2.msra.mxu0 %v2116
        %2650 = vmatprep.subr.mxu0 %v2115
        %2651 = vmatpush2.msra.mxu0 %v2114
        %2652 = vmatprep.subr.mxu0 %v2113
        %2653 = vmatpush2.msra.mxu0 %v2112
        %2654 = vmatprep.subr.mxu0 %v2111
        %2655 = vmatpush2.msra.mxu0 %v2110
        %2656 = vmatprep.subr.mxu0 %v2109
        %2657 = vmatpush2.msra.mxu0 %v2108
        %2658 = vmatprep.subr.mxu0 %v2107
        %2659 = vmatpush2.msra.mxu0 %v2106
        %2660 = vmatprep.subr.mxu0 %v2105
        %2661 = vmatpush2.msra.mxu0 %v2104
        %2662 = vmatprep.subr.mxu0 %v2103
        %2663 = vmatpush2.msra.mxu0 %v2102
        %2664 = vmatprep.subr.mxu0 %v2101
        %2665 = vmatpush2.msra.mxu0 %v2100
        %2666 = vmatprep.subr.mxu0 %v2099
        %2667 = vmatpush2.msra.mxu0 %v2098
        %2668 = vmatprep.subr.mxu0 %v2097
        %2669 = vmatpush2.msra.mxu0 %v2096
        %2670 = vmatprep.subr.mxu0 %v2095
        %2671 = vmatpush2.msra.mxu0 %v2094
        %2672 = vmatprep.mubr.f32.mxu0 %v1989
        %2673 = vmatmul.mubr.f32.gmra.mxu0 %v1987
        %v2674 = vpop.f32.mrf.mxu0
        %v2675 = vadd.f32 %v2604, %v2674
        %v2676 = vpop.f32.mrf.mxu0
        %v2677 = vadd.f32 %v2606, %v2676
        %2678 = vdwg.mxu0
        %2679 = vmatprep.subr.mxu0 %v2157
        %2680 = vmatpush1.msra.mxu0 %v2156
        %2681 = vmatprep.subr.mxu0 %v2155
        %2682 = vmatpush1.msra.mxu0 %v2154
        %2683 = vmatprep.subr.mxu0 %v2153
        %2684 = vmatpush1.msra.mxu0 %v2152
        %2685 = vmatprep.subr.mxu0 %v2151
        %2686 = vmatpush1.msra.mxu0 %v2150
        %2687 = vmatprep.subr.mxu0 %v2149
        %2688 = vmatpush1.msra.mxu0 %v2148
        %2689 = vmatprep.subr.mxu0 %v2147
        %2690 = vmatpush1.msra.mxu0 %v2146
        %2691 = vmatprep.subr.mxu0 %v2145
        %2692 = vmatpush1.msra.mxu0 %v2144
        %2693 = vmatprep.subr.mxu0 %v2143
        %2694 = vmatpush1.msra.mxu0 %v2142
        %2695 = vmatprep.subr.mxu0 %v2141
        %2696 = vmatpush1.msra.mxu0 %v2140
        %2697 = vmatprep.subr.mxu0 %v2139
        %2698 = vmatpush1.msra.mxu0 %v2138
        %2699 = vmatprep.subr.mxu0 %v2137
        %2700 = vmatpush1.msra.mxu0 %v2136
        %2701 = vmatprep.subr.mxu0 %v2135
        %2702 = vmatpush1.msra.mxu0 %v2134
        %2703 = vmatprep.subr.mxu0 %v2133
        %2704 = vmatpush1.msra.mxu0 %v2132
        %2705 = vmatprep.subr.mxu0 %v2131
        %2706 = vmatpush1.msra.mxu0 %v2130
        %2707 = vmatprep.subr.mxu0 %v2129
        %2708 = vmatpush1.msra.mxu0 %v2128
        %2709 = vmatprep.subr.mxu0 %v2127
        %2710 = vmatpush1.msra.mxu0 %v2126
        %2711 = vmatprep.subr.mxu0 %v2189
        %2712 = vmatpush2.msra.mxu0 %v2188
        %2713 = vmatprep.subr.mxu0 %v2187
        %2714 = vmatpush2.msra.mxu0 %v2186
        %2715 = vmatprep.subr.mxu0 %v2185
        %2716 = vmatpush2.msra.mxu0 %v2184
        %2717 = vmatprep.subr.mxu0 %v2183
        %2718 = vmatpush2.msra.mxu0 %v2182
        %2719 = vmatprep.subr.mxu0 %v2181
        %2720 = vmatpush2.msra.mxu0 %v2180
        %2721 = vmatprep.subr.mxu0 %v2179
        %2722 = vmatpush2.msra.mxu0 %v2178
        %2723 = vmatprep.subr.mxu0 %v2177
        %2724 = vmatpush2.msra.mxu0 %v2176
        %2725 = vmatprep.subr.mxu0 %v2175
        %2726 = vmatpush2.msra.mxu0 %v2174
        %2727 = vmatprep.subr.mxu0 %v2173
        %2728 = vmatpush2.msra.mxu0 %v2172
        %2729 = vmatprep.subr.mxu0 %v2171
        %2730 = vmatpush2.msra.mxu0 %v2170
        %2731 = vmatprep.subr.mxu0 %v2169
        %2732 = vmatpush2.msra.mxu0 %v2168
        %2733 = vmatprep.subr.mxu0 %v2167
        %2734 = vmatpush2.msra.mxu0 %v2166
        %2735 = vmatprep.subr.mxu0 %v2165
        %2736 = vmatpush2.msra.mxu0 %v2164
        %2737 = vmatprep.subr.mxu0 %v2163
        %2738 = vmatpush2.msra.mxu0 %v2162
        %2739 = vmatprep.subr.mxu0 %v2161
        %2740 = vmatpush2.msra.mxu0 %v2160
        %2741 = vmatprep.subr.mxu0 %v2159
        %2742 = vmatpush2.msra.mxu0 %v2158
        %2743 = vmatprep.mubr.f32.mxu0 %v2060
        %2744 = vmatmul.mubr.f32.gmra.mxu0 %v2058
        %v2745 = vpop.f32.mrf.mxu0
        %v2746 = vadd.f32 %v2675, %v2745
        %v2747 = vpop.f32.mrf.mxu0
        %v2748 = vadd.f32 %v2677, %v2747
        %2749 = vdwg.mxu0
        %s2750 = scalar_lea.vmem [#allocation7], 16
        %v2751 = vld [vmem:[%s2750] sm:$0xff]
        %v2753 = vsel %vm1916, %v2751, 0
        %2755 = vmatprep.subr.mxu0 0.0
        %2756 = vmatpush1.msra.mxu0 0.0
        %2757 = vmatprep.subr.mxu0 0.0
        %2758 = vmatpush1.msra.mxu0 0.0
        %2759 = vmatprep.subr.mxu0 0.0
        %2760 = vmatpush1.msra.mxu0 0.0
        %2761 = vmatprep.subr.mxu0 0.0
        %2762 = vmatpush1.msra.mxu0 0.0
        %2763 = vmatprep.subr.mxu0 0.0
        %2764 = vmatpush1.msra.mxu0 0.0
        %2765 = vmatprep.subr.mxu0 0.0
        %2766 = vmatpush1.msra.mxu0 0.0
        %2767 = vmatprep.subr.mxu0 0.0
        %2768 = vmatpush1.msra.mxu0 0.0
        %2769 = vmatprep.subr.mxu0 0.0
        %2770 = vmatpush1.msra.mxu0 0.0
        %2771 = vmatprep.subr.mxu0 0.0
        %2772 = vmatpush1.msra.mxu0 0.0
        %2773 = vmatprep.subr.mxu0 0.0
        %2774 = vmatpush1.msra.mxu0 0.0
        %2775 = vmatprep.subr.mxu0 0.0
        %2776 = vmatpush1.msra.mxu0 0.0
        %2777 = vmatprep.subr.mxu0 0.0
        %2778 = vmatpush1.msra.mxu0 0.0
        %2779 = vmatprep.subr.mxu0 0.0
        %2780 = vmatpush1.msra.mxu0 0.0
        %2781 = vmatprep.subr.mxu0 0.0
        %2782 = vmatpush1.msra.mxu0 0.0
        %2783 = vmatprep.subr.mxu0 %v1912
        %2784 = vmatpush1.msra.mxu0 %v1911
        %2785 = vmatprep.subr.mxu0 %v1908
        %2786 = vmatpush1.msra.mxu0 %v1907
        %2787 = vmatprep.subr.mxu0 0.0
        %2788 = vmatpush2.msra.mxu0 0.0
        %2789 = vmatprep.subr.mxu0 0.0
        %2790 = vmatpush2.msra.mxu0 0.0
        %2791 = vmatprep.subr.mxu0 0.0
        %2792 = vmatpush2.msra.mxu0 0.0
        %2793 = vmatprep.subr.mxu0 0.0
        %2794 = vmatpush2.msra.mxu0 0.0
        %2795 = vmatprep.subr.mxu0 0.0
        %2796 = vmatpush2.msra.mxu0 0.0
        %2797 = vmatprep.subr.mxu0 0.0
        %2798 = vmatpush2.msra.mxu0 0.0
        %2799 = vmatprep.subr.mxu0 0.0
        %2800 = vmatpush2.msra.mxu0 0.0
        %2801 = vmatprep.subr.mxu0 0.0
        %2802 = vmatpush2.msra.mxu0 0.0
        %2803 = vmatprep.subr.mxu0 0.0
        %2804 = vmatpush2.msra.mxu0 0.0
        %2805 = vmatprep.subr.mxu0 0.0
        %2806 = vmatpush2.msra.mxu0 0.0
        %2807 = vmatprep.subr.mxu0 0.0
        %2808 = vmatpush2.msra.mxu0 0.0
        %2809 = vmatprep.subr.mxu0 0.0
        %2810 = vmatpush2.msra.mxu0 0.0
        %2811 = vmatprep.subr.mxu0 0.0
        %2812 = vmatpush2.msra.mxu0 0.0
        %2813 = vmatprep.subr.mxu0 0.0
        %2814 = vmatpush2.msra.mxu0 0.0
        %2815 = vmatprep.subr.mxu0 0.0
        %2816 = vmatpush2.msra.mxu0 0.0
        %2817 = vmatprep.subr.mxu0 0.0
        %2818 = vmatpush2.msra.mxu0 0.0
        %2819 = vmatprep.mubr.f32.mxu0 0.0
        %2820 = vmatmul.mubr.f32.gmra.mxu0 %v2753
        %v2821 = vpop.f32.mrf.mxu0
        %v2822 = vadd.f32 0.0, %v2821
        %v2823 = vpop.f32.mrf.mxu0
        %v2824 = vadd.f32 0.0, %v2823
        %2825 = vdwg.mxu0
        %2826 = vmatprep.subr.mxu0 0.0
        %2827 = vmatpush1.msra.mxu0 0.0
        %2828 = vmatprep.subr.mxu0 0.0
        %2829 = vmatpush1.msra.mxu0 0.0
        %2830 = vmatprep.subr.mxu0 0.0
        %2831 = vmatpush1.msra.mxu0 0.0
        %2832 = vmatprep.subr.mxu0 0.0
        %2833 = vmatpush1.msra.mxu0 0.0
        %2834 = vmatprep.subr.mxu0 0.0
        %2835 = vmatpush1.msra.mxu0 0.0
        %2836 = vmatprep.subr.mxu0 0.0
        %2837 = vmatpush1.msra.mxu0 0.0
        %2838 = vmatprep.subr.mxu0 0.0
        %2839 = vmatpush1.msra.mxu0 0.0
        %2840 = vmatprep.subr.mxu0 0.0
        %2841 = vmatpush1.msra.mxu0 0.0
        %2842 = vmatprep.subr.mxu0 0.0
        %2843 = vmatpush1.msra.mxu0 0.0
        %2844 = vmatprep.subr.mxu0 0.0
        %2845 = vmatpush1.msra.mxu0 0.0
        %2846 = vmatprep.subr.mxu0 0.0
        %2847 = vmatpush1.msra.mxu0 0.0
        %2848 = vmatprep.subr.mxu0 0.0
        %2849 = vmatpush1.msra.mxu0 0.0
        %2850 = vmatprep.subr.mxu0 0.0
        %2851 = vmatpush1.msra.mxu0 0.0
        %2852 = vmatprep.subr.mxu0 0.0
        %2853 = vmatpush1.msra.mxu0 0.0
        %2854 = vmatprep.subr.mxu0 %v1914
        %2855 = vmatpush1.msra.mxu0 %v1913
        %2856 = vmatprep.subr.mxu0 %v1910
        %2857 = vmatpush1.msra.mxu0 %v1909
        %2858 = vmatprep.subr.mxu0 0.0
        %2859 = vmatpush2.msra.mxu0 0.0
        %2860 = vmatprep.subr.mxu0 0.0
        %2861 = vmatpush2.msra.mxu0 0.0
        %2862 = vmatprep.subr.mxu0 0.0
        %2863 = vmatpush2.msra.mxu0 0.0
        %2864 = vmatprep.subr.mxu0 0.0
        %2865 = vmatpush2.msra.mxu0 0.0
        %2866 = vmatprep.subr.mxu0 0.0
        %2867 = vmatpush2.msra.mxu0 0.0
        %2868 = vmatprep.subr.mxu0 0.0
        %2869 = vmatpush2.msra.mxu0 0.0
        %2870 = vmatprep.subr.mxu0 0.0
        %2871 = vmatpush2.msra.mxu0 0.0
        %2872 = vmatprep.subr.mxu0 0.0
        %2873 = vmatpush2.msra.mxu0 0.0
        %2874 = vmatprep.subr.mxu0 0.0
        %2875 = vmatpush2.msra.mxu0 0.0
        %2876 = vmatprep.subr.mxu0 0.0
        %2877 = vmatpush2.msra.mxu0 0.0
        %2878 = vmatprep.subr.mxu0 0.0
        %2879 = vmatpush2.msra.mxu0 0.0
        %2880 = vmatprep.subr.mxu0 0.0
        %2881 = vmatpush2.msra.mxu0 0.0
        %2882 = vmatprep.subr.mxu0 0.0
        %2883 = vmatpush2.msra.mxu0 0.0
        %2884 = vmatprep.subr.mxu0 0.0
        %2885 = vmatpush2.msra.mxu0 0.0
        %2886 = vmatprep.subr.mxu0 0.0
        %2887 = vmatpush2.msra.mxu0 0.0
        %2888 = vmatprep.subr.mxu0 0.0
        %2889 = vmatpush2.msra.mxu0 0.0
        %2890 = vmatprep.mubr.f32.mxu0 0.0
        %2891 = vmatmul.mubr.f32.gmra.mxu0 %v2753
        %v2892 = vpop.f32.mrf.mxu0
        %v2893 = vadd.f32 0.0, %v2892
        %v2894 = vpop.f32.mrf.mxu0
        %v2895 = vadd.f32 0.0, %v2894
        %2896 = vdwg.mxu0
        %s2897 = scalar_lea.vmem [#allocation9], 2048
        %v2898 = vld [vmem:[%s2897] sm:$0xff]
        %v2899 = vld [vmem:[%s2897 + $0x8] sm:$0xff]
        %v2900 = vld [vmem:[%s2897 + $0x10] sm:$0xff]
        %v2901 = vld [vmem:[%s2897 + $0x18] sm:$0xff]
        %v2902 = vld [vmem:[%s2897 + $0x20] sm:$0xff]
        %v2903 = vld [vmem:[%s2897 + $0x28] sm:$0xff]
        %v2904 = vld [vmem:[%s2897 + $0x30] sm:$0xff]
        %v2905 = vld [vmem:[%s2897 + $0x38] sm:$0xff]
        %v2906 = vld [vmem:[%s2897 + $0x40] sm:$0xff]
        %v2907 = vld [vmem:[%s2897 + $0x48] sm:$0xff]
        %v2908 = vld [vmem:[%s2897 + $0x50] sm:$0xff]
        %v2909 = vld [vmem:[%s2897 + $0x58] sm:$0xff]
        %v2910 = vld [vmem:[%s2897 + $0x60] sm:$0xff]
        %v2911 = vld [vmem:[%s2897 + $0x68] sm:$0xff]
        %v2912 = vld [vmem:[%s2897 + $0x70] sm:$0xff]
        %v2913 = vld [vmem:[%s2897 + $0x78] sm:$0xff]
        %v2914 = vld [vmem:[%s2897 + $0x80] sm:$0xff]
        %v2915 = vld [vmem:[%s2897 + $0x88] sm:$0xff]
        %v2916 = vld [vmem:[%s2897 + $0x90] sm:$0xff]
        %v2917 = vld [vmem:[%s2897 + $0x98] sm:$0xff]
        %v2918 = vld [vmem:[%s2897 + $0xa0] sm:$0xff]
        %v2919 = vld [vmem:[%s2897 + $0xa8] sm:$0xff]
        %v2920 = vld [vmem:[%s2897 + $0xb0] sm:$0xff]
        %v2921 = vld [vmem:[%s2897 + $0xb8] sm:$0xff]
        %v2922 = vld [vmem:[%s2897 + $0xc0] sm:$0xff]
        %v2923 = vld [vmem:[%s2897 + $0xc8] sm:$0xff]
        %v2924 = vld [vmem:[%s2897 + $0xd0] sm:$0xff]
        %v2925 = vld [vmem:[%s2897 + $0xd8] sm:$0xff]
        %v2926 = vld [vmem:[%s2897 + $0xe0] sm:$0xff]
        %v2927 = vld [vmem:[%s2897 + $0xe8] sm:$0xff]
        %v2928 = vld [vmem:[%s2897 + $0xf0] sm:$0xff]
        %v2929 = vld [vmem:[%s2897 + $0xf8] sm:$0xff]
        %v2930 = vld [vmem:[%s2897 + $0x100] sm:$0xff]
        %v2931 = vld [vmem:[%s2897 + $0x108] sm:$0xff]
        %v2932 = vld [vmem:[%s2897 + $0x110] sm:$0xff]
        %v2933 = vld [vmem:[%s2897 + $0x118] sm:$0xff]
        %v2934 = vld [vmem:[%s2897 + $0x120] sm:$0xff]
        %v2935 = vld [vmem:[%s2897 + $0x128] sm:$0xff]
        %v2936 = vld [vmem:[%s2897 + $0x130] sm:$0xff]
        %v2937 = vld [vmem:[%s2897 + $0x138] sm:$0xff]
        %v2938 = vld [vmem:[%s2897 + $0x140] sm:$0xff]
        %v2939 = vld [vmem:[%s2897 + $0x148] sm:$0xff]
        %v2940 = vld [vmem:[%s2897 + $0x150] sm:$0xff]
        %v2941 = vld [vmem:[%s2897 + $0x158] sm:$0xff]
        %v2942 = vld [vmem:[%s2897 + $0x160] sm:$0xff]
        %v2943 = vld [vmem:[%s2897 + $0x168] sm:$0xff]
        %v2944 = vld [vmem:[%s2897 + $0x170] sm:$0xff]
        %v2945 = vld [vmem:[%s2897 + $0x178] sm:$0xff]
        %v2946 = vld [vmem:[%s2897 + $0x180] sm:$0xff]
        %v2947 = vld [vmem:[%s2897 + $0x188] sm:$0xff]
        %v2948 = vld [vmem:[%s2897 + $0x190] sm:$0xff]
        %v2949 = vld [vmem:[%s2897 + $0x198] sm:$0xff]
        %v2950 = vld [vmem:[%s2897 + $0x1a0] sm:$0xff]
        %v2951 = vld [vmem:[%s2897 + $0x1a8] sm:$0xff]
        %v2952 = vld [vmem:[%s2897 + $0x1b0] sm:$0xff]
        %v2953 = vld [vmem:[%s2897 + $0x1b8] sm:$0xff]
        %v2954 = vld [vmem:[%s2897 + $0x1c0] sm:$0xff]
        %v2955 = vld [vmem:[%s2897 + $0x1c8] sm:$0xff]
        %v2956 = vld [vmem:[%s2897 + $0x1d0] sm:$0xff]
        %v2957 = vld [vmem:[%s2897 + $0x1d8] sm:$0xff]
        %v2958 = vld [vmem:[%s2897 + $0x1e0] sm:$0xff]
        %v2959 = vld [vmem:[%s2897 + $0x1e8] sm:$0xff]
        %v2960 = vld [vmem:[%s2897 + $0x1f0] sm:$0xff]
        %v2961 = vld [vmem:[%s2897 + $0x1f8] sm:$0xff]
        %v2962 = vld [vmem:[%s2897 + $0x200] sm:$0xff]
        %v2963 = vld [vmem:[%s2897 + $0x208] sm:$0xff]
        %v2964 = vld [vmem:[%s2897 + $0x210] sm:$0xff]
        %v2965 = vld [vmem:[%s2897 + $0x218] sm:$0xff]
        %v2966 = vld [vmem:[%s2897 + $0x220] sm:$0xff]
        %v2967 = vld [vmem:[%s2897 + $0x228] sm:$0xff]
        %v2968 = vld [vmem:[%s2897 + $0x230] sm:$0xff]
        %v2969 = vld [vmem:[%s2897 + $0x238] sm:$0xff]
        %v2970 = vld [vmem:[%s2897 + $0x240] sm:$0xff]
        %v2971 = vld [vmem:[%s2897 + $0x248] sm:$0xff]
        %v2972 = vld [vmem:[%s2897 + $0x250] sm:$0xff]
        %v2973 = vld [vmem:[%s2897 + $0x258] sm:$0xff]
        %v2974 = vld [vmem:[%s2897 + $0x260] sm:$0xff]
        %v2975 = vld [vmem:[%s2897 + $0x268] sm:$0xff]
        %v2976 = vld [vmem:[%s2897 + $0x270] sm:$0xff]
        %v2977 = vld [vmem:[%s2897 + $0x278] sm:$0xff]
        %v2978 = vld [vmem:[%s2897 + $0x280] sm:$0xff]
        %v2979 = vld [vmem:[%s2897 + $0x288] sm:$0xff]
        %v2980 = vld [vmem:[%s2897 + $0x290] sm:$0xff]
        %v2981 = vld [vmem:[%s2897 + $0x298] sm:$0xff]
        %v2982 = vld [vmem:[%s2897 + $0x2a0] sm:$0xff]
        %v2983 = vld [vmem:[%s2897 + $0x2a8] sm:$0xff]
        %v2984 = vld [vmem:[%s2897 + $0x2b0] sm:$0xff]
        %v2985 = vld [vmem:[%s2897 + $0x2b8] sm:$0xff]
        %v2986 = vld [vmem:[%s2897 + $0x2c0] sm:$0xff]
        %v2987 = vld [vmem:[%s2897 + $0x2c8] sm:$0xff]
        %v2988 = vld [vmem:[%s2897 + $0x2d0] sm:$0xff]
        %v2989 = vld [vmem:[%s2897 + $0x2d8] sm:$0xff]
        %v2990 = vld [vmem:[%s2897 + $0x2e0] sm:$0xff]
        %v2991 = vld [vmem:[%s2897 + $0x2e8] sm:$0xff]
        %v2992 = vld [vmem:[%s2897 + $0x2f0] sm:$0xff]
        %v2993 = vld [vmem:[%s2897 + $0x2f8] sm:$0xff]
        %v2994 = vld [vmem:[%s2897 + $0x300] sm:$0xff]
        %v2995 = vld [vmem:[%s2897 + $0x308] sm:$0xff]
        %v2996 = vld [vmem:[%s2897 + $0x310] sm:$0xff]
        %v2997 = vld [vmem:[%s2897 + $0x318] sm:$0xff]
        %v2998 = vld [vmem:[%s2897 + $0x320] sm:$0xff]
        %v2999 = vld [vmem:[%s2897 + $0x328] sm:$0xff]
        %v3000 = vld [vmem:[%s2897 + $0x330] sm:$0xff]
        %v3001 = vld [vmem:[%s2897 + $0x338] sm:$0xff]
        %v3002 = vld [vmem:[%s2897 + $0x340] sm:$0xff]
        %v3003 = vld [vmem:[%s2897 + $0x348] sm:$0xff]
        %v3004 = vld [vmem:[%s2897 + $0x350] sm:$0xff]
        %v3005 = vld [vmem:[%s2897 + $0x358] sm:$0xff]
        %v3006 = vld [vmem:[%s2897 + $0x360] sm:$0xff]
        %v3007 = vld [vmem:[%s2897 + $0x368] sm:$0xff]
        %v3008 = vld [vmem:[%s2897 + $0x370] sm:$0xff]
        %v3009 = vld [vmem:[%s2897 + $0x378] sm:$0xff]
        %v3010 = vld [vmem:[%s2897 + $0x380] sm:$0xff]
        %v3011 = vld [vmem:[%s2897 + $0x388] sm:$0xff]
        %v3012 = vld [vmem:[%s2897 + $0x390] sm:$0xff]
        %v3013 = vld [vmem:[%s2897 + $0x398] sm:$0xff]
        %v3014 = vld [vmem:[%s2897 + $0x3a0] sm:$0xff]
        %v3015 = vld [vmem:[%s2897 + $0x3a8] sm:$0xff]
        %v3016 = vld [vmem:[%s2897 + $0x3b0] sm:$0xff]
        %v3017 = vld [vmem:[%s2897 + $0x3b8] sm:$0xff]
        %v3018 = vld [vmem:[%s2897 + $0x3c0] sm:$0xff]
        %v3019 = vld [vmem:[%s2897 + $0x3c8] sm:$0xff]
        %v3020 = vld [vmem:[%s2897 + $0x3d0] sm:$0xff]
        %v3021 = vld [vmem:[%s2897 + $0x3d8] sm:$0xff]
        %v3022 = vld [vmem:[%s2897 + $0x3e0] sm:$0xff]
        %v3023 = vld [vmem:[%s2897 + $0x3e8] sm:$0xff]
        %v3024 = vld [vmem:[%s2897 + $0x3f0] sm:$0xff]
        %v3025 = vld [vmem:[%s2897 + $0x3f8] sm:$0xff]
        %3026 = vmatprep.subr.mxu0 %v2929
        %3027 = vmatpush1.msra.mxu0 %v2928
        %3028 = vmatprep.subr.mxu0 %v2927
        %3029 = vmatpush1.msra.mxu0 %v2926
        %3030 = vmatprep.subr.mxu0 %v2925
        %3031 = vmatpush1.msra.mxu0 %v2924
        %3032 = vmatprep.subr.mxu0 %v2923
        %3033 = vmatpush1.msra.mxu0 %v2922
        %3034 = vmatprep.subr.mxu0 %v2921
        %3035 = vmatpush1.msra.mxu0 %v2920
        %3036 = vmatprep.subr.mxu0 %v2919
        %3037 = vmatpush1.msra.mxu0 %v2918
        %3038 = vmatprep.subr.mxu0 %v2917
        %3039 = vmatpush1.msra.mxu0 %v2916
        %3040 = vmatprep.subr.mxu0 %v2915
        %3041 = vmatpush1.msra.mxu0 %v2914
        %3042 = vmatprep.subr.mxu0 %v2913
        %3043 = vmatpush1.msra.mxu0 %v2912
        %3044 = vmatprep.subr.mxu0 %v2911
        %3045 = vmatpush1.msra.mxu0 %v2910
        %3046 = vmatprep.subr.mxu0 %v2909
        %3047 = vmatpush1.msra.mxu0 %v2908
        %3048 = vmatprep.subr.mxu0 %v2907
        %3049 = vmatpush1.msra.mxu0 %v2906
        %3050 = vmatprep.subr.mxu0 %v2905
        %3051 = vmatpush1.msra.mxu0 %v2904
        %3052 = vmatprep.subr.mxu0 %v2903
        %3053 = vmatpush1.msra.mxu0 %v2902
        %3054 = vmatprep.subr.mxu0 %v2901
        %3055 = vmatpush1.msra.mxu0 %v2900
        %3056 = vmatprep.subr.mxu0 %v2899
        %3057 = vmatpush1.msra.mxu0 %v2898
        %3058 = vmatprep.subr.mxu0 %v2961
        %3059 = vmatpush2.msra.mxu0 %v2960
        %3060 = vmatprep.subr.mxu0 %v2959
        %3061 = vmatpush2.msra.mxu0 %v2958
        %3062 = vmatprep.subr.mxu0 %v2957
        %3063 = vmatpush2.msra.mxu0 %v2956
        %3064 = vmatprep.subr.mxu0 %v2955
        %3065 = vmatpush2.msra.mxu0 %v2954
        %3066 = vmatprep.subr.mxu0 %v2953
        %3067 = vmatpush2.msra.mxu0 %v2952
        %3068 = vmatprep.subr.mxu0 %v2951
        %3069 = vmatpush2.msra.mxu0 %v2950
        %3070 = vmatprep.subr.mxu0 %v2949
        %3071 = vmatpush2.msra.mxu0 %v2948
        %3072 = vmatprep.subr.mxu0 %v2947
        %3073 = vmatpush2.msra.mxu0 %v2946
        %3074 = vmatprep.subr.mxu0 %v2945
        %3075 = vmatpush2.msra.mxu0 %v2944
        %3076 = vmatprep.subr.mxu0 %v2943
        %3077 = vmatpush2.msra.mxu0 %v2942
        %3078 = vmatprep.subr.mxu0 %v2941
        %3079 = vmatpush2.msra.mxu0 %v2940
        %3080 = vmatprep.subr.mxu0 %v2939
        %3081 = vmatpush2.msra.mxu0 %v2938
        %3082 = vmatprep.subr.mxu0 %v2937
        %3083 = vmatpush2.msra.mxu0 %v2936
        %3084 = vmatprep.subr.mxu0 %v2935
        %3085 = vmatpush2.msra.mxu0 %v2934
        %3086 = vmatprep.subr.mxu0 %v2933
        %3087 = vmatpush2.msra.mxu0 %v2932
        %3088 = vmatprep.subr.mxu0 %v2931
        %3089 = vmatpush2.msra.mxu0 %v2930
        %3090 = vmatprep.mubr.f32.mxu0 %v2824
        %3091 = vmatmul.mubr.f32.gmra.mxu0 %v2822
        %v3092 = vpop.f32.mrf.mxu0
        %v3093 = vadd.f32 0.0, %v3092
        %v3094 = vpop.f32.mrf.mxu0
        %v3095 = vadd.f32 0.0, %v3094
        %3096 = vdwg.mxu0
        %3097 = vmatprep.subr.mxu0 %v2993
        %3098 = vmatpush1.msra.mxu0 %v2992
        %3099 = vmatprep.subr.mxu0 %v2991
        %3100 = vmatpush1.msra.mxu0 %v2990
        %3101 = vmatprep.subr.mxu0 %v2989
        %3102 = vmatpush1.msra.mxu0 %v2988
        %3103 = vmatprep.subr.mxu0 %v2987
        %3104 = vmatpush1.msra.mxu0 %v2986
        %3105 = vmatprep.subr.mxu0 %v2985
        %3106 = vmatpush1.msra.mxu0 %v2984
        %3107 = vmatprep.subr.mxu0 %v2983
        %3108 = vmatpush1.msra.mxu0 %v2982
        %3109 = vmatprep.subr.mxu0 %v2981
        %3110 = vmatpush1.msra.mxu0 %v2980
        %3111 = vmatprep.subr.mxu0 %v2979
        %3112 = vmatpush1.msra.mxu0 %v2978
        %3113 = vmatprep.subr.mxu0 %v2977
        %3114 = vmatpush1.msra.mxu0 %v2976
        %3115 = vmatprep.subr.mxu0 %v2975
        %3116 = vmatpush1.msra.mxu0 %v2974
        %3117 = vmatprep.subr.mxu0 %v2973
        %3118 = vmatpush1.msra.mxu0 %v2972
        %3119 = vmatprep.subr.mxu0 %v2971
        %3120 = vmatpush1.msra.mxu0 %v2970
        %3121 = vmatprep.subr.mxu0 %v2969
        %3122 = vmatpush1.msra.mxu0 %v2968
        %3123 = vmatprep.subr.mxu0 %v2967
        %3124 = vmatpush1.msra.mxu0 %v2966
        %3125 = vmatprep.subr.mxu0 %v2965
        %3126 = vmatpush1.msra.mxu0 %v2964
        %3127 = vmatprep.subr.mxu0 %v2963
        %3128 = vmatpush1.msra.mxu0 %v2962
        %3129 = vmatprep.subr.mxu0 %v3025
        %3130 = vmatpush2.msra.mxu0 %v3024
        %3131 = vmatprep.subr.mxu0 %v3023
        %3132 = vmatpush2.msra.mxu0 %v3022
        %3133 = vmatprep.subr.mxu0 %v3021
        %3134 = vmatpush2.msra.mxu0 %v3020
        %3135 = vmatprep.subr.mxu0 %v3019
        %3136 = vmatpush2.msra.mxu0 %v3018
        %3137 = vmatprep.subr.mxu0 %v3017
        %3138 = vmatpush2.msra.mxu0 %v3016
        %3139 = vmatprep.subr.mxu0 %v3015
        %3140 = vmatpush2.msra.mxu0 %v3014
        %3141 = vmatprep.subr.mxu0 %v3013
        %3142 = vmatpush2.msra.mxu0 %v3012
        %3143 = vmatprep.subr.mxu0 %v3011
        %3144 = vmatpush2.msra.mxu0 %v3010
        %3145 = vmatprep.subr.mxu0 %v3009
        %3146 = vmatpush2.msra.mxu0 %v3008
        %3147 = vmatprep.subr.mxu0 %v3007
        %3148 = vmatpush2.msra.mxu0 %v3006
        %3149 = vmatprep.subr.mxu0 %v3005
        %3150 = vmatpush2.msra.mxu0 %v3004
        %3151 = vmatprep.subr.mxu0 %v3003
        %3152 = vmatpush2.msra.mxu0 %v3002
        %3153 = vmatprep.subr.mxu0 %v3001
        %3154 = vmatpush2.msra.mxu0 %v3000
        %3155 = vmatprep.subr.mxu0 %v2999
        %3156 = vmatpush2.msra.mxu0 %v2998
        %3157 = vmatprep.subr.mxu0 %v2997
        %3158 = vmatpush2.msra.mxu0 %v2996
        %3159 = vmatprep.subr.mxu0 %v2995
        %3160 = vmatpush2.msra.mxu0 %v2994
        %3161 = vmatprep.mubr.f32.mxu0 %v2895
        %3162 = vmatmul.mubr.f32.gmra.mxu0 %v2893
        %v3163 = vpop.f32.mrf.mxu0
        %v3164 = vadd.f32 %v3093, %v3163
        %v3165 = vpop.f32.mrf.mxu0
        %v3166 = vadd.f32 %v3095, %v3165
        %3167 = vdwg.mxu0
        %v3168 = vadd.f32 %v2746, %v3164
        %v3169 = vadd.f32 %v2748, %v3166
        %s3170 = scalar_lea.vmem [#allocation7], 24
        %v3171 = vld [vmem:[%s3170] sm:$0xff]
        %v3173 = vsel %vm1916, %v3171, 0
        %3175 = vmatprep.subr.mxu0 0.0
        %3176 = vmatpush1.msra.mxu0 0.0
        %3177 = vmatprep.subr.mxu0 0.0
        %3178 = vmatpush1.msra.mxu0 0.0
        %3179 = vmatprep.subr.mxu0 0.0
        %3180 = vmatpush1.msra.mxu0 0.0
        %3181 = vmatprep.subr.mxu0 0.0
        %3182 = vmatpush1.msra.mxu0 0.0
        %3183 = vmatprep.subr.mxu0 0.0
        %3184 = vmatpush1.msra.mxu0 0.0
        %3185 = vmatprep.subr.mxu0 0.0
        %3186 = vmatpush1.msra.mxu0 0.0
        %3187 = vmatprep.subr.mxu0 0.0
        %3188 = vmatpush1.msra.mxu0 0.0
        %3189 = vmatprep.subr.mxu0 0.0
        %3190 = vmatpush1.msra.mxu0 0.0
        %3191 = vmatprep.subr.mxu0 0.0
        %3192 = vmatpush1.msra.mxu0 0.0
        %3193 = vmatprep.subr.mxu0 0.0
        %3194 = vmatpush1.msra.mxu0 0.0
        %3195 = vmatprep.subr.mxu0 0.0
        %3196 = vmatpush1.msra.mxu0 0.0
        %3197 = vmatprep.subr.mxu0 0.0
        %3198 = vmatpush1.msra.mxu0 0.0
        %3199 = vmatprep.subr.mxu0 0.0
        %3200 = vmatpush1.msra.mxu0 0.0
        %3201 = vmatprep.subr.mxu0 0.0
        %3202 = vmatpush1.msra.mxu0 0.0
        %3203 = vmatprep.subr.mxu0 %v1912
        %3204 = vmatpush1.msra.mxu0 %v1911
        %3205 = vmatprep.subr.mxu0 %v1908
        %3206 = vmatpush1.msra.mxu0 %v1907
        %3207 = vmatprep.subr.mxu0 0.0
        %3208 = vmatpush2.msra.mxu0 0.0
        %3209 = vmatprep.subr.mxu0 0.0
        %3210 = vmatpush2.msra.mxu0 0.0
        %3211 = vmatprep.subr.mxu0 0.0
        %3212 = vmatpush2.msra.mxu0 0.0
        %3213 = vmatprep.subr.mxu0 0.0
        %3214 = vmatpush2.msra.mxu0 0.0
        %3215 = vmatprep.subr.mxu0 0.0
        %3216 = vmatpush2.msra.mxu0 0.0
        %3217 = vmatprep.subr.mxu0 0.0
        %3218 = vmatpush2.msra.mxu0 0.0
        %3219 = vmatprep.subr.mxu0 0.0
        %3220 = vmatpush2.msra.mxu0 0.0
        %3221 = vmatprep.subr.mxu0 0.0
        %3222 = vmatpush2.msra.mxu0 0.0
        %3223 = vmatprep.subr.mxu0 0.0
        %3224 = vmatpush2.msra.mxu0 0.0
        %3225 = vmatprep.subr.mxu0 0.0
        %3226 = vmatpush2.msra.mxu0 0.0
        %3227 = vmatprep.subr.mxu0 0.0
        %3228 = vmatpush2.msra.mxu0 0.0
        %3229 = vmatprep.subr.mxu0 0.0
        %3230 = vmatpush2.msra.mxu0 0.0
        %3231 = vmatprep.subr.mxu0 0.0
        %3232 = vmatpush2.msra.mxu0 0.0
        %3233 = vmatprep.subr.mxu0 0.0
        %3234 = vmatpush2.msra.mxu0 0.0
        %3235 = vmatprep.subr.mxu0 0.0
        %3236 = vmatpush2.msra.mxu0 0.0
        %3237 = vmatprep.subr.mxu0 0.0
        %3238 = vmatpush2.msra.mxu0 0.0
        %3239 = vmatprep.mubr.f32.mxu0 0.0
        %3240 = vmatmul.mubr.f32.gmra.mxu0 %v3173
        %v3241 = vpop.f32.mrf.mxu0
        %v3242 = vadd.f32 0.0, %v3241
        %v3243 = vpop.f32.mrf.mxu0
        %v3244 = vadd.f32 0.0, %v3243
        %3245 = vdwg.mxu0
        %3246 = vmatprep.subr.mxu0 0.0
        %3247 = vmatpush1.msra.mxu0 0.0
        %3248 = vmatprep.subr.mxu0 0.0
        %3249 = vmatpush1.msra.mxu0 0.0
        %3250 = vmatprep.subr.mxu0 0.0
        %3251 = vmatpush1.msra.mxu0 0.0
        %3252 = vmatprep.subr.mxu0 0.0
        %3253 = vmatpush1.msra.mxu0 0.0
        %3254 = vmatprep.subr.mxu0 0.0
        %3255 = vmatpush1.msra.mxu0 0.0
        %3256 = vmatprep.subr.mxu0 0.0
        %3257 = vmatpush1.msra.mxu0 0.0
        %3258 = vmatprep.subr.mxu0 0.0
        %3259 = vmatpush1.msra.mxu0 0.0
        %3260 = vmatprep.subr.mxu0 0.0
        %3261 = vmatpush1.msra.mxu0 0.0
        %3262 = vmatprep.subr.mxu0 0.0
        %3263 = vmatpush1.msra.mxu0 0.0
        %3264 = vmatprep.subr.mxu0 0.0
        %3265 = vmatpush1.msra.mxu0 0.0
        %3266 = vmatprep.subr.mxu0 0.0
        %3267 = vmatpush1.msra.mxu0 0.0
        %3268 = vmatprep.subr.mxu0 0.0
        %3269 = vmatpush1.msra.mxu0 0.0
        %3270 = vmatprep.subr.mxu0 0.0
        %3271 = vmatpush1.msra.mxu0 0.0
        %3272 = vmatprep.subr.mxu0 0.0
        %3273 = vmatpush1.msra.mxu0 0.0
        %3274 = vmatprep.subr.mxu0 %v1914
        %3275 = vmatpush1.msra.mxu0 %v1913
        %3276 = vmatprep.subr.mxu0 %v1910
        %3277 = vmatpush1.msra.mxu0 %v1909
        %3278 = vmatprep.subr.mxu0 0.0
        %3279 = vmatpush2.msra.mxu0 0.0
        %3280 = vmatprep.subr.mxu0 0.0
        %3281 = vmatpush2.msra.mxu0 0.0
        %3282 = vmatprep.subr.mxu0 0.0
        %3283 = vmatpush2.msra.mxu0 0.0
        %3284 = vmatprep.subr.mxu0 0.0
        %3285 = vmatpush2.msra.mxu0 0.0
        %3286 = vmatprep.subr.mxu0 0.0
        %3287 = vmatpush2.msra.mxu0 0.0
        %3288 = vmatprep.subr.mxu0 0.0
        %3289 = vmatpush2.msra.mxu0 0.0
        %3290 = vmatprep.subr.mxu0 0.0
        %3291 = vmatpush2.msra.mxu0 0.0
        %3292 = vmatprep.subr.mxu0 0.0
        %3293 = vmatpush2.msra.mxu0 0.0
        %3294 = vmatprep.subr.mxu0 0.0
        %3295 = vmatpush2.msra.mxu0 0.0
        %3296 = vmatprep.subr.mxu0 0.0
        %3297 = vmatpush2.msra.mxu0 0.0
        %3298 = vmatprep.subr.mxu0 0.0
        %3299 = vmatpush2.msra.mxu0 0.0
        %3300 = vmatprep.subr.mxu0 0.0
        %3301 = vmatpush2.msra.mxu0 0.0
        %3302 = vmatprep.subr.mxu0 0.0
        %3303 = vmatpush2.msra.mxu0 0.0
        %3304 = vmatprep.subr.mxu0 0.0
        %3305 = vmatpush2.msra.mxu0 0.0
        %3306 = vmatprep.subr.mxu0 0.0
        %3307 = vmatpush2.msra.mxu0 0.0
        %3308 = vmatprep.subr.mxu0 0.0
        %3309 = vmatpush2.msra.mxu0 0.0
        %3310 = vmatprep.mubr.f32.mxu0 0.0
        %3311 = vmatmul.mubr.f32.gmra.mxu0 %v3173
        %v3312 = vpop.f32.mrf.mxu0
        %v3313 = vadd.f32 0.0, %v3312
        %v3314 = vpop.f32.mrf.mxu0
        %v3315 = vadd.f32 0.0, %v3314
        %3316 = vdwg.mxu0
        %s3317 = scalar_lea.vmem [#allocation9], 3072
        %v3318 = vld [vmem:[%s3317] sm:$0xff]
        %v3319 = vld [vmem:[%s3317 + $0x8] sm:$0xff]
        %v3320 = vld [vmem:[%s3317 + $0x10] sm:$0xff]
        %v3321 = vld [vmem:[%s3317 + $0x18] sm:$0xff]
        %v3322 = vld [vmem:[%s3317 + $0x20] sm:$0xff]
        %v3323 = vld [vmem:[%s3317 + $0x28] sm:$0xff]
        %v3324 = vld [vmem:[%s3317 + $0x30] sm:$0xff]
        %v3325 = vld [vmem:[%s3317 + $0x38] sm:$0xff]
        %v3326 = vld [vmem:[%s3317 + $0x40] sm:$0xff]
        %v3327 = vld [vmem:[%s3317 + $0x48] sm:$0xff]
        %v3328 = vld [vmem:[%s3317 + $0x50] sm:$0xff]
        %v3329 = vld [vmem:[%s3317 + $0x58] sm:$0xff]
        %v3330 = vld [vmem:[%s3317 + $0x60] sm:$0xff]
        %v3331 = vld [vmem:[%s3317 + $0x68] sm:$0xff]
        %v3332 = vld [vmem:[%s3317 + $0x70] sm:$0xff]
        %v3333 = vld [vmem:[%s3317 + $0x78] sm:$0xff]
        %v3334 = vld [vmem:[%s3317 + $0x80] sm:$0xff]
        %v3335 = vld [vmem:[%s3317 + $0x88] sm:$0xff]
        %v3336 = vld [vmem:[%s3317 + $0x90] sm:$0xff]
        %v3337 = vld [vmem:[%s3317 + $0x98] sm:$0xff]
        %v3338 = vld [vmem:[%s3317 + $0xa0] sm:$0xff]
        %v3339 = vld [vmem:[%s3317 + $0xa8] sm:$0xff]
        %v3340 = vld [vmem:[%s3317 + $0xb0] sm:$0xff]
        %v3341 = vld [vmem:[%s3317 + $0xb8] sm:$0xff]
        %v3342 = vld [vmem:[%s3317 + $0xc0] sm:$0xff]
        %v3343 = vld [vmem:[%s3317 + $0xc8] sm:$0xff]
        %v3344 = vld [vmem:[%s3317 + $0xd0] sm:$0xff]
        %v3345 = vld [vmem:[%s3317 + $0xd8] sm:$0xff]
        %v3346 = vld [vmem:[%s3317 + $0xe0] sm:$0xff]
        %v3347 = vld [vmem:[%s3317 + $0xe8] sm:$0xff]
        %v3348 = vld [vmem:[%s3317 + $0xf0] sm:$0xff]
        %v3349 = vld [vmem:[%s3317 + $0xf8] sm:$0xff]
        %v3350 = vld [vmem:[%s3317 + $0x100] sm:$0xff]
        %v3351 = vld [vmem:[%s3317 + $0x108] sm:$0xff]
        %v3352 = vld [vmem:[%s3317 + $0x110] sm:$0xff]
        %v3353 = vld [vmem:[%s3317 + $0x118] sm:$0xff]
        %v3354 = vld [vmem:[%s3317 + $0x120] sm:$0xff]
        %v3355 = vld [vmem:[%s3317 + $0x128] sm:$0xff]
        %v3356 = vld [vmem:[%s3317 + $0x130] sm:$0xff]
        %v3357 = vld [vmem:[%s3317 + $0x138] sm:$0xff]
        %v3358 = vld [vmem:[%s3317 + $0x140] sm:$0xff]
        %v3359 = vld [vmem:[%s3317 + $0x148] sm:$0xff]
        %v3360 = vld [vmem:[%s3317 + $0x150] sm:$0xff]
        %v3361 = vld [vmem:[%s3317 + $0x158] sm:$0xff]
        %v3362 = vld [vmem:[%s3317 + $0x160] sm:$0xff]
        %v3363 = vld [vmem:[%s3317 + $0x168] sm:$0xff]
        %v3364 = vld [vmem:[%s3317 + $0x170] sm:$0xff]
        %v3365 = vld [vmem:[%s3317 + $0x178] sm:$0xff]
        %v3366 = vld [vmem:[%s3317 + $0x180] sm:$0xff]
        %v3367 = vld [vmem:[%s3317 + $0x188] sm:$0xff]
        %v3368 = vld [vmem:[%s3317 + $0x190] sm:$0xff]
        %v3369 = vld [vmem:[%s3317 + $0x198] sm:$0xff]
        %v3370 = vld [vmem:[%s3317 + $0x1a0] sm:$0xff]
        %v3371 = vld [vmem:[%s3317 + $0x1a8] sm:$0xff]
        %v3372 = vld [vmem:[%s3317 + $0x1b0] sm:$0xff]
        %v3373 = vld [vmem:[%s3317 + $0x1b8] sm:$0xff]
        %v3374 = vld [vmem:[%s3317 + $0x1c0] sm:$0xff]
        %v3375 = vld [vmem:[%s3317 + $0x1c8] sm:$0xff]
        %v3376 = vld [vmem:[%s3317 + $0x1d0] sm:$0xff]
        %v3377 = vld [vmem:[%s3317 + $0x1d8] sm:$0xff]
        %v3378 = vld [vmem:[%s3317 + $0x1e0] sm:$0xff]
        %v3379 = vld [vmem:[%s3317 + $0x1e8] sm:$0xff]
        %v3380 = vld [vmem:[%s3317 + $0x1f0] sm:$0xff]
        %v3381 = vld [vmem:[%s3317 + $0x1f8] sm:$0xff]
        %v3382 = vld [vmem:[%s3317 + $0x200] sm:$0xff]
        %v3383 = vld [vmem:[%s3317 + $0x208] sm:$0xff]
        %v3384 = vld [vmem:[%s3317 + $0x210] sm:$0xff]
        %v3385 = vld [vmem:[%s3317 + $0x218] sm:$0xff]
        %v3386 = vld [vmem:[%s3317 + $0x220] sm:$0xff]
        %v3387 = vld [vmem:[%s3317 + $0x228] sm:$0xff]
        %v3388 = vld [vmem:[%s3317 + $0x230] sm:$0xff]
        %v3389 = vld [vmem:[%s3317 + $0x238] sm:$0xff]
        %v3390 = vld [vmem:[%s3317 + $0x240] sm:$0xff]
        %v3391 = vld [vmem:[%s3317 + $0x248] sm:$0xff]
        %v3392 = vld [vmem:[%s3317 + $0x250] sm:$0xff]
        %v3393 = vld [vmem:[%s3317 + $0x258] sm:$0xff]
        %v3394 = vld [vmem:[%s3317 + $0x260] sm:$0xff]
        %v3395 = vld [vmem:[%s3317 + $0x268] sm:$0xff]
        %v3396 = vld [vmem:[%s3317 + $0x270] sm:$0xff]
        %v3397 = vld [vmem:[%s3317 + $0x278] sm:$0xff]
        %v3398 = vld [vmem:[%s3317 + $0x280] sm:$0xff]
        %v3399 = vld [vmem:[%s3317 + $0x288] sm:$0xff]
        %v3400 = vld [vmem:[%s3317 + $0x290] sm:$0xff]
        %v3401 = vld [vmem:[%s3317 + $0x298] sm:$0xff]
        %v3402 = vld [vmem:[%s3317 + $0x2a0] sm:$0xff]
        %v3403 = vld [vmem:[%s3317 + $0x2a8] sm:$0xff]
        %v3404 = vld [vmem:[%s3317 + $0x2b0] sm:$0xff]
        %v3405 = vld [vmem:[%s3317 + $0x2b8] sm:$0xff]
        %v3406 = vld [vmem:[%s3317 + $0x2c0] sm:$0xff]
        %v3407 = vld [vmem:[%s3317 + $0x2c8] sm:$0xff]
        %v3408 = vld [vmem:[%s3317 + $0x2d0] sm:$0xff]
        %v3409 = vld [vmem:[%s3317 + $0x2d8] sm:$0xff]
        %v3410 = vld [vmem:[%s3317 + $0x2e0] sm:$0xff]
        %v3411 = vld [vmem:[%s3317 + $0x2e8] sm:$0xff]
        %v3412 = vld [vmem:[%s3317 + $0x2f0] sm:$0xff]
        %v3413 = vld [vmem:[%s3317 + $0x2f8] sm:$0xff]
        %v3414 = vld [vmem:[%s3317 + $0x300] sm:$0xff]
        %v3415 = vld [vmem:[%s3317 + $0x308] sm:$0xff]
        %v3416 = vld [vmem:[%s3317 + $0x310] sm:$0xff]
        %v3417 = vld [vmem:[%s3317 + $0x318] sm:$0xff]
        %v3418 = vld [vmem:[%s3317 + $0x320] sm:$0xff]
        %v3419 = vld [vmem:[%s3317 + $0x328] sm:$0xff]
        %v3420 = vld [vmem:[%s3317 + $0x330] sm:$0xff]
        %v3421 = vld [vmem:[%s3317 + $0x338] sm:$0xff]
        %v3422 = vld [vmem:[%s3317 + $0x340] sm:$0xff]
        %v3423 = vld [vmem:[%s3317 + $0x348] sm:$0xff]
        %v3424 = vld [vmem:[%s3317 + $0x350] sm:$0xff]
        %v3425 = vld [vmem:[%s3317 + $0x358] sm:$0xff]
        %v3426 = vld [vmem:[%s3317 + $0x360] sm:$0xff]
        %v3427 = vld [vmem:[%s3317 + $0x368] sm:$0xff]
        %v3428 = vld [vmem:[%s3317 + $0x370] sm:$0xff]
        %v3429 = vld [vmem:[%s3317 + $0x378] sm:$0xff]
        %v3430 = vld [vmem:[%s3317 + $0x380] sm:$0xff]
        %v3431 = vld [vmem:[%s3317 + $0x388] sm:$0xff]
        %v3432 = vld [vmem:[%s3317 + $0x390] sm:$0xff]
        %v3433 = vld [vmem:[%s3317 + $0x398] sm:$0xff]
        %v3434 = vld [vmem:[%s3317 + $0x3a0] sm:$0xff]
        %v3435 = vld [vmem:[%s3317 + $0x3a8] sm:$0xff]
        %v3436 = vld [vmem:[%s3317 + $0x3b0] sm:$0xff]
        %v3437 = vld [vmem:[%s3317 + $0x3b8] sm:$0xff]
        %v3438 = vld [vmem:[%s3317 + $0x3c0] sm:$0xff]
        %v3439 = vld [vmem:[%s3317 + $0x3c8] sm:$0xff]
        %v3440 = vld [vmem:[%s3317 + $0x3d0] sm:$0xff]
        %v3441 = vld [vmem:[%s3317 + $0x3d8] sm:$0xff]
        %v3442 = vld [vmem:[%s3317 + $0x3e0] sm:$0xff]
        %v3443 = vld [vmem:[%s3317 + $0x3e8] sm:$0xff]
        %v3444 = vld [vmem:[%s3317 + $0x3f0] sm:$0xff]
        %v3445 = vld [vmem:[%s3317 + $0x3f8] sm:$0xff]
        %3446 = vmatprep.subr.mxu0 %v3349
        %3447 = vmatpush1.msra.mxu0 %v3348
        %3448 = vmatprep.subr.mxu0 %v3347
        %3449 = vmatpush1.msra.mxu0 %v3346
        %3450 = vmatprep.subr.mxu0 %v3345
        %3451 = vmatpush1.msra.mxu0 %v3344
        %3452 = vmatprep.subr.mxu0 %v3343
        %3453 = vmatpush1.msra.mxu0 %v3342
        %3454 = vmatprep.subr.mxu0 %v3341
        %3455 = vmatpush1.msra.mxu0 %v3340
        %3456 = vmatprep.subr.mxu0 %v3339
        %3457 = vmatpush1.msra.mxu0 %v3338
        %3458 = vmatprep.subr.mxu0 %v3337
        %3459 = vmatpush1.msra.mxu0 %v3336
        %3460 = vmatprep.subr.mxu0 %v3335
        %3461 = vmatpush1.msra.mxu0 %v3334
        %3462 = vmatprep.subr.mxu0 %v3333
        %3463 = vmatpush1.msra.mxu0 %v3332
        %3464 = vmatprep.subr.mxu0 %v3331
        %3465 = vmatpush1.msra.mxu0 %v3330
        %3466 = vmatprep.subr.mxu0 %v3329
        %3467 = vmatpush1.msra.mxu0 %v3328
        %3468 = vmatprep.subr.mxu0 %v3327
        %3469 = vmatpush1.msra.mxu0 %v3326
        %3470 = vmatprep.subr.mxu0 %v3325
        %3471 = vmatpush1.msra.mxu0 %v3324
        %3472 = vmatprep.subr.mxu0 %v3323
        %3473 = vmatpush1.msra.mxu0 %v3322
        %3474 = vmatprep.subr.mxu0 %v3321
        %3475 = vmatpush1.msra.mxu0 %v3320
        %3476 = vmatprep.subr.mxu0 %v3319
        %3477 = vmatpush1.msra.mxu0 %v3318
        %3478 = vmatprep.subr.mxu0 %v3381
        %3479 = vmatpush2.msra.mxu0 %v3380
        %3480 = vmatprep.subr.mxu0 %v3379
        %3481 = vmatpush2.msra.mxu0 %v3378
        %3482 = vmatprep.subr.mxu0 %v3377
        %3483 = vmatpush2.msra.mxu0 %v3376
        %3484 = vmatprep.subr.mxu0 %v3375
        %3485 = vmatpush2.msra.mxu0 %v3374
        %3486 = vmatprep.subr.mxu0 %v3373
        %3487 = vmatpush2.msra.mxu0 %v3372
        %3488 = vmatprep.subr.mxu0 %v3371
        %3489 = vmatpush2.msra.mxu0 %v3370
        %3490 = vmatprep.subr.mxu0 %v3369
        %3491 = vmatpush2.msra.mxu0 %v3368
        %3492 = vmatprep.subr.mxu0 %v3367
        %3493 = vmatpush2.msra.mxu0 %v3366
        %3494 = vmatprep.subr.mxu0 %v3365
        %3495 = vmatpush2.msra.mxu0 %v3364
        %3496 = vmatprep.subr.mxu0 %v3363
        %3497 = vmatpush2.msra.mxu0 %v3362
        %3498 = vmatprep.subr.mxu0 %v3361
        %3499 = vmatpush2.msra.mxu0 %v3360
        %3500 = vmatprep.subr.mxu0 %v3359
        %3501 = vmatpush2.msra.mxu0 %v3358
        %3502 = vmatprep.subr.mxu0 %v3357
        %3503 = vmatpush2.msra.mxu0 %v3356
        %3504 = vmatprep.subr.mxu0 %v3355
        %3505 = vmatpush2.msra.mxu0 %v3354
        %3506 = vmatprep.subr.mxu0 %v3353
        %3507 = vmatpush2.msra.mxu0 %v3352
        %3508 = vmatprep.subr.mxu0 %v3351
        %3509 = vmatpush2.msra.mxu0 %v3350
        %3510 = vmatprep.mubr.f32.mxu0 %v3244
        %3511 = vmatmul.mubr.f32.gmra.mxu0 %v3242
        %v3512 = vpop.f32.mrf.mxu0
        %v3513 = vadd.f32 0.0, %v3512
        %v3514 = vpop.f32.mrf.mxu0
        %v3515 = vadd.f32 0.0, %v3514
        %3516 = vdwg.mxu0
        %3517 = vmatprep.subr.mxu0 %v3413
        %3518 = vmatpush1.msra.mxu0 %v3412
        %3519 = vmatprep.subr.mxu0 %v3411
        %3520 = vmatpush1.msra.mxu0 %v3410
        %3521 = vmatprep.subr.mxu0 %v3409
        %3522 = vmatpush1.msra.mxu0 %v3408
        %3523 = vmatprep.subr.mxu0 %v3407
        %3524 = vmatpush1.msra.mxu0 %v3406
        %3525 = vmatprep.subr.mxu0 %v3405
        %3526 = vmatpush1.msra.mxu0 %v3404
        %3527 = vmatprep.subr.mxu0 %v3403
        %3528 = vmatpush1.msra.mxu0 %v3402
        %3529 = vmatprep.subr.mxu0 %v3401
        %3530 = vmatpush1.msra.mxu0 %v3400
        %3531 = vmatprep.subr.mxu0 %v3399
        %3532 = vmatpush1.msra.mxu0 %v3398
        %3533 = vmatprep.subr.mxu0 %v3397
        %3534 = vmatpush1.msra.mxu0 %v3396
        %3535 = vmatprep.subr.mxu0 %v3395
        %3536 = vmatpush1.msra.mxu0 %v3394
        %3537 = vmatprep.subr.mxu0 %v3393
        %3538 = vmatpush1.msra.mxu0 %v3392
        %3539 = vmatprep.subr.mxu0 %v3391
        %3540 = vmatpush1.msra.mxu0 %v3390
        %3541 = vmatprep.subr.mxu0 %v3389
        %3542 = vmatpush1.msra.mxu0 %v3388
        %3543 = vmatprep.subr.mxu0 %v3387
        %3544 = vmatpush1.msra.mxu0 %v3386
        %3545 = vmatprep.subr.mxu0 %v3385
        %3546 = vmatpush1.msra.mxu0 %v3384
        %3547 = vmatprep.subr.mxu0 %v3383
        %3548 = vmatpush1.msra.mxu0 %v3382
        %3549 = vmatprep.subr.mxu0 %v3445
        %3550 = vmatpush2.msra.mxu0 %v3444
        %3551 = vmatprep.subr.mxu0 %v3443
        %3552 = vmatpush2.msra.mxu0 %v3442
        %3553 = vmatprep.subr.mxu0 %v3441
        %3554 = vmatpush2.msra.mxu0 %v3440
        %3555 = vmatprep.subr.mxu0 %v3439
        %3556 = vmatpush2.msra.mxu0 %v3438
        %3557 = vmatprep.subr.mxu0 %v3437
        %3558 = vmatpush2.msra.mxu0 %v3436
        %3559 = vmatprep.subr.mxu0 %v3435
        %3560 = vmatpush2.msra.mxu0 %v3434
        %3561 = vmatprep.subr.mxu0 %v3433
        %3562 = vmatpush2.msra.mxu0 %v3432
        %3563 = vmatprep.subr.mxu0 %v3431
        %3564 = vmatpush2.msra.mxu0 %v3430
        %3565 = vmatprep.subr.mxu0 %v3429
        %3566 = vmatpush2.msra.mxu0 %v3428
        %3567 = vmatprep.subr.mxu0 %v3427
        %3568 = vmatpush2.msra.mxu0 %v3426
        %3569 = vmatprep.subr.mxu0 %v3425
        %3570 = vmatpush2.msra.mxu0 %v3424
        %3571 = vmatprep.subr.mxu0 %v3423
        %3572 = vmatpush2.msra.mxu0 %v3422
        %3573 = vmatprep.subr.mxu0 %v3421
        %3574 = vmatpush2.msra.mxu0 %v3420
        %3575 = vmatprep.subr.mxu0 %v3419
        %3576 = vmatpush2.msra.mxu0 %v3418
        %3577 = vmatprep.subr.mxu0 %v3417
        %3578 = vmatpush2.msra.mxu0 %v3416
        %3579 = vmatprep.subr.mxu0 %v3415
        %3580 = vmatpush2.msra.mxu0 %v3414
        %3581 = vmatprep.mubr.f32.mxu0 %v3315
        %3582 = vmatmul.mubr.f32.gmra.mxu0 %v3313
        %v3583 = vpop.f32.mrf.mxu0
        %v3584 = vadd.f32 %v3513, %v3583
        %v3585 = vpop.f32.mrf.mxu0
        %v3586 = vadd.f32 %v3515, %v3585
        %3587 = vdwg.mxu0
        %v3588 = vadd.f32 %v3168, %v3584
        %v3589 = vadd.f32 %v3169, %v3586
        %v3590 = vld [vmem:[#allocation10] sm:$0x3]
        %v3592 = vlaneseq
        %v3593 = vshrl.u32 %v3592, 7
        %v3594 = vsub.s32 0, %v3593
        %v3595 = vrot.slane %v3590, %v3594
        %v3596 = vlaneseq
        %v3597 = vshrl.u32 %v3596, 7
        %v3598 = vsub.s32 1, %v3597
        %v3599 = vrot.slane %v3590, %v3598
        %v3602 = vadd.f32 %v3588, %v3595
        %v3603 = vadd.f32 %v3589, %v3599
        %v3604 = vmax.f32 %v3602, 0.0
        %v3605 = vmax.f32 %v3603, 0.0
        %v3606 = vld [vmem:[#allocation12] sm:$0xf]
        %vm3607 = vcmask 64512
        %v3609 = vsel %vm3607, %v3606, 0
        %3611 = vmatprep.subr.mxu0 0.0
        %3612 = vmatpush1.msra.mxu0 0.0
        %3613 = vmatprep.subr.mxu0 0.0
        %3614 = vmatpush1.msra.mxu0 0.0
        %3615 = vmatprep.subr.mxu0 0.0
        %3616 = vmatpush1.msra.mxu0 0.0
        %3617 = vmatprep.subr.mxu0 0.0
        %3618 = vmatpush1.msra.mxu0 0.0
        %3619 = vmatprep.subr.mxu0 0.0
        %3620 = vmatpush1.msra.mxu0 0.0
        %3621 = vmatprep.subr.mxu0 0.0
        %3622 = vmatpush1.msra.mxu0 0.0
        %3623 = vmatprep.subr.mxu0 0.0
        %3624 = vmatpush1.msra.mxu0 0.0
        %3625 = vmatprep.subr.mxu0 0.0
        %3626 = vmatpush1.msra.mxu0 0.0
        %3627 = vmatprep.subr.mxu0 0.0
        %3628 = vmatpush1.msra.mxu0 0.0
        %3629 = vmatprep.subr.mxu0 0.0
        %3630 = vmatpush1.msra.mxu0 0.0
        %3631 = vmatprep.subr.mxu0 0.0
        %3632 = vmatpush1.msra.mxu0 0.0
        %3633 = vmatprep.subr.mxu0 0.0
        %3634 = vmatpush1.msra.mxu0 0.0
        %3635 = vmatprep.subr.mxu0 0.0
        %3636 = vmatpush1.msra.mxu0 0.0
        %3637 = vmatprep.subr.mxu0 0.0
        %3638 = vmatpush1.msra.mxu0 0.0
        %3639 = vmatprep.subr.mxu0 0.0
        %3640 = vmatpush1.msra.mxu0 0.0
        %3641 = vmatprep.subr.mxu0 %v3605
        %3642 = vmatpush1.msra.mxu0 %v3604
        %3643 = vmatprep.subr.mxu0 0.0
        %3644 = vmatpush2.msra.mxu0 0.0
        %3645 = vmatprep.subr.mxu0 0.0
        %3646 = vmatpush2.msra.mxu0 0.0
        %3647 = vmatprep.subr.mxu0 0.0
        %3648 = vmatpush2.msra.mxu0 0.0
        %3649 = vmatprep.subr.mxu0 0.0
        %3650 = vmatpush2.msra.mxu0 0.0
        %3651 = vmatprep.subr.mxu0 0.0
        %3652 = vmatpush2.msra.mxu0 0.0
        %3653 = vmatprep.subr.mxu0 0.0
        %3654 = vmatpush2.msra.mxu0 0.0
        %3655 = vmatprep.subr.mxu0 0.0
        %3656 = vmatpush2.msra.mxu0 0.0
        %3657 = vmatprep.subr.mxu0 0.0
        %3658 = vmatpush2.msra.mxu0 0.0
        %3659 = vmatprep.subr.mxu0 0.0
        %3660 = vmatpush2.msra.mxu0 0.0
        %3661 = vmatprep.subr.mxu0 0.0
        %3662 = vmatpush2.msra.mxu0 0.0
        %3663 = vmatprep.subr.mxu0 0.0
        %3664 = vmatpush2.msra.mxu0 0.0
        %3665 = vmatprep.subr.mxu0 0.0
        %3666 = vmatpush2.msra.mxu0 0.0
        %3667 = vmatprep.subr.mxu0 0.0
        %3668 = vmatpush2.msra.mxu0 0.0
        %3669 = vmatprep.subr.mxu0 0.0
        %3670 = vmatpush2.msra.mxu0 0.0
        %3671 = vmatprep.subr.mxu0 0.0
        %3672 = vmatpush2.msra.mxu0 0.0
        %3673 = vmatprep.subr.mxu0 0.0
        %3674 = vmatpush2.msra.mxu0 0.0
        %3675 = vmatprep.mubr.f32.mxu0 0.0
        %3676 = vmatmul.mubr.f32.gmra.mxu0 %v3609
        %v3677 = vpop.f32.mrf.mxu0
        %v3678 = vadd.f32 0.0, %v3677
        %v3679 = vpop.f32.mrf.mxu0
        %v3680 = vadd.f32 0.0, %v3679
        %3681 = vdwg.mxu0
        %v3682 = vld [vmem:[#allocation13] sm:$0xff]
        %v3683 = vld [vmem:[#allocation13 + $0x8] sm:$0xff]
        %v3684 = vld [vmem:[#allocation13 + $0x10] sm:$0xff]
        %v3685 = vld [vmem:[#allocation13 + $0x18] sm:$0xff]
        %v3686 = vld [vmem:[#allocation13 + $0x20] sm:$0xff]
        %v3687 = vld [vmem:[#allocation13 + $0x28] sm:$0xff]
        %v3688 = vld [vmem:[#allocation13 + $0x30] sm:$0xff]
        %v3689 = vld [vmem:[#allocation13 + $0x38] sm:$0xff]
        %v3690 = vld [vmem:[#allocation13 + $0x40] sm:$0xff]
        %v3691 = vld [vmem:[#allocation13 + $0x48] sm:$0xff]
        %v3692 = vld [vmem:[#allocation13 + $0x50] sm:$0xff]
        %v3693 = vld [vmem:[#allocation13 + $0x58] sm:$0xff]
        %v3694 = vld [vmem:[#allocation13 + $0x60] sm:$0xff]
        %v3695 = vld [vmem:[#allocation13 + $0x68] sm:$0xff]
        %v3696 = vld [vmem:[#allocation13 + $0x70] sm:$0xff]
        %v3697 = vld [vmem:[#allocation13 + $0x78] sm:$0xff]
        %v3698 = vld [vmem:[#allocation13 + $0x80] sm:$0xff]
        %v3699 = vld [vmem:[#allocation13 + $0x88] sm:$0xff]
        %v3700 = vld [vmem:[#allocation13 + $0x90] sm:$0xff]
        %v3701 = vld [vmem:[#allocation13 + $0x98] sm:$0xff]
        %v3702 = vld [vmem:[#allocation13 + $0xa0] sm:$0xff]
        %v3703 = vld [vmem:[#allocation13 + $0xa8] sm:$0xff]
        %v3704 = vld [vmem:[#allocation13 + $0xb0] sm:$0xff]
        %v3705 = vld [vmem:[#allocation13 + $0xb8] sm:$0xff]
        %v3706 = vld [vmem:[#allocation13 + $0xc0] sm:$0xff]
        %v3707 = vld [vmem:[#allocation13 + $0xc8] sm:$0xff]
        %v3708 = vld [vmem:[#allocation13 + $0xd0] sm:$0xff]
        %v3709 = vld [vmem:[#allocation13 + $0xd8] sm:$0xff]
        %v3710 = vld [vmem:[#allocation13 + $0xe0] sm:$0xff]
        %v3711 = vld [vmem:[#allocation13 + $0xe8] sm:$0xff]
        %v3712 = vld [vmem:[#allocation13 + $0xf0] sm:$0xff]
        %v3713 = vld [vmem:[#allocation13 + $0xf8] sm:$0xff]
        %v3714 = vld [vmem:[#allocation13 + $0x100] sm:$0xff]
        %v3715 = vld [vmem:[#allocation13 + $0x108] sm:$0xff]
        %v3716 = vld [vmem:[#allocation13 + $0x110] sm:$0xff]
        %v3717 = vld [vmem:[#allocation13 + $0x118] sm:$0xff]
        %v3718 = vld [vmem:[#allocation13 + $0x120] sm:$0xff]
        %v3719 = vld [vmem:[#allocation13 + $0x128] sm:$0xff]
        %v3720 = vld [vmem:[#allocation13 + $0x130] sm:$0xff]
        %v3721 = vld [vmem:[#allocation13 + $0x138] sm:$0xff]
        %v3722 = vld [vmem:[#allocation13 + $0x140] sm:$0xff]
        %v3723 = vld [vmem:[#allocation13 + $0x148] sm:$0xff]
        %v3724 = vld [vmem:[#allocation13 + $0x150] sm:$0xff]
        %v3725 = vld [vmem:[#allocation13 + $0x158] sm:$0xff]
        %v3726 = vld [vmem:[#allocation13 + $0x160] sm:$0xff]
        %v3727 = vld [vmem:[#allocation13 + $0x168] sm:$0xff]
        %v3728 = vld [vmem:[#allocation13 + $0x170] sm:$0xff]
        %v3729 = vld [vmem:[#allocation13 + $0x178] sm:$0xff]
        %v3730 = vld [vmem:[#allocation13 + $0x180] sm:$0xff]
        %v3731 = vld [vmem:[#allocation13 + $0x188] sm:$0xff]
        %v3732 = vld [vmem:[#allocation13 + $0x190] sm:$0xff]
        %v3733 = vld [vmem:[#allocation13 + $0x198] sm:$0xff]
        %v3734 = vld [vmem:[#allocation13 + $0x1a0] sm:$0xff]
        %v3735 = vld [vmem:[#allocation13 + $0x1a8] sm:$0xff]
        %v3736 = vld [vmem:[#allocation13 + $0x1b0] sm:$0xff]
        %v3737 = vld [vmem:[#allocation13 + $0x1b8] sm:$0xff]
        %v3738 = vld [vmem:[#allocation13 + $0x1c0] sm:$0xff]
        %v3739 = vld [vmem:[#allocation13 + $0x1c8] sm:$0xff]
        %v3740 = vld [vmem:[#allocation13 + $0x1d0] sm:$0xff]
        %v3741 = vld [vmem:[#allocation13 + $0x1d8] sm:$0xff]
        %v3742 = vld [vmem:[#allocation13 + $0x1e0] sm:$0xff]
        %v3743 = vld [vmem:[#allocation13 + $0x1e8] sm:$0xff]
        %v3744 = vld [vmem:[#allocation13 + $0x1f0] sm:$0xff]
        %v3745 = vld [vmem:[#allocation13 + $0x1f8] sm:$0xff]
        %s3746 = scalar_lea.vmem [#allocation12], 4
        %v3747 = vld [vmem:[%s3746] sm:$0xf]
        %v3749 = vsel %vm3607, %v3747, 0
        %3751 = vmatprep.subr.mxu0 0.0
        %3752 = vmatpush1.msra.mxu0 0.0
        %3753 = vmatprep.subr.mxu0 0.0
        %3754 = vmatpush1.msra.mxu0 0.0
        %3755 = vmatprep.subr.mxu0 0.0
        %3756 = vmatpush1.msra.mxu0 0.0
        %3757 = vmatprep.subr.mxu0 0.0
        %3758 = vmatpush1.msra.mxu0 0.0
        %3759 = vmatprep.subr.mxu0 0.0
        %3760 = vmatpush1.msra.mxu0 0.0
        %3761 = vmatprep.subr.mxu0 0.0
        %3762 = vmatpush1.msra.mxu0 0.0
        %3763 = vmatprep.subr.mxu0 0.0
        %3764 = vmatpush1.msra.mxu0 0.0
        %3765 = vmatprep.subr.mxu0 0.0
        %3766 = vmatpush1.msra.mxu0 0.0
        %3767 = vmatprep.subr.mxu0 0.0
        %3768 = vmatpush1.msra.mxu0 0.0
        %3769 = vmatprep.subr.mxu0 0.0
        %3770 = vmatpush1.msra.mxu0 0.0
        %3771 = vmatprep.subr.mxu0 0.0
        %3772 = vmatpush1.msra.mxu0 0.0
        %3773 = vmatprep.subr.mxu0 0.0
        %3774 = vmatpush1.msra.mxu0 0.0
        %3775 = vmatprep.subr.mxu0 0.0
        %3776 = vmatpush1.msra.mxu0 0.0
        %3777 = vmatprep.subr.mxu0 0.0
        %3778 = vmatpush1.msra.mxu0 0.0
        %3779 = vmatprep.subr.mxu0 0.0
        %3780 = vmatpush1.msra.mxu0 0.0
        %3781 = vmatprep.subr.mxu0 %v3605
        %3782 = vmatpush1.msra.mxu0 %v3604
        %3783 = vmatprep.subr.mxu0 0.0
        %3784 = vmatpush2.msra.mxu0 0.0
        %3785 = vmatprep.subr.mxu0 0.0
        %3786 = vmatpush2.msra.mxu0 0.0
        %3787 = vmatprep.subr.mxu0 0.0
        %3788 = vmatpush2.msra.mxu0 0.0
        %3789 = vmatprep.subr.mxu0 0.0
        %3790 = vmatpush2.msra.mxu0 0.0
        %3791 = vmatprep.subr.mxu0 0.0
        %3792 = vmatpush2.msra.mxu0 0.0
        %3793 = vmatprep.subr.mxu0 0.0
        %3794 = vmatpush2.msra.mxu0 0.0
        %3795 = vmatprep.subr.mxu0 0.0
        %3796 = vmatpush2.msra.mxu0 0.0
        %3797 = vmatprep.subr.mxu0 0.0
        %3798 = vmatpush2.msra.mxu0 0.0
        %3799 = vmatprep.subr.mxu0 0.0
        %3800 = vmatpush2.msra.mxu0 0.0
        %3801 = vmatprep.subr.mxu0 0.0
        %3802 = vmatpush2.msra.mxu0 0.0
        %3803 = vmatprep.subr.mxu0 0.0
        %3804 = vmatpush2.msra.mxu0 0.0
        %3805 = vmatprep.subr.mxu0 0.0
        %3806 = vmatpush2.msra.mxu0 0.0
        %3807 = vmatprep.subr.mxu0 0.0
        %3808 = vmatpush2.msra.mxu0 0.0
        %3809 = vmatprep.subr.mxu0 0.0
        %3810 = vmatpush2.msra.mxu0 0.0
        %3811 = vmatprep.subr.mxu0 0.0
        %3812 = vmatpush2.msra.mxu0 0.0
        %3813 = vmatprep.subr.mxu0 0.0
        %3814 = vmatpush2.msra.mxu0 0.0
        %3815 = vmatprep.mubr.f32.mxu0 0.0
        %3816 = vmatmul.mubr.f32.gmra.mxu0 %v3749
        %v3817 = vpop.f32.mrf.mxu0
        %v3818 = vadd.f32 0.0, %v3817
        %v3819 = vpop.f32.mrf.mxu0
        %v3820 = vadd.f32 0.0, %v3819
        %3821 = vdwg.mxu0
        %s3822 = scalar_lea.vmem [#allocation13], 512
        %v3823 = vld [vmem:[%s3822] sm:$0xff]
        %v3824 = vld [vmem:[%s3822 + $0x8] sm:$0xff]
        %v3825 = vld [vmem:[%s3822 + $0x10] sm:$0xff]
        %v3826 = vld [vmem:[%s3822 + $0x18] sm:$0xff]
        %v3827 = vld [vmem:[%s3822 + $0x20] sm:$0xff]
        %v3828 = vld [vmem:[%s3822 + $0x28] sm:$0xff]
        %v3829 = vld [vmem:[%s3822 + $0x30] sm:$0xff]
        %v3830 = vld [vmem:[%s3822 + $0x38] sm:$0xff]
        %v3831 = vld [vmem:[%s3822 + $0x40] sm:$0xff]
        %v3832 = vld [vmem:[%s3822 + $0x48] sm:$0xff]
        %v3833 = vld [vmem:[%s3822 + $0x50] sm:$0xff]
        %v3834 = vld [vmem:[%s3822 + $0x58] sm:$0xff]
        %v3835 = vld [vmem:[%s3822 + $0x60] sm:$0xff]
        %v3836 = vld [vmem:[%s3822 + $0x68] sm:$0xff]
        %v3837 = vld [vmem:[%s3822 + $0x70] sm:$0xff]
        %v3838 = vld [vmem:[%s3822 + $0x78] sm:$0xff]
        %v3839 = vld [vmem:[%s3822 + $0x80] sm:$0xff]
        %v3840 = vld [vmem:[%s3822 + $0x88] sm:$0xff]
        %v3841 = vld [vmem:[%s3822 + $0x90] sm:$0xff]
        %v3842 = vld [vmem:[%s3822 + $0x98] sm:$0xff]
        %v3843 = vld [vmem:[%s3822 + $0xa0] sm:$0xff]
        %v3844 = vld [vmem:[%s3822 + $0xa8] sm:$0xff]
        %v3845 = vld [vmem:[%s3822 + $0xb0] sm:$0xff]
        %v3846 = vld [vmem:[%s3822 + $0xb8] sm:$0xff]
        %v3847 = vld [vmem:[%s3822 + $0xc0] sm:$0xff]
        %v3848 = vld [vmem:[%s3822 + $0xc8] sm:$0xff]
        %v3849 = vld [vmem:[%s3822 + $0xd0] sm:$0xff]
        %v3850 = vld [vmem:[%s3822 + $0xd8] sm:$0xff]
        %v3851 = vld [vmem:[%s3822 + $0xe0] sm:$0xff]
        %v3852 = vld [vmem:[%s3822 + $0xe8] sm:$0xff]
        %v3853 = vld [vmem:[%s3822 + $0xf0] sm:$0xff]
        %v3854 = vld [vmem:[%s3822 + $0xf8] sm:$0xff]
        %v3855 = vld [vmem:[%s3822 + $0x100] sm:$0xff]
        %v3856 = vld [vmem:[%s3822 + $0x108] sm:$0xff]
        %v3857 = vld [vmem:[%s3822 + $0x110] sm:$0xff]
        %v3858 = vld [vmem:[%s3822 + $0x118] sm:$0xff]
        %v3859 = vld [vmem:[%s3822 + $0x120] sm:$0xff]
        %v3860 = vld [vmem:[%s3822 + $0x128] sm:$0xff]
        %v3861 = vld [vmem:[%s3822 + $0x130] sm:$0xff]
        %v3862 = vld [vmem:[%s3822 + $0x138] sm:$0xff]
        %v3863 = vld [vmem:[%s3822 + $0x140] sm:$0xff]
        %v3864 = vld [vmem:[%s3822 + $0x148] sm:$0xff]
        %v3865 = vld [vmem:[%s3822 + $0x150] sm:$0xff]
        %v3866 = vld [vmem:[%s3822 + $0x158] sm:$0xff]
        %v3867 = vld [vmem:[%s3822 + $0x160] sm:$0xff]
        %v3868 = vld [vmem:[%s3822 + $0x168] sm:$0xff]
        %v3869 = vld [vmem:[%s3822 + $0x170] sm:$0xff]
        %v3870 = vld [vmem:[%s3822 + $0x178] sm:$0xff]
        %v3871 = vld [vmem:[%s3822 + $0x180] sm:$0xff]
        %v3872 = vld [vmem:[%s3822 + $0x188] sm:$0xff]
        %v3873 = vld [vmem:[%s3822 + $0x190] sm:$0xff]
        %v3874 = vld [vmem:[%s3822 + $0x198] sm:$0xff]
        %v3875 = vld [vmem:[%s3822 + $0x1a0] sm:$0xff]
        %v3876 = vld [vmem:[%s3822 + $0x1a8] sm:$0xff]
        %v3877 = vld [vmem:[%s3822 + $0x1b0] sm:$0xff]
        %v3878 = vld [vmem:[%s3822 + $0x1b8] sm:$0xff]
        %v3879 = vld [vmem:[%s3822 + $0x1c0] sm:$0xff]
        %v3880 = vld [vmem:[%s3822 + $0x1c8] sm:$0xff]
        %v3881 = vld [vmem:[%s3822 + $0x1d0] sm:$0xff]
        %v3882 = vld [vmem:[%s3822 + $0x1d8] sm:$0xff]
        %v3883 = vld [vmem:[%s3822 + $0x1e0] sm:$0xff]
        %v3884 = vld [vmem:[%s3822 + $0x1e8] sm:$0xff]
        %v3885 = vld [vmem:[%s3822 + $0x1f0] sm:$0xff]
        %v3886 = vld [vmem:[%s3822 + $0x1f8] sm:$0xff]
        %3887 = vmatprep.subr.mxu0 %v3854
        %3888 = vmatpush1.msra.mxu0 %v3853
        %3889 = vmatprep.subr.mxu0 %v3852
        %3890 = vmatpush1.msra.mxu0 %v3851
        %3891 = vmatprep.subr.mxu0 %v3850
        %3892 = vmatpush1.msra.mxu0 %v3849
        %3893 = vmatprep.subr.mxu0 %v3848
        %3894 = vmatpush1.msra.mxu0 %v3847
        %3895 = vmatprep.subr.mxu0 %v3846
        %3896 = vmatpush1.msra.mxu0 %v3845
        %3897 = vmatprep.subr.mxu0 %v3844
        %3898 = vmatpush1.msra.mxu0 %v3843
        %3899 = vmatprep.subr.mxu0 %v3842
        %3900 = vmatpush1.msra.mxu0 %v3841
        %3901 = vmatprep.subr.mxu0 %v3840
        %3902 = vmatpush1.msra.mxu0 %v3839
        %3903 = vmatprep.subr.mxu0 %v3838
        %3904 = vmatpush1.msra.mxu0 %v3837
        %3905 = vmatprep.subr.mxu0 %v3836
        %3906 = vmatpush1.msra.mxu0 %v3835
        %3907 = vmatprep.subr.mxu0 %v3834
        %3908 = vmatpush1.msra.mxu0 %v3833
        %3909 = vmatprep.subr.mxu0 %v3832
        %3910 = vmatpush1.msra.mxu0 %v3831
        %3911 = vmatprep.subr.mxu0 %v3830
        %3912 = vmatpush1.msra.mxu0 %v3829
        %3913 = vmatprep.subr.mxu0 %v3828
        %3914 = vmatpush1.msra.mxu0 %v3827
        %3915 = vmatprep.subr.mxu0 %v3826
        %3916 = vmatpush1.msra.mxu0 %v3825
        %3917 = vmatprep.subr.mxu0 %v3824
        %3918 = vmatpush1.msra.mxu0 %v3823
        %3919 = vmatprep.subr.mxu0 %v3886
        %3920 = vmatpush2.msra.mxu0 %v3885
        %3921 = vmatprep.subr.mxu0 %v3884
        %3922 = vmatpush2.msra.mxu0 %v3883
        %3923 = vmatprep.subr.mxu0 %v3882
        %3924 = vmatpush2.msra.mxu0 %v3881
        %3925 = vmatprep.subr.mxu0 %v3880
        %3926 = vmatpush2.msra.mxu0 %v3879
        %3927 = vmatprep.subr.mxu0 %v3878
        %3928 = vmatpush2.msra.mxu0 %v3877
        %3929 = vmatprep.subr.mxu0 %v3876
        %3930 = vmatpush2.msra.mxu0 %v3875
        %3931 = vmatprep.subr.mxu0 %v3874
        %3932 = vmatpush2.msra.mxu0 %v3873
        %3933 = vmatprep.subr.mxu0 %v3872
        %3934 = vmatpush2.msra.mxu0 %v3871
        %3935 = vmatprep.subr.mxu0 %v3870
        %3936 = vmatpush2.msra.mxu0 %v3869
        %3937 = vmatprep.subr.mxu0 %v3868
        %3938 = vmatpush2.msra.mxu0 %v3867
        %3939 = vmatprep.subr.mxu0 %v3866
        %3940 = vmatpush2.msra.mxu0 %v3865
        %3941 = vmatprep.subr.mxu0 %v3864
        %3942 = vmatpush2.msra.mxu0 %v3863
        %3943 = vmatprep.subr.mxu0 %v3862
        %3944 = vmatpush2.msra.mxu0 %v3861
        %3945 = vmatprep.subr.mxu0 %v3860
        %3946 = vmatpush2.msra.mxu0 %v3859
        %3947 = vmatprep.subr.mxu0 %v3858
        %3948 = vmatpush2.msra.mxu0 %v3857
        %3949 = vmatprep.subr.mxu0 %v3856
        %3950 = vmatpush2.msra.mxu0 %v3855
        %3951 = vmatprep.mubr.f32.mxu0 %v3820
        %3952 = vmatmul.mubr.f32.gmra.mxu0 %v3818
        %v3953 = vpop.f32.mrf.mxu0
        %v3954 = vadd.f32 0.0, %v3953
        %v3955 = vpop.f32.mrf.mxu0
        %v3956 = vadd.f32 0.0, %v3955
        %3957 = vdwg.mxu0
        %3958 = vmatprep.subr.mxu0 %v3713
        %3959 = vmatpush1.msra.mxu0 %v3712
        %3960 = vmatprep.subr.mxu0 %v3711
        %3961 = vmatpush1.msra.mxu0 %v3710
        %3962 = vmatprep.subr.mxu0 %v3709
        %3963 = vmatpush1.msra.mxu0 %v3708
        %3964 = vmatprep.subr.mxu0 %v3707
        %3965 = vmatpush1.msra.mxu0 %v3706
        %3966 = vmatprep.subr.mxu0 %v3705
        %3967 = vmatpush1.msra.mxu0 %v3704
        %3968 = vmatprep.subr.mxu0 %v3703
        %3969 = vmatpush1.msra.mxu0 %v3702
        %3970 = vmatprep.subr.mxu0 %v3701
        %3971 = vmatpush1.msra.mxu0 %v3700
        %3972 = vmatprep.subr.mxu0 %v3699
        %3973 = vmatpush1.msra.mxu0 %v3698
        %3974 = vmatprep.subr.mxu0 %v3697
        %3975 = vmatpush1.msra.mxu0 %v3696
        %3976 = vmatprep.subr.mxu0 %v3695
        %3977 = vmatpush1.msra.mxu0 %v3694
        %3978 = vmatprep.subr.mxu0 %v3693
        %3979 = vmatpush1.msra.mxu0 %v3692
        %3980 = vmatprep.subr.mxu0 %v3691
        %3981 = vmatpush1.msra.mxu0 %v3690
        %3982 = vmatprep.subr.mxu0 %v3689
        %3983 = vmatpush1.msra.mxu0 %v3688
        %3984 = vmatprep.subr.mxu0 %v3687
        %3985 = vmatpush1.msra.mxu0 %v3686
        %3986 = vmatprep.subr.mxu0 %v3685
        %3987 = vmatpush1.msra.mxu0 %v3684
        %3988 = vmatprep.subr.mxu0 %v3683
        %3989 = vmatpush1.msra.mxu0 %v3682
        %3990 = vmatprep.subr.mxu0 %v3745
        %3991 = vmatpush2.msra.mxu0 %v3744
        %3992 = vmatprep.subr.mxu0 %v3743
        %3993 = vmatpush2.msra.mxu0 %v3742
        %3994 = vmatprep.subr.mxu0 %v3741
        %3995 = vmatpush2.msra.mxu0 %v3740
        %3996 = vmatprep.subr.mxu0 %v3739
        %3997 = vmatpush2.msra.mxu0 %v3738
        %3998 = vmatprep.subr.mxu0 %v3737
        %3999 = vmatpush2.msra.mxu0 %v3736
        %4000 = vmatprep.subr.mxu0 %v3735
        %4001 = vmatpush2.msra.mxu0 %v3734
        %4002 = vmatprep.subr.mxu0 %v3733
        %4003 = vmatpush2.msra.mxu0 %v3732
        %4004 = vmatprep.subr.mxu0 %v3731
        %4005 = vmatpush2.msra.mxu0 %v3730
        %4006 = vmatprep.subr.mxu0 %v3729
        %4007 = vmatpush2.msra.mxu0 %v3728
        %4008 = vmatprep.subr.mxu0 %v3727
        %4009 = vmatpush2.msra.mxu0 %v3726
        %4010 = vmatprep.subr.mxu0 %v3725
        %4011 = vmatpush2.msra.mxu0 %v3724
        %4012 = vmatprep.subr.mxu0 %v3723
        %4013 = vmatpush2.msra.mxu0 %v3722
        %4014 = vmatprep.subr.mxu0 %v3721
        %4015 = vmatpush2.msra.mxu0 %v3720
        %4016 = vmatprep.subr.mxu0 %v3719
        %4017 = vmatpush2.msra.mxu0 %v3718
        %4018 = vmatprep.subr.mxu0 %v3717
        %4019 = vmatpush2.msra.mxu0 %v3716
        %4020 = vmatprep.subr.mxu0 %v3715
        %4021 = vmatpush2.msra.mxu0 %v3714
        %4022 = vmatprep.mubr.f32.mxu0 %v3680
        %4023 = vmatmul.mubr.f32.gmra.mxu0 %v3678
        %v4024 = vpop.f32.mrf.mxu0
        %v4025 = vadd.f32 %v3954, %v4024
        %v4026 = vpop.f32.mrf.mxu0
        %v4027 = vadd.f32 %v3956, %v4026
        %4028 = vdwg.mxu0
        %s4029 = scalar_lea.vmem [#allocation12], 8
        %v4030 = vld [vmem:[%s4029] sm:$0xf]
        %v4032 = vsel %vm3607, %v4030, 0
        %4034 = vmatprep.subr.mxu0 0.0
        %4035 = vmatpush1.msra.mxu0 0.0
        %4036 = vmatprep.subr.mxu0 0.0
        %4037 = vmatpush1.msra.mxu0 0.0
        %4038 = vmatprep.subr.mxu0 0.0
        %4039 = vmatpush1.msra.mxu0 0.0
        %4040 = vmatprep.subr.mxu0 0.0
        %4041 = vmatpush1.msra.mxu0 0.0
        %4042 = vmatprep.subr.mxu0 0.0
        %4043 = vmatpush1.msra.mxu0 0.0
        %4044 = vmatprep.subr.mxu0 0.0
        %4045 = vmatpush1.msra.mxu0 0.0
        %4046 = vmatprep.subr.mxu0 0.0
        %4047 = vmatpush1.msra.mxu0 0.0
        %4048 = vmatprep.subr.mxu0 0.0
        %4049 = vmatpush1.msra.mxu0 0.0
        %4050 = vmatprep.subr.mxu0 0.0
        %4051 = vmatpush1.msra.mxu0 0.0
        %4052 = vmatprep.subr.mxu0 0.0
        %4053 = vmatpush1.msra.mxu0 0.0
        %4054 = vmatprep.subr.mxu0 0.0
        %4055 = vmatpush1.msra.mxu0 0.0
        %4056 = vmatprep.subr.mxu0 0.0
        %4057 = vmatpush1.msra.mxu0 0.0
        %4058 = vmatprep.subr.mxu0 0.0
        %4059 = vmatpush1.msra.mxu0 0.0
        %4060 = vmatprep.subr.mxu0 0.0
        %4061 = vmatpush1.msra.mxu0 0.0
        %4062 = vmatprep.subr.mxu0 0.0
        %4063 = vmatpush1.msra.mxu0 0.0
        %4064 = vmatprep.subr.mxu0 %v3605
        %4065 = vmatpush1.msra.mxu0 %v3604
        %4066 = vmatprep.subr.mxu0 0.0
        %4067 = vmatpush2.msra.mxu0 0.0
        %4068 = vmatprep.subr.mxu0 0.0
        %4069 = vmatpush2.msra.mxu0 0.0
        %4070 = vmatprep.subr.mxu0 0.0
        %4071 = vmatpush2.msra.mxu0 0.0
        %4072 = vmatprep.subr.mxu0 0.0
        %4073 = vmatpush2.msra.mxu0 0.0
        %4074 = vmatprep.subr.mxu0 0.0
        %4075 = vmatpush2.msra.mxu0 0.0
        %4076 = vmatprep.subr.mxu0 0.0
        %4077 = vmatpush2.msra.mxu0 0.0
        %4078 = vmatprep.subr.mxu0 0.0
        %4079 = vmatpush2.msra.mxu0 0.0
        %4080 = vmatprep.subr.mxu0 0.0
        %4081 = vmatpush2.msra.mxu0 0.0
        %4082 = vmatprep.subr.mxu0 0.0
        %4083 = vmatpush2.msra.mxu0 0.0
        %4084 = vmatprep.subr.mxu0 0.0
        %4085 = vmatpush2.msra.mxu0 0.0
        %4086 = vmatprep.subr.mxu0 0.0
        %4087 = vmatpush2.msra.mxu0 0.0
        %4088 = vmatprep.subr.mxu0 0.0
        %4089 = vmatpush2.msra.mxu0 0.0
        %4090 = vmatprep.subr.mxu0 0.0
        %4091 = vmatpush2.msra.mxu0 0.0
        %4092 = vmatprep.subr.mxu0 0.0
        %4093 = vmatpush2.msra.mxu0 0.0
        %4094 = vmatprep.subr.mxu0 0.0
        %4095 = vmatpush2.msra.mxu0 0.0
        %4096 = vmatprep.subr.mxu0 0.0
        %4097 = vmatpush2.msra.mxu0 0.0
        %4098 = vmatprep.mubr.f32.mxu0 0.0
        %4099 = vmatmul.mubr.f32.gmra.mxu0 %v4032
        %v4100 = vpop.f32.mrf.mxu0
        %v4101 = vadd.f32 0.0, %v4100
        %v4102 = vpop.f32.mrf.mxu0
        %v4103 = vadd.f32 0.0, %v4102
        %4104 = vdwg.mxu0
        %s4105 = scalar_lea.vmem [#allocation13], 1024
        %v4106 = vld [vmem:[%s4105] sm:$0xff]
        %v4107 = vld [vmem:[%s4105 + $0x8] sm:$0xff]
        %v4108 = vld [vmem:[%s4105 + $0x10] sm:$0xff]
        %v4109 = vld [vmem:[%s4105 + $0x18] sm:$0xff]
        %v4110 = vld [vmem:[%s4105 + $0x20] sm:$0xff]
        %v4111 = vld [vmem:[%s4105 + $0x28] sm:$0xff]
        %v4112 = vld [vmem:[%s4105 + $0x30] sm:$0xff]
        %v4113 = vld [vmem:[%s4105 + $0x38] sm:$0xff]
        %v4114 = vld [vmem:[%s4105 + $0x40] sm:$0xff]
        %v4115 = vld [vmem:[%s4105 + $0x48] sm:$0xff]
        %v4116 = vld [vmem:[%s4105 + $0x50] sm:$0xff]
        %v4117 = vld [vmem:[%s4105 + $0x58] sm:$0xff]
        %v4118 = vld [vmem:[%s4105 + $0x60] sm:$0xff]
        %v4119 = vld [vmem:[%s4105 + $0x68] sm:$0xff]
        %v4120 = vld [vmem:[%s4105 + $0x70] sm:$0xff]
        %v4121 = vld [vmem:[%s4105 + $0x78] sm:$0xff]
        %v4122 = vld [vmem:[%s4105 + $0x80] sm:$0xff]
        %v4123 = vld [vmem:[%s4105 + $0x88] sm:$0xff]
        %v4124 = vld [vmem:[%s4105 + $0x90] sm:$0xff]
        %v4125 = vld [vmem:[%s4105 + $0x98] sm:$0xff]
        %v4126 = vld [vmem:[%s4105 + $0xa0] sm:$0xff]
        %v4127 = vld [vmem:[%s4105 + $0xa8] sm:$0xff]
        %v4128 = vld [vmem:[%s4105 + $0xb0] sm:$0xff]
        %v4129 = vld [vmem:[%s4105 + $0xb8] sm:$0xff]
        %v4130 = vld [vmem:[%s4105 + $0xc0] sm:$0xff]
        %v4131 = vld [vmem:[%s4105 + $0xc8] sm:$0xff]
        %v4132 = vld [vmem:[%s4105 + $0xd0] sm:$0xff]
        %v4133 = vld [vmem:[%s4105 + $0xd8] sm:$0xff]
        %v4134 = vld [vmem:[%s4105 + $0xe0] sm:$0xff]
        %v4135 = vld [vmem:[%s4105 + $0xe8] sm:$0xff]
        %v4136 = vld [vmem:[%s4105 + $0xf0] sm:$0xff]
        %v4137 = vld [vmem:[%s4105 + $0xf8] sm:$0xff]
        %v4138 = vld [vmem:[%s4105 + $0x100] sm:$0xff]
        %v4139 = vld [vmem:[%s4105 + $0x108] sm:$0xff]
        %v4140 = vld [vmem:[%s4105 + $0x110] sm:$0xff]
        %v4141 = vld [vmem:[%s4105 + $0x118] sm:$0xff]
        %v4142 = vld [vmem:[%s4105 + $0x120] sm:$0xff]
        %v4143 = vld [vmem:[%s4105 + $0x128] sm:$0xff]
        %v4144 = vld [vmem:[%s4105 + $0x130] sm:$0xff]
        %v4145 = vld [vmem:[%s4105 + $0x138] sm:$0xff]
        %v4146 = vld [vmem:[%s4105 + $0x140] sm:$0xff]
        %v4147 = vld [vmem:[%s4105 + $0x148] sm:$0xff]
        %v4148 = vld [vmem:[%s4105 + $0x150] sm:$0xff]
        %v4149 = vld [vmem:[%s4105 + $0x158] sm:$0xff]
        %v4150 = vld [vmem:[%s4105 + $0x160] sm:$0xff]
        %v4151 = vld [vmem:[%s4105 + $0x168] sm:$0xff]
        %v4152 = vld [vmem:[%s4105 + $0x170] sm:$0xff]
        %v4153 = vld [vmem:[%s4105 + $0x178] sm:$0xff]
        %v4154 = vld [vmem:[%s4105 + $0x180] sm:$0xff]
        %v4155 = vld [vmem:[%s4105 + $0x188] sm:$0xff]
        %v4156 = vld [vmem:[%s4105 + $0x190] sm:$0xff]
        %v4157 = vld [vmem:[%s4105 + $0x198] sm:$0xff]
        %v4158 = vld [vmem:[%s4105 + $0x1a0] sm:$0xff]
        %v4159 = vld [vmem:[%s4105 + $0x1a8] sm:$0xff]
        %v4160 = vld [vmem:[%s4105 + $0x1b0] sm:$0xff]
        %v4161 = vld [vmem:[%s4105 + $0x1b8] sm:$0xff]
        %v4162 = vld [vmem:[%s4105 + $0x1c0] sm:$0xff]
        %v4163 = vld [vmem:[%s4105 + $0x1c8] sm:$0xff]
        %v4164 = vld [vmem:[%s4105 + $0x1d0] sm:$0xff]
        %v4165 = vld [vmem:[%s4105 + $0x1d8] sm:$0xff]
        %v4166 = vld [vmem:[%s4105 + $0x1e0] sm:$0xff]
        %v4167 = vld [vmem:[%s4105 + $0x1e8] sm:$0xff]
        %v4168 = vld [vmem:[%s4105 + $0x1f0] sm:$0xff]
        %v4169 = vld [vmem:[%s4105 + $0x1f8] sm:$0xff]
        %4170 = vmatprep.subr.mxu0 %v4137
        %4171 = vmatpush1.msra.mxu0 %v4136
        %4172 = vmatprep.subr.mxu0 %v4135
        %4173 = vmatpush1.msra.mxu0 %v4134
        %4174 = vmatprep.subr.mxu0 %v4133
        %4175 = vmatpush1.msra.mxu0 %v4132
        %4176 = vmatprep.subr.mxu0 %v4131
        %4177 = vmatpush1.msra.mxu0 %v4130
        %4178 = vmatprep.subr.mxu0 %v4129
        %4179 = vmatpush1.msra.mxu0 %v4128
        %4180 = vmatprep.subr.mxu0 %v4127
        %4181 = vmatpush1.msra.mxu0 %v4126
        %4182 = vmatprep.subr.mxu0 %v4125
        %4183 = vmatpush1.msra.mxu0 %v4124
        %4184 = vmatprep.subr.mxu0 %v4123
        %4185 = vmatpush1.msra.mxu0 %v4122
        %4186 = vmatprep.subr.mxu0 %v4121
        %4187 = vmatpush1.msra.mxu0 %v4120
        %4188 = vmatprep.subr.mxu0 %v4119
        %4189 = vmatpush1.msra.mxu0 %v4118
        %4190 = vmatprep.subr.mxu0 %v4117
        %4191 = vmatpush1.msra.mxu0 %v4116
        %4192 = vmatprep.subr.mxu0 %v4115
        %4193 = vmatpush1.msra.mxu0 %v4114
        %4194 = vmatprep.subr.mxu0 %v4113
        %4195 = vmatpush1.msra.mxu0 %v4112
        %4196 = vmatprep.subr.mxu0 %v4111
        %4197 = vmatpush1.msra.mxu0 %v4110
        %4198 = vmatprep.subr.mxu0 %v4109
        %4199 = vmatpush1.msra.mxu0 %v4108
        %4200 = vmatprep.subr.mxu0 %v4107
        %4201 = vmatpush1.msra.mxu0 %v4106
        %4202 = vmatprep.subr.mxu0 %v4169
        %4203 = vmatpush2.msra.mxu0 %v4168
        %4204 = vmatprep.subr.mxu0 %v4167
        %4205 = vmatpush2.msra.mxu0 %v4166
        %4206 = vmatprep.subr.mxu0 %v4165
        %4207 = vmatpush2.msra.mxu0 %v4164
        %4208 = vmatprep.subr.mxu0 %v4163
        %4209 = vmatpush2.msra.mxu0 %v4162
        %4210 = vmatprep.subr.mxu0 %v4161
        %4211 = vmatpush2.msra.mxu0 %v4160
        %4212 = vmatprep.subr.mxu0 %v4159
        %4213 = vmatpush2.msra.mxu0 %v4158
        %4214 = vmatprep.subr.mxu0 %v4157
        %4215 = vmatpush2.msra.mxu0 %v4156
        %4216 = vmatprep.subr.mxu0 %v4155
        %4217 = vmatpush2.msra.mxu0 %v4154
        %4218 = vmatprep.subr.mxu0 %v4153
        %4219 = vmatpush2.msra.mxu0 %v4152
        %4220 = vmatprep.subr.mxu0 %v4151
        %4221 = vmatpush2.msra.mxu0 %v4150
        %4222 = vmatprep.subr.mxu0 %v4149
        %4223 = vmatpush2.msra.mxu0 %v4148
        %4224 = vmatprep.subr.mxu0 %v4147
        %4225 = vmatpush2.msra.mxu0 %v4146
        %4226 = vmatprep.subr.mxu0 %v4145
        %4227 = vmatpush2.msra.mxu0 %v4144
        %4228 = vmatprep.subr.mxu0 %v4143
        %4229 = vmatpush2.msra.mxu0 %v4142
        %4230 = vmatprep.subr.mxu0 %v4141
        %4231 = vmatpush2.msra.mxu0 %v4140
        %4232 = vmatprep.subr.mxu0 %v4139
        %4233 = vmatpush2.msra.mxu0 %v4138
        %4234 = vmatprep.mubr.f32.mxu0 %v4103
        %4235 = vmatmul.mubr.f32.gmra.mxu0 %v4101
        %v4236 = vpop.f32.mrf.mxu0
        %v4237 = vadd.f32 0.0, %v4236
        %v4238 = vpop.f32.mrf.mxu0
        %v4239 = vadd.f32 0.0, %v4238
        %4240 = vdwg.mxu0
        %v4241 = vadd.f32 %v4025, %v4237
        %v4242 = vadd.f32 %v4027, %v4239
        %v4243 = vld [vmem:[#allocation15] sm:$0x3]
        %v4245 = vlaneseq
        %v4246 = vshrl.u32 %v4245, 7
        %v4247 = vsub.s32 0, %v4246
        %v4248 = vrot.slane %v4243, %v4247
        %v4249 = vlaneseq
        %v4250 = vshrl.u32 %v4249, 7
        %v4251 = vsub.s32 1, %v4250
        %v4252 = vrot.slane %v4243, %v4251
        %v4255 = vadd.f32 %v4241, %v4248
        %v4256 = vadd.f32 %v4242, %v4252
        %v4257 = vmax.f32 %v4255, 0.0
        %v4258 = vmax.f32 %v4256, 0.0
        %v4259 = vld [vmem:[#allocation16] sm:$0x1]
        %vm4260 = vcmask 31744
        %v4262 = vsel %vm4260, %v4259, 0
        %vm4264 = vcmask 1043456
        %v4266 = vsel %vm4264, %v4257, 0
        %v4269 = vsel %vm4264, %v4258, 0
        %4271 = vmatprep.subr.mxu0 0.0
        %4272 = vmatpush1.msra.mxu0 0.0
        %4273 = vmatprep.subr.mxu0 0.0
        %4274 = vmatpush1.msra.mxu0 0.0
        %4275 = vmatprep.subr.mxu0 0.0
        %4276 = vmatpush1.msra.mxu0 0.0
        %4277 = vmatprep.subr.mxu0 0.0
        %4278 = vmatpush1.msra.mxu0 0.0
        %4279 = vmatprep.subr.mxu0 0.0
        %4280 = vmatpush1.msra.mxu0 0.0
        %4281 = vmatprep.subr.mxu0 0.0
        %4282 = vmatpush1.msra.mxu0 0.0
        %4283 = vmatprep.subr.mxu0 0.0
        %4284 = vmatpush1.msra.mxu0 0.0
        %4285 = vmatprep.subr.mxu0 0.0
        %4286 = vmatpush1.msra.mxu0 0.0
        %4287 = vmatprep.subr.mxu0 0.0
        %4288 = vmatpush1.msra.mxu0 0.0
        %4289 = vmatprep.subr.mxu0 0.0
        %4290 = vmatpush1.msra.mxu0 0.0
        %4291 = vmatprep.subr.mxu0 0.0
        %4292 = vmatpush1.msra.mxu0 0.0
        %4293 = vmatprep.subr.mxu0 0.0
        %4294 = vmatpush1.msra.mxu0 0.0
        %4295 = vmatprep.subr.mxu0 0.0
        %4296 = vmatpush1.msra.mxu0 0.0
        %4297 = vmatprep.subr.mxu0 0.0
        %4298 = vmatpush1.msra.mxu0 0.0
        %4299 = vmatprep.subr.mxu0 0.0
        %4300 = vmatpush1.msra.mxu0 0.0
        %4301 = vmatprep.subr.mxu0 %v4269
        %4302 = vmatpush1.msra.mxu0 %v4266
        %4303 = vmatprep.subr.mxu0 0.0
        %4304 = vmatpush2.msra.mxu0 0.0
        %4305 = vmatprep.subr.mxu0 0.0
        %4306 = vmatpush2.msra.mxu0 0.0
        %4307 = vmatprep.subr.mxu0 0.0
        %4308 = vmatpush2.msra.mxu0 0.0
        %4309 = vmatprep.subr.mxu0 0.0
        %4310 = vmatpush2.msra.mxu0 0.0
        %4311 = vmatprep.subr.mxu0 0.0
        %4312 = vmatpush2.msra.mxu0 0.0
        %4313 = vmatprep.subr.mxu0 0.0
        %4314 = vmatpush2.msra.mxu0 0.0
        %4315 = vmatprep.subr.mxu0 0.0
        %4316 = vmatpush2.msra.mxu0 0.0
        %4317 = vmatprep.subr.mxu0 0.0
        %4318 = vmatpush2.msra.mxu0 0.0
        %4319 = vmatprep.subr.mxu0 0.0
        %4320 = vmatpush2.msra.mxu0 0.0
        %4321 = vmatprep.subr.mxu0 0.0
        %4322 = vmatpush2.msra.mxu0 0.0
        %4323 = vmatprep.subr.mxu0 0.0
        %4324 = vmatpush2.msra.mxu0 0.0
        %4325 = vmatprep.subr.mxu0 0.0
        %4326 = vmatpush2.msra.mxu0 0.0
        %4327 = vmatprep.subr.mxu0 0.0
        %4328 = vmatpush2.msra.mxu0 0.0
        %4329 = vmatprep.subr.mxu0 0.0
        %4330 = vmatpush2.msra.mxu0 0.0
        %4331 = vmatprep.subr.mxu0 0.0
        %4332 = vmatpush2.msra.mxu0 0.0
        %4333 = vmatprep.subr.mxu0 0.0
        %4334 = vmatpush2.msra.mxu0 0.0
        %4335 = vmatprep.mubr.f32.mxu0 0.0
        %4336 = vmatmul.mubr.f32.gmra.mxu0 %v4262
        %v4337 = vpop.f32.mrf.mxu0
        %v4338 = vadd.f32 0.0, %v4337
        %v4339 = vpop.f32.mrf.mxu0
        %v4340 = vadd.f32 0.0, %v4339
        %4341 = vdwg.mxu0
        %v4342 = vld [vmem:[#allocation18] sm:$0xff]
        %v4343 = vld [vmem:[#allocation18 + $0x8] sm:$0xff]
        %v4344 = vld [vmem:[#allocation18 + $0x10] sm:$0xff]
        %v4345 = vld [vmem:[#allocation18 + $0x18] sm:$0xff]
        %v4346 = vld [vmem:[#allocation18 + $0x20] sm:$0xff]
        %v4347 = vld [vmem:[#allocation18 + $0x28] sm:$0xff]
        %v4348 = vld [vmem:[#allocation18 + $0x30] sm:$0xff]
        %v4349 = vld [vmem:[#allocation18 + $0x38] sm:$0xff]
        %v4350 = vld [vmem:[#allocation18 + $0x40] sm:$0xff]
        %v4351 = vld [vmem:[#allocation18 + $0x48] sm:$0xff]
        %v4352 = vld [vmem:[#allocation18 + $0x50] sm:$0xff]
        %v4353 = vld [vmem:[#allocation18 + $0x58] sm:$0xff]
        %v4354 = vld [vmem:[#allocation18 + $0x60] sm:$0xff]
        %v4355 = vld [vmem:[#allocation18 + $0x68] sm:$0xff]
        %v4356 = vld [vmem:[#allocation18 + $0x70] sm:$0xff]
        %v4357 = vld [vmem:[#allocation18 + $0x78] sm:$0xff]
        %v4358 = vld [vmem:[#allocation18 + $0x80] sm:$0xff]
        %v4359 = vld [vmem:[#allocation18 + $0x88] sm:$0xff]
        %v4360 = vld [vmem:[#allocation18 + $0x90] sm:$0xff]
        %v4361 = vld [vmem:[#allocation18 + $0x98] sm:$0xff]
        %v4362 = vld [vmem:[#allocation18 + $0xa0] sm:$0xff]
        %v4363 = vld [vmem:[#allocation18 + $0xa8] sm:$0xff]
        %v4364 = vld [vmem:[#allocation18 + $0xb0] sm:$0xff]
        %v4365 = vld [vmem:[#allocation18 + $0xb8] sm:$0xff]
        %v4366 = vld [vmem:[#allocation18 + $0xc0] sm:$0xff]
        %v4367 = vld [vmem:[#allocation18 + $0xc8] sm:$0xff]
        %v4368 = vld [vmem:[#allocation18 + $0xd0] sm:$0xff]
        %v4369 = vld [vmem:[#allocation18 + $0xd8] sm:$0xff]
        %v4370 = vld [vmem:[#allocation18 + $0xe0] sm:$0xff]
        %v4371 = vld [vmem:[#allocation18 + $0xe8] sm:$0xff]
        %v4372 = vld [vmem:[#allocation18 + $0xf0] sm:$0xff]
        %v4373 = vld [vmem:[#allocation18 + $0xf8] sm:$0xff]
        %v4374 = vld [vmem:[#allocation18 + $0x100] sm:$0xff]
        %v4375 = vld [vmem:[#allocation18 + $0x108] sm:$0xff]
        %v4376 = vld [vmem:[#allocation18 + $0x110] sm:$0xff]
        %v4377 = vld [vmem:[#allocation18 + $0x118] sm:$0xff]
        %v4378 = vld [vmem:[#allocation18 + $0x120] sm:$0xff]
        %v4379 = vld [vmem:[#allocation18 + $0x128] sm:$0xff]
        %v4380 = vld [vmem:[#allocation18 + $0x130] sm:$0xff]
        %v4381 = vld [vmem:[#allocation18 + $0x138] sm:$0xff]
        %v4382 = vld [vmem:[#allocation18 + $0x140] sm:$0xff]
        %v4383 = vld [vmem:[#allocation18 + $0x148] sm:$0xff]
        %v4384 = vld [vmem:[#allocation18 + $0x150] sm:$0xff]
        %v4385 = vld [vmem:[#allocation18 + $0x158] sm:$0xff]
        %v4386 = vld [vmem:[#allocation18 + $0x160] sm:$0xff]
        %v4387 = vld [vmem:[#allocation18 + $0x168] sm:$0xff]
        %v4388 = vld [vmem:[#allocation18 + $0x170] sm:$0xff]
        %v4389 = vld [vmem:[#allocation18 + $0x178] sm:$0xff]
        %v4390 = vld [vmem:[#allocation18 + $0x180] sm:$0xff]
        %v4391 = vld [vmem:[#allocation18 + $0x188] sm:$0xff]
        %v4392 = vld [vmem:[#allocation18 + $0x190] sm:$0xff]
        %v4393 = vld [vmem:[#allocation18 + $0x198] sm:$0xff]
        %v4394 = vld [vmem:[#allocation18 + $0x1a0] sm:$0xff]
        %v4395 = vld [vmem:[#allocation18 + $0x1a8] sm:$0xff]
        %v4396 = vld [vmem:[#allocation18 + $0x1b0] sm:$0xff]
        %v4397 = vld [vmem:[#allocation18 + $0x1b8] sm:$0xff]
        %v4398 = vld [vmem:[#allocation18 + $0x1c0] sm:$0xff]
        %v4399 = vld [vmem:[#allocation18 + $0x1c8] sm:$0xff]
        %v4400 = vld [vmem:[#allocation18 + $0x1d0] sm:$0xff]
        %v4401 = vld [vmem:[#allocation18 + $0x1d8] sm:$0xff]
        %v4402 = vld [vmem:[#allocation18 + $0x1e0] sm:$0xff]
        %v4403 = vld [vmem:[#allocation18 + $0x1e8] sm:$0xff]
        %v4404 = vld [vmem:[#allocation18 + $0x1f0] sm:$0xff]
        %v4405 = vld [vmem:[#allocation18 + $0x1f8] sm:$0xff]
        %s4406 = scalar_lea.vmem [#allocation16], 1
        %v4407 = vld [vmem:[%s4406] sm:$0x1]
        %v4409 = vsel %vm4260, %v4407, 0
        %4411 = vmatprep.subr.mxu0 0.0
        %4412 = vmatpush1.msra.mxu0 0.0
        %4413 = vmatprep.subr.mxu0 0.0
        %4414 = vmatpush1.msra.mxu0 0.0
        %4415 = vmatprep.subr.mxu0 0.0
        %4416 = vmatpush1.msra.mxu0 0.0
        %4417 = vmatprep.subr.mxu0 0.0
        %4418 = vmatpush1.msra.mxu0 0.0
        %4419 = vmatprep.subr.mxu0 0.0
        %4420 = vmatpush1.msra.mxu0 0.0
        %4421 = vmatprep.subr.mxu0 0.0
        %4422 = vmatpush1.msra.mxu0 0.0
        %4423 = vmatprep.subr.mxu0 0.0
        %4424 = vmatpush1.msra.mxu0 0.0
        %4425 = vmatprep.subr.mxu0 0.0
        %4426 = vmatpush1.msra.mxu0 0.0
        %4427 = vmatprep.subr.mxu0 0.0
        %4428 = vmatpush1.msra.mxu0 0.0
        %4429 = vmatprep.subr.mxu0 0.0
        %4430 = vmatpush1.msra.mxu0 0.0
        %4431 = vmatprep.subr.mxu0 0.0
        %4432 = vmatpush1.msra.mxu0 0.0
        %4433 = vmatprep.subr.mxu0 0.0
        %4434 = vmatpush1.msra.mxu0 0.0
        %4435 = vmatprep.subr.mxu0 0.0
        %4436 = vmatpush1.msra.mxu0 0.0
        %4437 = vmatprep.subr.mxu0 0.0
        %4438 = vmatpush1.msra.mxu0 0.0
        %4439 = vmatprep.subr.mxu0 0.0
        %4440 = vmatpush1.msra.mxu0 0.0
        %4441 = vmatprep.subr.mxu0 %v4269
        %4442 = vmatpush1.msra.mxu0 %v4266
        %4443 = vmatprep.subr.mxu0 0.0
        %4444 = vmatpush2.msra.mxu0 0.0
        %4445 = vmatprep.subr.mxu0 0.0
        %4446 = vmatpush2.msra.mxu0 0.0
        %4447 = vmatprep.subr.mxu0 0.0
        %4448 = vmatpush2.msra.mxu0 0.0
        %4449 = vmatprep.subr.mxu0 0.0
        %4450 = vmatpush2.msra.mxu0 0.0
        %4451 = vmatprep.subr.mxu0 0.0
        %4452 = vmatpush2.msra.mxu0 0.0
        %4453 = vmatprep.subr.mxu0 0.0
        %4454 = vmatpush2.msra.mxu0 0.0
        %4455 = vmatprep.subr.mxu0 0.0
        %4456 = vmatpush2.msra.mxu0 0.0
        %4457 = vmatprep.subr.mxu0 0.0
        %4458 = vmatpush2.msra.mxu0 0.0
        %4459 = vmatprep.subr.mxu0 0.0
        %4460 = vmatpush2.msra.mxu0 0.0
        %4461 = vmatprep.subr.mxu0 0.0
        %4462 = vmatpush2.msra.mxu0 0.0
        %4463 = vmatprep.subr.mxu0 0.0
        %4464 = vmatpush2.msra.mxu0 0.0
        %4465 = vmatprep.subr.mxu0 0.0
        %4466 = vmatpush2.msra.mxu0 0.0
        %4467 = vmatprep.subr.mxu0 0.0
        %4468 = vmatpush2.msra.mxu0 0.0
        %4469 = vmatprep.subr.mxu0 0.0
        %4470 = vmatpush2.msra.mxu0 0.0
        %4471 = vmatprep.subr.mxu0 0.0
        %4472 = vmatpush2.msra.mxu0 0.0
        %4473 = vmatprep.subr.mxu0 0.0
        %4474 = vmatpush2.msra.mxu0 0.0
        %4475 = vmatprep.mubr.f32.mxu0 0.0
        %4476 = vmatmul.mubr.f32.gmra.mxu0 %v4409
        %v4477 = vpop.f32.mrf.mxu0
        %v4478 = vadd.f32 0.0, %v4477
        %v4479 = vpop.f32.mrf.mxu0
        %v4480 = vadd.f32 0.0, %v4479
        %4481 = vdwg.mxu0
        %s4482 = scalar_lea.vmem [#allocation18], 512
        %v4483 = vld [vmem:[%s4482] sm:$0xff]
        %v4484 = vld [vmem:[%s4482 + $0x8] sm:$0xff]
        %v4485 = vld [vmem:[%s4482 + $0x10] sm:$0xff]
        %v4486 = vld [vmem:[%s4482 + $0x18] sm:$0xff]
        %v4487 = vld [vmem:[%s4482 + $0x20] sm:$0xff]
        %v4488 = vld [vmem:[%s4482 + $0x28] sm:$0xff]
        %v4489 = vld [vmem:[%s4482 + $0x30] sm:$0xff]
        %v4490 = vld [vmem:[%s4482 + $0x38] sm:$0xff]
        %v4491 = vld [vmem:[%s4482 + $0x40] sm:$0xff]
        %v4492 = vld [vmem:[%s4482 + $0x48] sm:$0xff]
        %v4493 = vld [vmem:[%s4482 + $0x50] sm:$0xff]
        %v4494 = vld [vmem:[%s4482 + $0x58] sm:$0xff]
        %v4495 = vld [vmem:[%s4482 + $0x60] sm:$0xff]
        %v4496 = vld [vmem:[%s4482 + $0x68] sm:$0xff]
        %v4497 = vld [vmem:[%s4482 + $0x70] sm:$0xff]
        %v4498 = vld [vmem:[%s4482 + $0x78] sm:$0xff]
        %v4499 = vld [vmem:[%s4482 + $0x80] sm:$0xff]
        %v4500 = vld [vmem:[%s4482 + $0x88] sm:$0xff]
        %v4501 = vld [vmem:[%s4482 + $0x90] sm:$0xff]
        %v4502 = vld [vmem:[%s4482 + $0x98] sm:$0xff]
        %v4503 = vld [vmem:[%s4482 + $0xa0] sm:$0xff]
        %v4504 = vld [vmem:[%s4482 + $0xa8] sm:$0xff]
        %v4505 = vld [vmem:[%s4482 + $0xb0] sm:$0xff]
        %v4506 = vld [vmem:[%s4482 + $0xb8] sm:$0xff]
        %v4507 = vld [vmem:[%s4482 + $0xc0] sm:$0xff]
        %v4508 = vld [vmem:[%s4482 + $0xc8] sm:$0xff]
        %v4509 = vld [vmem:[%s4482 + $0xd0] sm:$0xff]
        %v4510 = vld [vmem:[%s4482 + $0xd8] sm:$0xff]
        %v4511 = vld [vmem:[%s4482 + $0xe0] sm:$0xff]
        %v4512 = vld [vmem:[%s4482 + $0xe8] sm:$0xff]
        %v4513 = vld [vmem:[%s4482 + $0xf0] sm:$0xff]
        %v4514 = vld [vmem:[%s4482 + $0xf8] sm:$0xff]
        %v4515 = vld [vmem:[%s4482 + $0x100] sm:$0xff]
        %v4516 = vld [vmem:[%s4482 + $0x108] sm:$0xff]
        %v4517 = vld [vmem:[%s4482 + $0x110] sm:$0xff]
        %v4518 = vld [vmem:[%s4482 + $0x118] sm:$0xff]
        %v4519 = vld [vmem:[%s4482 + $0x120] sm:$0xff]
        %v4520 = vld [vmem:[%s4482 + $0x128] sm:$0xff]
        %v4521 = vld [vmem:[%s4482 + $0x130] sm:$0xff]
        %v4522 = vld [vmem:[%s4482 + $0x138] sm:$0xff]
        %v4523 = vld [vmem:[%s4482 + $0x140] sm:$0xff]
        %v4524 = vld [vmem:[%s4482 + $0x148] sm:$0xff]
        %v4525 = vld [vmem:[%s4482 + $0x150] sm:$0xff]
        %v4526 = vld [vmem:[%s4482 + $0x158] sm:$0xff]
        %v4527 = vld [vmem:[%s4482 + $0x160] sm:$0xff]
        %v4528 = vld [vmem:[%s4482 + $0x168] sm:$0xff]
        %v4529 = vld [vmem:[%s4482 + $0x170] sm:$0xff]
        %v4530 = vld [vmem:[%s4482 + $0x178] sm:$0xff]
        %v4531 = vld [vmem:[%s4482 + $0x180] sm:$0xff]
        %v4532 = vld [vmem:[%s4482 + $0x188] sm:$0xff]
        %v4533 = vld [vmem:[%s4482 + $0x190] sm:$0xff]
        %v4534 = vld [vmem:[%s4482 + $0x198] sm:$0xff]
        %v4535 = vld [vmem:[%s4482 + $0x1a0] sm:$0xff]
        %v4536 = vld [vmem:[%s4482 + $0x1a8] sm:$0xff]
        %v4537 = vld [vmem:[%s4482 + $0x1b0] sm:$0xff]
        %v4538 = vld [vmem:[%s4482 + $0x1b8] sm:$0xff]
        %v4539 = vld [vmem:[%s4482 + $0x1c0] sm:$0xff]
        %v4540 = vld [vmem:[%s4482 + $0x1c8] sm:$0xff]
        %v4541 = vld [vmem:[%s4482 + $0x1d0] sm:$0xff]
        %v4542 = vld [vmem:[%s4482 + $0x1d8] sm:$0xff]
        %v4543 = vld [vmem:[%s4482 + $0x1e0] sm:$0xff]
        %v4544 = vld [vmem:[%s4482 + $0x1e8] sm:$0xff]
        %v4545 = vld [vmem:[%s4482 + $0x1f0] sm:$0xff]
        %v4546 = vld [vmem:[%s4482 + $0x1f8] sm:$0xff]
        %4547 = vmatprep.subr.mxu0 %v4514
        %4548 = vmatpush1.msra.mxu0 %v4513
        %4549 = vmatprep.subr.mxu0 %v4512
        %4550 = vmatpush1.msra.mxu0 %v4511
        %4551 = vmatprep.subr.mxu0 %v4510
        %4552 = vmatpush1.msra.mxu0 %v4509
        %4553 = vmatprep.subr.mxu0 %v4508
        %4554 = vmatpush1.msra.mxu0 %v4507
        %4555 = vmatprep.subr.mxu0 %v4506
        %4556 = vmatpush1.msra.mxu0 %v4505
        %4557 = vmatprep.subr.mxu0 %v4504
        %4558 = vmatpush1.msra.mxu0 %v4503
        %4559 = vmatprep.subr.mxu0 %v4502
        %4560 = vmatpush1.msra.mxu0 %v4501
        %4561 = vmatprep.subr.mxu0 %v4500
        %4562 = vmatpush1.msra.mxu0 %v4499
        %4563 = vmatprep.subr.mxu0 %v4498
        %4564 = vmatpush1.msra.mxu0 %v4497
        %4565 = vmatprep.subr.mxu0 %v4496
        %4566 = vmatpush1.msra.mxu0 %v4495
        %4567 = vmatprep.subr.mxu0 %v4494
        %4568 = vmatpush1.msra.mxu0 %v4493
        %4569 = vmatprep.subr.mxu0 %v4492
        %4570 = vmatpush1.msra.mxu0 %v4491
        %4571 = vmatprep.subr.mxu0 %v4490
        %4572 = vmatpush1.msra.mxu0 %v4489
        %4573 = vmatprep.subr.mxu0 %v4488
        %4574 = vmatpush1.msra.mxu0 %v4487
        %4575 = vmatprep.subr.mxu0 %v4486
        %4576 = vmatpush1.msra.mxu0 %v4485
        %4577 = vmatprep.subr.mxu0 %v4484
        %4578 = vmatpush1.msra.mxu0 %v4483
        %4579 = vmatprep.subr.mxu0 %v4546
        %4580 = vmatpush2.msra.mxu0 %v4545
        %4581 = vmatprep.subr.mxu0 %v4544
        %4582 = vmatpush2.msra.mxu0 %v4543
        %4583 = vmatprep.subr.mxu0 %v4542
        %4584 = vmatpush2.msra.mxu0 %v4541
        %4585 = vmatprep.subr.mxu0 %v4540
        %4586 = vmatpush2.msra.mxu0 %v4539
        %4587 = vmatprep.subr.mxu0 %v4538
        %4588 = vmatpush2.msra.mxu0 %v4537
        %4589 = vmatprep.subr.mxu0 %v4536
        %4590 = vmatpush2.msra.mxu0 %v4535
        %4591 = vmatprep.subr.mxu0 %v4534
        %4592 = vmatpush2.msra.mxu0 %v4533
        %4593 = vmatprep.subr.mxu0 %v4532
        %4594 = vmatpush2.msra.mxu0 %v4531
        %4595 = vmatprep.subr.mxu0 %v4530
        %4596 = vmatpush2.msra.mxu0 %v4529
        %4597 = vmatprep.subr.mxu0 %v4528
        %4598 = vmatpush2.msra.mxu0 %v4527
        %4599 = vmatprep.subr.mxu0 %v4526
        %4600 = vmatpush2.msra.mxu0 %v4525
        %4601 = vmatprep.subr.mxu0 %v4524
        %4602 = vmatpush2.msra.mxu0 %v4523
        %4603 = vmatprep.subr.mxu0 %v4522
        %4604 = vmatpush2.msra.mxu0 %v4521
        %4605 = vmatprep.subr.mxu0 %v4520
        %4606 = vmatpush2.msra.mxu0 %v4519
        %4607 = vmatprep.subr.mxu0 %v4518
        %4608 = vmatpush2.msra.mxu0 %v4517
        %4609 = vmatprep.subr.mxu0 %v4516
        %4610 = vmatpush2.msra.mxu0 %v4515
        %4611 = vmatprep.mubr.f32.mxu0 %v4480
        %4612 = vmatmul.mubr.f32.gmra.mxu0 %v4478
        %v4613 = vpop.f32.mrf.mxu0
        %v4614 = vadd.f32 0.0, %v4613
        %v4615 = vpop.f32.mrf.mxu0
        %v4616 = vadd.f32 0.0, %v4615
        %4617 = vdwg.mxu0
        %4618 = vmatprep.subr.mxu0 %v4373
        %4619 = vmatpush1.msra.mxu0 %v4372
        %4620 = vmatprep.subr.mxu0 %v4371
        %4621 = vmatpush1.msra.mxu0 %v4370
        %4622 = vmatprep.subr.mxu0 %v4369
        %4623 = vmatpush1.msra.mxu0 %v4368
        %4624 = vmatprep.subr.mxu0 %v4367
        %4625 = vmatpush1.msra.mxu0 %v4366
        %4626 = vmatprep.subr.mxu0 %v4365
        %4627 = vmatpush1.msra.mxu0 %v4364
        %4628 = vmatprep.subr.mxu0 %v4363
        %4629 = vmatpush1.msra.mxu0 %v4362
        %4630 = vmatprep.subr.mxu0 %v4361
        %4631 = vmatpush1.msra.mxu0 %v4360
        %4632 = vmatprep.subr.mxu0 %v4359
        %4633 = vmatpush1.msra.mxu0 %v4358
        %4634 = vmatprep.subr.mxu0 %v4357
        %4635 = vmatpush1.msra.mxu0 %v4356
        %4636 = vmatprep.subr.mxu0 %v4355
        %4637 = vmatpush1.msra.mxu0 %v4354
        %4638 = vmatprep.subr.mxu0 %v4353
        %4639 = vmatpush1.msra.mxu0 %v4352
        %4640 = vmatprep.subr.mxu0 %v4351
        %4641 = vmatpush1.msra.mxu0 %v4350
        %4642 = vmatprep.subr.mxu0 %v4349
        %4643 = vmatpush1.msra.mxu0 %v4348
        %4644 = vmatprep.subr.mxu0 %v4347
        %4645 = vmatpush1.msra.mxu0 %v4346
        %4646 = vmatprep.subr.mxu0 %v4345
        %4647 = vmatpush1.msra.mxu0 %v4344
        %4648 = vmatprep.subr.mxu0 %v4343
        %4649 = vmatpush1.msra.mxu0 %v4342
        %4650 = vmatprep.subr.mxu0 %v4405
        %4651 = vmatpush2.msra.mxu0 %v4404
        %4652 = vmatprep.subr.mxu0 %v4403
        %4653 = vmatpush2.msra.mxu0 %v4402
        %4654 = vmatprep.subr.mxu0 %v4401
        %4655 = vmatpush2.msra.mxu0 %v4400
        %4656 = vmatprep.subr.mxu0 %v4399
        %4657 = vmatpush2.msra.mxu0 %v4398
        %4658 = vmatprep.subr.mxu0 %v4397
        %4659 = vmatpush2.msra.mxu0 %v4396
        %4660 = vmatprep.subr.mxu0 %v4395
        %4661 = vmatpush2.msra.mxu0 %v4394
        %4662 = vmatprep.subr.mxu0 %v4393
        %4663 = vmatpush2.msra.mxu0 %v4392
        %4664 = vmatprep.subr.mxu0 %v4391
        %4665 = vmatpush2.msra.mxu0 %v4390
        %4666 = vmatprep.subr.mxu0 %v4389
        %4667 = vmatpush2.msra.mxu0 %v4388
        %4668 = vmatprep.subr.mxu0 %v4387
        %4669 = vmatpush2.msra.mxu0 %v4386
        %4670 = vmatprep.subr.mxu0 %v4385
        %4671 = vmatpush2.msra.mxu0 %v4384
        %4672 = vmatprep.subr.mxu0 %v4383
        %4673 = vmatpush2.msra.mxu0 %v4382
        %4674 = vmatprep.subr.mxu0 %v4381
        %4675 = vmatpush2.msra.mxu0 %v4380
        %4676 = vmatprep.subr.mxu0 %v4379
        %4677 = vmatpush2.msra.mxu0 %v4378
        %4678 = vmatprep.subr.mxu0 %v4377
        %4679 = vmatpush2.msra.mxu0 %v4376
        %4680 = vmatprep.subr.mxu0 %v4375
        %4681 = vmatpush2.msra.mxu0 %v4374
        %4682 = vmatprep.mubr.f32.mxu0 %v4340
        %4683 = vmatmul.mubr.f32.gmra.mxu0 %v4338
        %v4684 = vpop.f32.mrf.mxu0
        %v4685 = vadd.f32 %v4614, %v4684
        %v4686 = vpop.f32.mrf.mxu0
        %v4687 = vadd.f32 %v4616, %v4686
        %4688 = vdwg.mxu0
        %s4689 = scalar_lea.vmem [#allocation16], 2
        %v4690 = vld [vmem:[%s4689] sm:$0x1]
        %v4692 = vsel %vm4260, %v4690, 0
        %4694 = vmatprep.subr.mxu0 0.0
        %4695 = vmatpush1.msra.mxu0 0.0
        %4696 = vmatprep.subr.mxu0 0.0
        %4697 = vmatpush1.msra.mxu0 0.0
        %4698 = vmatprep.subr.mxu0 0.0
        %4699 = vmatpush1.msra.mxu0 0.0
        %4700 = vmatprep.subr.mxu0 0.0
        %4701 = vmatpush1.msra.mxu0 0.0
        %4702 = vmatprep.subr.mxu0 0.0
        %4703 = vmatpush1.msra.mxu0 0.0
        %4704 = vmatprep.subr.mxu0 0.0
        %4705 = vmatpush1.msra.mxu0 0.0
        %4706 = vmatprep.subr.mxu0 0.0
        %4707 = vmatpush1.msra.mxu0 0.0
        %4708 = vmatprep.subr.mxu0 0.0
        %4709 = vmatpush1.msra.mxu0 0.0
        %4710 = vmatprep.subr.mxu0 0.0
        %4711 = vmatpush1.msra.mxu0 0.0
        %4712 = vmatprep.subr.mxu0 0.0
        %4713 = vmatpush1.msra.mxu0 0.0
        %4714 = vmatprep.subr.mxu0 0.0
        %4715 = vmatpush1.msra.mxu0 0.0
        %4716 = vmatprep.subr.mxu0 0.0
        %4717 = vmatpush1.msra.mxu0 0.0
        %4718 = vmatprep.subr.mxu0 0.0
        %4719 = vmatpush1.msra.mxu0 0.0
        %4720 = vmatprep.subr.mxu0 0.0
        %4721 = vmatpush1.msra.mxu0 0.0
        %4722 = vmatprep.subr.mxu0 0.0
        %4723 = vmatpush1.msra.mxu0 0.0
        %4724 = vmatprep.subr.mxu0 %v4269
        %4725 = vmatpush1.msra.mxu0 %v4266
        %4726 = vmatprep.subr.mxu0 0.0
        %4727 = vmatpush2.msra.mxu0 0.0
        %4728 = vmatprep.subr.mxu0 0.0
        %4729 = vmatpush2.msra.mxu0 0.0
        %4730 = vmatprep.subr.mxu0 0.0
        %4731 = vmatpush2.msra.mxu0 0.0
        %4732 = vmatprep.subr.mxu0 0.0
        %4733 = vmatpush2.msra.mxu0 0.0
        %4734 = vmatprep.subr.mxu0 0.0
        %4735 = vmatpush2.msra.mxu0 0.0
        %4736 = vmatprep.subr.mxu0 0.0
        %4737 = vmatpush2.msra.mxu0 0.0
        %4738 = vmatprep.subr.mxu0 0.0
        %4739 = vmatpush2.msra.mxu0 0.0
        %4740 = vmatprep.subr.mxu0 0.0
        %4741 = vmatpush2.msra.mxu0 0.0
        %4742 = vmatprep.subr.mxu0 0.0
        %4743 = vmatpush2.msra.mxu0 0.0
        %4744 = vmatprep.subr.mxu0 0.0
        %4745 = vmatpush2.msra.mxu0 0.0
        %4746 = vmatprep.subr.mxu0 0.0
        %4747 = vmatpush2.msra.mxu0 0.0
        %4748 = vmatprep.subr.mxu0 0.0
        %4749 = vmatpush2.msra.mxu0 0.0
        %4750 = vmatprep.subr.mxu0 0.0
        %4751 = vmatpush2.msra.mxu0 0.0
        %4752 = vmatprep.subr.mxu0 0.0
        %4753 = vmatpush2.msra.mxu0 0.0
        %4754 = vmatprep.subr.mxu0 0.0
        %4755 = vmatpush2.msra.mxu0 0.0
        %4756 = vmatprep.subr.mxu0 0.0
        %4757 = vmatpush2.msra.mxu0 0.0
        %4758 = vmatprep.mubr.f32.mxu0 0.0
        %4759 = vmatmul.mubr.f32.gmra.mxu0 %v4692
        %v4760 = vpop.f32.mrf.mxu0
        %v4761 = vadd.f32 0.0, %v4760
        %v4762 = vpop.f32.mrf.mxu0
        %v4763 = vadd.f32 0.0, %v4762
        %4764 = vdwg.mxu0
        %s4765 = scalar_lea.vmem [#allocation18], 1024
        %v4766 = vld [vmem:[%s4765] sm:$0xff]
        %v4767 = vld [vmem:[%s4765 + $0x8] sm:$0xff]
        %v4768 = vld [vmem:[%s4765 + $0x10] sm:$0xff]
        %v4769 = vld [vmem:[%s4765 + $0x18] sm:$0xff]
        %v4770 = vld [vmem:[%s4765 + $0x20] sm:$0xff]
        %v4771 = vld [vmem:[%s4765 + $0x28] sm:$0xff]
        %v4772 = vld [vmem:[%s4765 + $0x30] sm:$0xff]
        %v4773 = vld [vmem:[%s4765 + $0x38] sm:$0xff]
        %v4774 = vld [vmem:[%s4765 + $0x40] sm:$0xff]
        %v4775 = vld [vmem:[%s4765 + $0x48] sm:$0xff]
        %v4776 = vld [vmem:[%s4765 + $0x50] sm:$0xff]
        %v4777 = vld [vmem:[%s4765 + $0x58] sm:$0xff]
        %v4778 = vld [vmem:[%s4765 + $0x60] sm:$0xff]
        %v4779 = vld [vmem:[%s4765 + $0x68] sm:$0xff]
        %v4780 = vld [vmem:[%s4765 + $0x70] sm:$0xff]
        %v4781 = vld [vmem:[%s4765 + $0x78] sm:$0xff]
        %v4782 = vld [vmem:[%s4765 + $0x80] sm:$0xff]
        %v4783 = vld [vmem:[%s4765 + $0x88] sm:$0xff]
        %v4784 = vld [vmem:[%s4765 + $0x90] sm:$0xff]
        %v4785 = vld [vmem:[%s4765 + $0x98] sm:$0xff]
        %v4786 = vld [vmem:[%s4765 + $0xa0] sm:$0xff]
        %v4787 = vld [vmem:[%s4765 + $0xa8] sm:$0xff]
        %v4788 = vld [vmem:[%s4765 + $0xb0] sm:$0xff]
        %v4789 = vld [vmem:[%s4765 + $0xb8] sm:$0xff]
        %v4790 = vld [vmem:[%s4765 + $0xc0] sm:$0xff]
        %v4791 = vld [vmem:[%s4765 + $0xc8] sm:$0xff]
        %v4792 = vld [vmem:[%s4765 + $0xd0] sm:$0xff]
        %v4793 = vld [vmem:[%s4765 + $0xd8] sm:$0xff]
        %v4794 = vld [vmem:[%s4765 + $0xe0] sm:$0xff]
        %v4795 = vld [vmem:[%s4765 + $0xe8] sm:$0xff]
        %v4796 = vld [vmem:[%s4765 + $0xf0] sm:$0xff]
        %v4797 = vld [vmem:[%s4765 + $0xf8] sm:$0xff]
        %v4798 = vld [vmem:[%s4765 + $0x100] sm:$0xff]
        %v4799 = vld [vmem:[%s4765 + $0x108] sm:$0xff]
        %v4800 = vld [vmem:[%s4765 + $0x110] sm:$0xff]
        %v4801 = vld [vmem:[%s4765 + $0x118] sm:$0xff]
        %v4802 = vld [vmem:[%s4765 + $0x120] sm:$0xff]
        %v4803 = vld [vmem:[%s4765 + $0x128] sm:$0xff]
        %v4804 = vld [vmem:[%s4765 + $0x130] sm:$0xff]
        %v4805 = vld [vmem:[%s4765 + $0x138] sm:$0xff]
        %v4806 = vld [vmem:[%s4765 + $0x140] sm:$0xff]
        %v4807 = vld [vmem:[%s4765 + $0x148] sm:$0xff]
        %v4808 = vld [vmem:[%s4765 + $0x150] sm:$0xff]
        %v4809 = vld [vmem:[%s4765 + $0x158] sm:$0xff]
        %v4810 = vld [vmem:[%s4765 + $0x160] sm:$0xff]
        %v4811 = vld [vmem:[%s4765 + $0x168] sm:$0xff]
        %v4812 = vld [vmem:[%s4765 + $0x170] sm:$0xff]
        %v4813 = vld [vmem:[%s4765 + $0x178] sm:$0xff]
        %v4814 = vld [vmem:[%s4765 + $0x180] sm:$0xff]
        %v4815 = vld [vmem:[%s4765 + $0x188] sm:$0xff]
        %v4816 = vld [vmem:[%s4765 + $0x190] sm:$0xff]
        %v4817 = vld [vmem:[%s4765 + $0x198] sm:$0xff]
        %v4818 = vld [vmem:[%s4765 + $0x1a0] sm:$0xff]
        %v4819 = vld [vmem:[%s4765 + $0x1a8] sm:$0xff]
        %v4820 = vld [vmem:[%s4765 + $0x1b0] sm:$0xff]
        %v4821 = vld [vmem:[%s4765 + $0x1b8] sm:$0xff]
        %v4822 = vld [vmem:[%s4765 + $0x1c0] sm:$0xff]
        %v4823 = vld [vmem:[%s4765 + $0x1c8] sm:$0xff]
        %v4824 = vld [vmem:[%s4765 + $0x1d0] sm:$0xff]
        %v4825 = vld [vmem:[%s4765 + $0x1d8] sm:$0xff]
        %v4826 = vld [vmem:[%s4765 + $0x1e0] sm:$0xff]
        %v4827 = vld [vmem:[%s4765 + $0x1e8] sm:$0xff]
        %v4828 = vld [vmem:[%s4765 + $0x1f0] sm:$0xff]
        %v4829 = vld [vmem:[%s4765 + $0x1f8] sm:$0xff]
        %4830 = vmatprep.subr.mxu0 %v4797
        %4831 = vmatpush1.msra.mxu0 %v4796
        %4832 = vmatprep.subr.mxu0 %v4795
        %4833 = vmatpush1.msra.mxu0 %v4794
        %4834 = vmatprep.subr.mxu0 %v4793
        %4835 = vmatpush1.msra.mxu0 %v4792
        %4836 = vmatprep.subr.mxu0 %v4791
        %4837 = vmatpush1.msra.mxu0 %v4790
        %4838 = vmatprep.subr.mxu0 %v4789
        %4839 = vmatpush1.msra.mxu0 %v4788
        %4840 = vmatprep.subr.mxu0 %v4787
        %4841 = vmatpush1.msra.mxu0 %v4786
        %4842 = vmatprep.subr.mxu0 %v4785
        %4843 = vmatpush1.msra.mxu0 %v4784
        %4844 = vmatprep.subr.mxu0 %v4783
        %4845 = vmatpush1.msra.mxu0 %v4782
        %4846 = vmatprep.subr.mxu0 %v4781
        %4847 = vmatpush1.msra.mxu0 %v4780
        %4848 = vmatprep.subr.mxu0 %v4779
        %4849 = vmatpush1.msra.mxu0 %v4778
        %4850 = vmatprep.subr.mxu0 %v4777
        %4851 = vmatpush1.msra.mxu0 %v4776
        %4852 = vmatprep.subr.mxu0 %v4775
        %4853 = vmatpush1.msra.mxu0 %v4774
        %4854 = vmatprep.subr.mxu0 %v4773
        %4855 = vmatpush1.msra.mxu0 %v4772
        %4856 = vmatprep.subr.mxu0 %v4771
        %4857 = vmatpush1.msra.mxu0 %v4770
        %4858 = vmatprep.subr.mxu0 %v4769
        %4859 = vmatpush1.msra.mxu0 %v4768
        %4860 = vmatprep.subr.mxu0 %v4767
        %4861 = vmatpush1.msra.mxu0 %v4766
        %4862 = vmatprep.subr.mxu0 %v4829
        %4863 = vmatpush2.msra.mxu0 %v4828
        %4864 = vmatprep.subr.mxu0 %v4827
        %4865 = vmatpush2.msra.mxu0 %v4826
        %4866 = vmatprep.subr.mxu0 %v4825
        %4867 = vmatpush2.msra.mxu0 %v4824
        %4868 = vmatprep.subr.mxu0 %v4823
        %4869 = vmatpush2.msra.mxu0 %v4822
        %4870 = vmatprep.subr.mxu0 %v4821
        %4871 = vmatpush2.msra.mxu0 %v4820
        %4872 = vmatprep.subr.mxu0 %v4819
        %4873 = vmatpush2.msra.mxu0 %v4818
        %4874 = vmatprep.subr.mxu0 %v4817
        %4875 = vmatpush2.msra.mxu0 %v4816
        %4876 = vmatprep.subr.mxu0 %v4815
        %4877 = vmatpush2.msra.mxu0 %v4814
        %4878 = vmatprep.subr.mxu0 %v4813
        %4879 = vmatpush2.msra.mxu0 %v4812
        %4880 = vmatprep.subr.mxu0 %v4811
        %4881 = vmatpush2.msra.mxu0 %v4810
        %4882 = vmatprep.subr.mxu0 %v4809
        %4883 = vmatpush2.msra.mxu0 %v4808
        %4884 = vmatprep.subr.mxu0 %v4807
        %4885 = vmatpush2.msra.mxu0 %v4806
        %4886 = vmatprep.subr.mxu0 %v4805
        %4887 = vmatpush2.msra.mxu0 %v4804
        %4888 = vmatprep.subr.mxu0 %v4803
        %4889 = vmatpush2.msra.mxu0 %v4802
        %4890 = vmatprep.subr.mxu0 %v4801
        %4891 = vmatpush2.msra.mxu0 %v4800
        %4892 = vmatprep.subr.mxu0 %v4799
        %4893 = vmatpush2.msra.mxu0 %v4798
        %4894 = vmatprep.mubr.f32.mxu0 %v4763
        %4895 = vmatmul.mubr.f32.gmra.mxu0 %v4761
        %v4896 = vpop.f32.mrf.mxu0
        %v4897 = vadd.f32 0.0, %v4896
        %v4898 = vpop.f32.mrf.mxu0
        %v4899 = vadd.f32 0.0, %v4898
        %4900 = vdwg.mxu0
        %v4901 = vadd.f32 %v4685, %v4897
        %v4902 = vadd.f32 %v4687, %v4899
        %s4903 = scalar_lea.vmem [#allocation16], 3
        %v4904 = vld [vmem:[%s4903] sm:$0x1]
        %v4906 = vsel %vm4260, %v4904, 0
        %4908 = vmatprep.subr.mxu0 0.0
        %4909 = vmatpush1.msra.mxu0 0.0
        %4910 = vmatprep.subr.mxu0 0.0
        %4911 = vmatpush1.msra.mxu0 0.0
        %4912 = vmatprep.subr.mxu0 0.0
        %4913 = vmatpush1.msra.mxu0 0.0
        %4914 = vmatprep.subr.mxu0 0.0
        %4915 = vmatpush1.msra.mxu0 0.0
        %4916 = vmatprep.subr.mxu0 0.0
        %4917 = vmatpush1.msra.mxu0 0.0
        %4918 = vmatprep.subr.mxu0 0.0
        %4919 = vmatpush1.msra.mxu0 0.0
        %4920 = vmatprep.subr.mxu0 0.0
        %4921 = vmatpush1.msra.mxu0 0.0
        %4922 = vmatprep.subr.mxu0 0.0
        %4923 = vmatpush1.msra.mxu0 0.0
        %4924 = vmatprep.subr.mxu0 0.0
        %4925 = vmatpush1.msra.mxu0 0.0
        %4926 = vmatprep.subr.mxu0 0.0
        %4927 = vmatpush1.msra.mxu0 0.0
        %4928 = vmatprep.subr.mxu0 0.0
        %4929 = vmatpush1.msra.mxu0 0.0
        %4930 = vmatprep.subr.mxu0 0.0
        %4931 = vmatpush1.msra.mxu0 0.0
        %4932 = vmatprep.subr.mxu0 0.0
        %4933 = vmatpush1.msra.mxu0 0.0
        %4934 = vmatprep.subr.mxu0 0.0
        %4935 = vmatpush1.msra.mxu0 0.0
        %4936 = vmatprep.subr.mxu0 0.0
        %4937 = vmatpush1.msra.mxu0 0.0
        %4938 = vmatprep.subr.mxu0 %v4269
        %4939 = vmatpush1.msra.mxu0 %v4266
        %4940 = vmatprep.subr.mxu0 0.0
        %4941 = vmatpush2.msra.mxu0 0.0
        %4942 = vmatprep.subr.mxu0 0.0
        %4943 = vmatpush2.msra.mxu0 0.0
        %4944 = vmatprep.subr.mxu0 0.0
        %4945 = vmatpush2.msra.mxu0 0.0
        %4946 = vmatprep.subr.mxu0 0.0
        %4947 = vmatpush2.msra.mxu0 0.0
        %4948 = vmatprep.subr.mxu0 0.0
        %4949 = vmatpush2.msra.mxu0 0.0
        %4950 = vmatprep.subr.mxu0 0.0
        %4951 = vmatpush2.msra.mxu0 0.0
        %4952 = vmatprep.subr.mxu0 0.0
        %4953 = vmatpush2.msra.mxu0 0.0
        %4954 = vmatprep.subr.mxu0 0.0
        %4955 = vmatpush2.msra.mxu0 0.0
        %4956 = vmatprep.subr.mxu0 0.0
        %4957 = vmatpush2.msra.mxu0 0.0
        %4958 = vmatprep.subr.mxu0 0.0
        %4959 = vmatpush2.msra.mxu0 0.0
        %4960 = vmatprep.subr.mxu0 0.0
        %4961 = vmatpush2.msra.mxu0 0.0
        %4962 = vmatprep.subr.mxu0 0.0
        %4963 = vmatpush2.msra.mxu0 0.0
        %4964 = vmatprep.subr.mxu0 0.0
        %4965 = vmatpush2.msra.mxu0 0.0
        %4966 = vmatprep.subr.mxu0 0.0
        %4967 = vmatpush2.msra.mxu0 0.0
        %4968 = vmatprep.subr.mxu0 0.0
        %4969 = vmatpush2.msra.mxu0 0.0
        %4970 = vmatprep.subr.mxu0 0.0
        %4971 = vmatpush2.msra.mxu0 0.0
        %4972 = vmatprep.mubr.f32.mxu0 0.0
        %4973 = vmatmul.mubr.f32.gmra.mxu0 %v4906
        %v4974 = vpop.f32.mrf.mxu0
        %v4975 = vadd.f32 0.0, %v4974
        %v4976 = vpop.f32.mrf.mxu0
        %v4977 = vadd.f32 0.0, %v4976
        %4978 = vdwg.mxu0
        %s4979 = scalar_lea.vmem [#allocation18], 1536
        %v4980 = vld [vmem:[%s4979] sm:$0xff]
        %v4981 = vld [vmem:[%s4979 + $0x8] sm:$0xff]
        %v4982 = vld [vmem:[%s4979 + $0x10] sm:$0xff]
        %v4983 = vld [vmem:[%s4979 + $0x18] sm:$0xff]
        %v4984 = vld [vmem:[%s4979 + $0x20] sm:$0xff]
        %v4985 = vld [vmem:[%s4979 + $0x28] sm:$0xff]
        %v4986 = vld [vmem:[%s4979 + $0x30] sm:$0xff]
        %v4987 = vld [vmem:[%s4979 + $0x38] sm:$0xff]
        %v4988 = vld [vmem:[%s4979 + $0x40] sm:$0xff]
        %v4989 = vld [vmem:[%s4979 + $0x48] sm:$0xff]
        %v4990 = vld [vmem:[%s4979 + $0x50] sm:$0xff]
        %v4991 = vld [vmem:[%s4979 + $0x58] sm:$0xff]
        %v4992 = vld [vmem:[%s4979 + $0x60] sm:$0xff]
        %v4993 = vld [vmem:[%s4979 + $0x68] sm:$0xff]
        %v4994 = vld [vmem:[%s4979 + $0x70] sm:$0xff]
        %v4995 = vld [vmem:[%s4979 + $0x78] sm:$0xff]
        %v4996 = vld [vmem:[%s4979 + $0x80] sm:$0xff]
        %v4997 = vld [vmem:[%s4979 + $0x88] sm:$0xff]
        %v4998 = vld [vmem:[%s4979 + $0x90] sm:$0xff]
        %v4999 = vld [vmem:[%s4979 + $0x98] sm:$0xff]
        %v5000 = vld [vmem:[%s4979 + $0xa0] sm:$0xff]
        %v5001 = vld [vmem:[%s4979 + $0xa8] sm:$0xff]
        %v5002 = vld [vmem:[%s4979 + $0xb0] sm:$0xff]
        %v5003 = vld [vmem:[%s4979 + $0xb8] sm:$0xff]
        %v5004 = vld [vmem:[%s4979 + $0xc0] sm:$0xff]
        %v5005 = vld [vmem:[%s4979 + $0xc8] sm:$0xff]
        %v5006 = vld [vmem:[%s4979 + $0xd0] sm:$0xff]
        %v5007 = vld [vmem:[%s4979 + $0xd8] sm:$0xff]
        %v5008 = vld [vmem:[%s4979 + $0xe0] sm:$0xff]
        %v5009 = vld [vmem:[%s4979 + $0xe8] sm:$0xff]
        %v5010 = vld [vmem:[%s4979 + $0xf0] sm:$0xff]
        %v5011 = vld [vmem:[%s4979 + $0xf8] sm:$0xff]
        %v5012 = vld [vmem:[%s4979 + $0x100] sm:$0xff]
        %v5013 = vld [vmem:[%s4979 + $0x108] sm:$0xff]
        %v5014 = vld [vmem:[%s4979 + $0x110] sm:$0xff]
        %v5015 = vld [vmem:[%s4979 + $0x118] sm:$0xff]
        %v5016 = vld [vmem:[%s4979 + $0x120] sm:$0xff]
        %v5017 = vld [vmem:[%s4979 + $0x128] sm:$0xff]
        %v5018 = vld [vmem:[%s4979 + $0x130] sm:$0xff]
        %v5019 = vld [vmem:[%s4979 + $0x138] sm:$0xff]
        %v5020 = vld [vmem:[%s4979 + $0x140] sm:$0xff]
        %v5021 = vld [vmem:[%s4979 + $0x148] sm:$0xff]
        %v5022 = vld [vmem:[%s4979 + $0x150] sm:$0xff]
        %v5023 = vld [vmem:[%s4979 + $0x158] sm:$0xff]
        %v5024 = vld [vmem:[%s4979 + $0x160] sm:$0xff]
        %v5025 = vld [vmem:[%s4979 + $0x168] sm:$0xff]
        %v5026 = vld [vmem:[%s4979 + $0x170] sm:$0xff]
        %v5027 = vld [vmem:[%s4979 + $0x178] sm:$0xff]
        %v5028 = vld [vmem:[%s4979 + $0x180] sm:$0xff]
        %v5029 = vld [vmem:[%s4979 + $0x188] sm:$0xff]
        %v5030 = vld [vmem:[%s4979 + $0x190] sm:$0xff]
        %v5031 = vld [vmem:[%s4979 + $0x198] sm:$0xff]
        %v5032 = vld [vmem:[%s4979 + $0x1a0] sm:$0xff]
        %v5033 = vld [vmem:[%s4979 + $0x1a8] sm:$0xff]
        %v5034 = vld [vmem:[%s4979 + $0x1b0] sm:$0xff]
        %v5035 = vld [vmem:[%s4979 + $0x1b8] sm:$0xff]
        %v5036 = vld [vmem:[%s4979 + $0x1c0] sm:$0xff]
        %v5037 = vld [vmem:[%s4979 + $0x1c8] sm:$0xff]
        %v5038 = vld [vmem:[%s4979 + $0x1d0] sm:$0xff]
        %v5039 = vld [vmem:[%s4979 + $0x1d8] sm:$0xff]
        %v5040 = vld [vmem:[%s4979 + $0x1e0] sm:$0xff]
        %v5041 = vld [vmem:[%s4979 + $0x1e8] sm:$0xff]
        %v5042 = vld [vmem:[%s4979 + $0x1f0] sm:$0xff]
        %v5043 = vld [vmem:[%s4979 + $0x1f8] sm:$0xff]
        %5044 = vmatprep.subr.mxu0 %v5011
        %5045 = vmatpush1.msra.mxu0 %v5010
        %5046 = vmatprep.subr.mxu0 %v5009
        %5047 = vmatpush1.msra.mxu0 %v5008
        %5048 = vmatprep.subr.mxu0 %v5007
        %5049 = vmatpush1.msra.mxu0 %v5006
        %5050 = vmatprep.subr.mxu0 %v5005
        %5051 = vmatpush1.msra.mxu0 %v5004
        %5052 = vmatprep.subr.mxu0 %v5003
        %5053 = vmatpush1.msra.mxu0 %v5002
        %5054 = vmatprep.subr.mxu0 %v5001
        %5055 = vmatpush1.msra.mxu0 %v5000
        %5056 = vmatprep.subr.mxu0 %v4999
        %5057 = vmatpush1.msra.mxu0 %v4998
        %5058 = vmatprep.subr.mxu0 %v4997
        %5059 = vmatpush1.msra.mxu0 %v4996
        %5060 = vmatprep.subr.mxu0 %v4995
        %5061 = vmatpush1.msra.mxu0 %v4994
        %5062 = vmatprep.subr.mxu0 %v4993
        %5063 = vmatpush1.msra.mxu0 %v4992
        %5064 = vmatprep.subr.mxu0 %v4991
        %5065 = vmatpush1.msra.mxu0 %v4990
        %5066 = vmatprep.subr.mxu0 %v4989
        %5067 = vmatpush1.msra.mxu0 %v4988
        %5068 = vmatprep.subr.mxu0 %v4987
        %5069 = vmatpush1.msra.mxu0 %v4986
        %5070 = vmatprep.subr.mxu0 %v4985
        %5071 = vmatpush1.msra.mxu0 %v4984
        %5072 = vmatprep.subr.mxu0 %v4983
        %5073 = vmatpush1.msra.mxu0 %v4982
        %5074 = vmatprep.subr.mxu0 %v4981
        %5075 = vmatpush1.msra.mxu0 %v4980
        %5076 = vmatprep.subr.mxu0 %v5043
        %5077 = vmatpush2.msra.mxu0 %v5042
        %5078 = vmatprep.subr.mxu0 %v5041
        %5079 = vmatpush2.msra.mxu0 %v5040
        %5080 = vmatprep.subr.mxu0 %v5039
        %5081 = vmatpush2.msra.mxu0 %v5038
        %5082 = vmatprep.subr.mxu0 %v5037
        %5083 = vmatpush2.msra.mxu0 %v5036
        %5084 = vmatprep.subr.mxu0 %v5035
        %5085 = vmatpush2.msra.mxu0 %v5034
        %5086 = vmatprep.subr.mxu0 %v5033
        %5087 = vmatpush2.msra.mxu0 %v5032
        %5088 = vmatprep.subr.mxu0 %v5031
        %5089 = vmatpush2.msra.mxu0 %v5030
        %5090 = vmatprep.subr.mxu0 %v5029
        %5091 = vmatpush2.msra.mxu0 %v5028
        %5092 = vmatprep.subr.mxu0 %v5027
        %5093 = vmatpush2.msra.mxu0 %v5026
        %5094 = vmatprep.subr.mxu0 %v5025
        %5095 = vmatpush2.msra.mxu0 %v5024
        %5096 = vmatprep.subr.mxu0 %v5023
        %5097 = vmatpush2.msra.mxu0 %v5022
        %5098 = vmatprep.subr.mxu0 %v5021
        %5099 = vmatpush2.msra.mxu0 %v5020
        %5100 = vmatprep.subr.mxu0 %v5019
        %5101 = vmatpush2.msra.mxu0 %v5018
        %5102 = vmatprep.subr.mxu0 %v5017
        %5103 = vmatpush2.msra.mxu0 %v5016
        %5104 = vmatprep.subr.mxu0 %v5015
        %5105 = vmatpush2.msra.mxu0 %v5014
        %5106 = vmatprep.subr.mxu0 %v5013
        %5107 = vmatpush2.msra.mxu0 %v5012
        %5108 = vmatprep.mubr.f32.mxu0 %v4977
        %5109 = vmatmul.mubr.f32.gmra.mxu0 %v4975
        %v5110 = vpop.f32.mrf.mxu0
        %v5111 = vadd.f32 0.0, %v5110
        %v5112 = vpop.f32.mrf.mxu0
        %v5113 = vadd.f32 0.0, %v5112
        %5114 = vdwg.mxu0
        %v5115 = vadd.f32 %v4901, %v5111
        %v5116 = vadd.f32 %v4902, %v5113
        %v5117 = vld [vmem:[#allocation19] sm:$0x3]
        %v5119 = vlaneseq
        %v5120 = vshrl.u32 %v5119, 7
        %v5121 = vsub.s32 0, %v5120
        %v5122 = vrot.slane %v5117, %v5121
        %v5123 = vlaneseq
        %v5124 = vshrl.u32 %v5123, 7
        %v5125 = vsub.s32 1, %v5124
        %v5126 = vrot.slane %v5117, %v5125
        %v5129 = vadd.f32 %v5115, %v5122
        %v5130 = vadd.f32 %v5116, %v5126
        %v5131 = vmax.f32 %v5129, 0.0
        %v5132 = vmax.f32 %v5130, 0.0
        %v5133 = vld [vmem:[#allocation21] sm:$0xff]
        %v5134 = vld [vmem:[#allocation21 + $0x8] sm:$0xff]
        %v5135 = vld [vmem:[#allocation21 + $0x10] sm:$0xff]
        %v5136 = vld [vmem:[#allocation21 + $0x18] sm:$0xff]
        %v5137 = vld [vmem:[#allocation21 + $0x20] sm:$0xff]
        %v5138 = vld [vmem:[#allocation21 + $0x28] sm:$0xff]
        %v5139 = vld [vmem:[#allocation21 + $0x30] sm:$0xff]
        %v5140 = vld [vmem:[#allocation21 + $0x38] sm:$0xff]
        %v5141 = vld [vmem:[#allocation21 + $0x40] sm:$0xff]
        %v5142 = vld [vmem:[#allocation21 + $0x48] sm:$0xff]
        %v5143 = vld [vmem:[#allocation21 + $0x50] sm:$0xff]
        %v5144 = vld [vmem:[#allocation21 + $0x58] sm:$0xff]
        %v5145 = vld [vmem:[#allocation21 + $0x60] sm:$0xff]
        %v5146 = vld [vmem:[#allocation21 + $0x68] sm:$0xff]
        %v5147 = vld [vmem:[#allocation21 + $0x70] sm:$0xff]
        %v5148 = vld [vmem:[#allocation21 + $0x78] sm:$0xff]
        %v5149 = vld [vmem:[#allocation21 + $0x80] sm:$0xff]
        %v5150 = vld [vmem:[#allocation21 + $0x88] sm:$0xff]
        %v5151 = vld [vmem:[#allocation21 + $0x90] sm:$0xff]
        %v5152 = vld [vmem:[#allocation21 + $0x98] sm:$0xff]
        %v5153 = vld [vmem:[#allocation21 + $0xa0] sm:$0xff]
        %v5154 = vld [vmem:[#allocation21 + $0xa8] sm:$0xff]
        %v5155 = vld [vmem:[#allocation21 + $0xb0] sm:$0xff]
        %v5156 = vld [vmem:[#allocation21 + $0xb8] sm:$0xff]
        %v5157 = vld [vmem:[#allocation21 + $0xc0] sm:$0xff]
        %v5158 = vld [vmem:[#allocation21 + $0xc8] sm:$0xff]
        %v5159 = vld [vmem:[#allocation21 + $0xd0] sm:$0xff]
        %v5160 = vld [vmem:[#allocation21 + $0xd8] sm:$0xff]
        %v5161 = vld [vmem:[#allocation21 + $0xe0] sm:$0xff]
        %v5162 = vld [vmem:[#allocation21 + $0xe8] sm:$0xff]
        %v5163 = vld [vmem:[#allocation21 + $0xf0] sm:$0xff]
        %v5164 = vld [vmem:[#allocation21 + $0xf8] sm:$0xff]
        %v5165 = vld [vmem:[#allocation22] sm:$0x1]
        %5166 = vmatprep.subr.mxu0 0.0
        %5167 = vmatpush1.msra.mxu0 %v5148
        %5168 = vmatprep.subr.mxu0 0.0
        %5169 = vmatpush1.msra.mxu0 %v5147
        %5170 = vmatprep.subr.mxu0 0.0
        %5171 = vmatpush1.msra.mxu0 %v5146
        %5172 = vmatprep.subr.mxu0 0.0
        %5173 = vmatpush1.msra.mxu0 %v5145
        %5174 = vmatprep.subr.mxu0 0.0
        %5175 = vmatpush1.msra.mxu0 %v5144
        %5176 = vmatprep.subr.mxu0 0.0
        %5177 = vmatpush1.msra.mxu0 %v5143
        %5178 = vmatprep.subr.mxu0 0.0
        %5179 = vmatpush1.msra.mxu0 %v5142
        %5180 = vmatprep.subr.mxu0 0.0
        %5181 = vmatpush1.msra.mxu0 %v5141
        %5182 = vmatprep.subr.mxu0 0.0
        %5183 = vmatpush1.msra.mxu0 %v5140
        %5184 = vmatprep.subr.mxu0 0.0
        %5185 = vmatpush1.msra.mxu0 %v5139
        %5186 = vmatprep.subr.mxu0 0.0
        %5187 = vmatpush1.msra.mxu0 %v5138
        %5188 = vmatprep.subr.mxu0 0.0
        %5189 = vmatpush1.msra.mxu0 %v5137
        %5190 = vmatprep.subr.mxu0 0.0
        %5191 = vmatpush1.msra.mxu0 %v5136
        %5192 = vmatprep.subr.mxu0 0.0
        %5193 = vmatpush1.msra.mxu0 %v5135
        %5194 = vmatprep.subr.mxu0 0.0
        %5195 = vmatpush1.msra.mxu0 %v5134
        %5196 = vmatprep.subr.mxu0 0.0
        %5197 = vmatpush1.msra.mxu0 %v5133
        %5198 = vmatprep.subr.mxu0 0.0
        %5199 = vmatpush2.msra.mxu0 %v5164
        %5200 = vmatprep.subr.mxu0 0.0
        %5201 = vmatpush2.msra.mxu0 %v5163
        %5202 = vmatprep.subr.mxu0 0.0
        %5203 = vmatpush2.msra.mxu0 %v5162
        %5204 = vmatprep.subr.mxu0 0.0
        %5205 = vmatpush2.msra.mxu0 %v5161
        %5206 = vmatprep.subr.mxu0 0.0
        %5207 = vmatpush2.msra.mxu0 %v5160
        %5208 = vmatprep.subr.mxu0 0.0
        %5209 = vmatpush2.msra.mxu0 %v5159
        %5210 = vmatprep.subr.mxu0 0.0
        %5211 = vmatpush2.msra.mxu0 %v5158
        %5212 = vmatprep.subr.mxu0 0.0
        %5213 = vmatpush2.msra.mxu0 %v5157
        %5214 = vmatprep.subr.mxu0 0.0
        %5215 = vmatpush2.msra.mxu0 %v5156
        %5216 = vmatprep.subr.mxu0 0.0
        %5217 = vmatpush2.msra.mxu0 %v5155
        %5218 = vmatprep.subr.mxu0 0.0
        %5219 = vmatpush2.msra.mxu0 %v5154
        %5220 = vmatprep.subr.mxu0 0.0
        %5221 = vmatpush2.msra.mxu0 %v5153
        %5222 = vmatprep.subr.mxu0 0.0
        %5223 = vmatpush2.msra.mxu0 %v5152
        %5224 = vmatprep.subr.mxu0 0.0
        %5225 = vmatpush2.msra.mxu0 %v5151
        %5226 = vmatprep.subr.mxu0 0.0
        %5227 = vmatpush2.msra.mxu0 %v5150
        %5228 = vmatprep.subr.mxu0 0.0
        %5229 = vmatpush2.msra.mxu0 %v5149
        %5230 = vmatprep.mubr.f32.mxu0 %v5132
        %5231 = vmatmul.mubr.f32.gmra.mxu0 %v5131
        %v5232 = vpop.f32.mrf.mxu0
        %v5233 = vadd.f32 %v5165, %v5232
        %v5234 = vpop.f32.mrf.mxu0
        %5235 = vdwg.mxu0
        %5236 = vst [vmem:[%s684] sm:$0x1] %v5233
        %p5237 = scmp.lt.s32.totalorder %s34, 1
        %s5238 = scalar_select %p5237, %s34, 1
        %s5239 = scalar_lea.vmem %s15, %s5238
        // Predicated region
        $region137: #{simplified_vae_forward.1} parent=79 // pred_check
          %p5240 = pneg %p372
        $region138: #{simplified_vae_forward.1} parent=79 // pred_check_branch
          %5242 = sbr.rel (%p5240) target = $region140
        $region139: #{simplified_vae_forward.1} parent=79 // pred_region
          _
        $region140: #{simplified_vae_forward.1} parent=79 // pred_fallthru
          _
      $region80: #{simplified_vae_forward.1} parent=5 // pred_fallthru
        _
      %p5243 = scmp.le.s32.totalorder 2, %s29
      // Predicated region
      $region141: #{simplified_vae_forward.1} parent=5 // pred_check
        %p5244 = pneg %p5243
      $region142: #{simplified_vae_forward.1} parent=5 // pred_check_branch
        %5246 = sbr.rel (%p5244) target = $region144
      $region143: #{simplified_vae_forward.1} parent=5 // pred_region
        %s5247 = ssub.s32 %s29, 2
        // Predicated region
        $region145: #{simplified_vae_forward.1} parent=143 // pred_check
          %p5248 = pneg %p378
        $region146: #{simplified_vae_forward.1} parent=143 // pred_check_branch
          %5250 = sbr.rel (%p5248) target = $region148
        $region147: #{simplified_vae_forward.1} parent=143 // pred_region
          %p5251 = scmp.lt.s32.totalorder %s35, 1
          %s5252 = scalar_select %p5251, %s35, 1
          %s5253 = scalar_lea.vmem %s15, %s5252
        $region148: #{simplified_vae_forward.1} parent=143 // pred_fallthru
          _
      $region144: #{simplified_vae_forward.1} parent=5 // pred_fallthru
        _
    $region6: #{simplified_vae_forward.1} parent=1 // loop_footer
      %s33 = sadd.s32 1, %s29
    $region7: #{simplified_vae_forward.1} parent=1 // loop_footer_branch
      %28 = sbr.rel target = $region3
    $region8: #{simplified_vae_forward.1} parent=1 // loop_exit
      _
    %5254 = vsyncpa [#allocation3], 1
    %s5255 = scalar_lea.sflag [#allocation3], 1
    %5256 = vsyncpa %s5255, 1
    %5257 = vsyncpa [#allocation5], 1
    %5258 = vsyncpa [#allocation8], 1
    %5259 = vsyncpa [#allocation11], 1
    %5260 = vsyncpa [#allocation14], 1
    %5261 = vsyncpa [#allocation17], 1
    %5262 = vsyncpa [#allocation20], 1
    %5263 = vsyncpa [#allocation23], 1

</llo_original>
